<compile_context>
chip_gen: v6e
topology: v6e:2x2x1
jax: 0.10.0
libtpu: 0.0.40
codegen_flags: <defaults>
</compile_context>

<pallas_src>
import functools
import numpy as np

import jax
import jax.numpy as jnp
from jax import lax
from jax.experimental import pallas as pl
from jax.experimental.pallas import tpu as pltpu


def _vmem_capacity_bytes():
    """Per-core VMEM capacity (fallback: 64 MiB, the v7x per-TC budget)."""
    try:
        info = pltpu.get_tpu_info()
        cap = getattr(info, "vmem_capacity_bytes", None)
        if cap:
            return int(cap)
    except Exception:
        pass
    return 64 * 2**20


def _mask_cache_kernel(pts_ref, dens_ref, alpha_ref, acc_ref, *,
                       sizes, mins, maxs, perm, k_tile,
                       act_shift, voxel_size_ratio, compute_dtype):
    """Grid = (n_point_tiles [parallel], n_k_slabs [arbitrary, reduction])."""
    Da, Db, Dc = sizes
    k_step = pl.program_id(1)

    pts = pts_ref[...]                           # (3, tn) f32, points on lanes
    tn = pts.shape[1]

    def axis_setup(p, lo, hi, size):
        # align_corners=True:  idx = (p - lo) / (hi - lo) * (size - 1)
        f = (p - lo) / (hi - lo) * (size - 1.0)
        i0f = jnp.floor(f)
        w1 = f - i0f
        w0 = 1.0 - w1
        # padding_mode='zeros': out-of-range corner contributes 0.
        in0 = (i0f >= 0.0) & (i0f <= size - 1.0)          # i0   in [0, size-1]
        in1 = (i0f >= -1.0) & (i0f <= size - 2.0)         # i0+1 in [0, size-1]
        w0 = jnp.where(in0, w0, 0.0)
        w1 = jnp.where(in1, w1, 0.0)
        return i0f.astype(jnp.int32), w0, w1              # each (1, tn)

    # perm maps (a, b, c) back to the query-point rows (x, y, z).
    ia0, wa0, wa1 = axis_setup(pts[perm[0]:perm[0] + 1, :], mins[0], maxs[0], Da)
    ib0, wb0, wb1 = axis_setup(pts[perm[1]:perm[1] + 1, :], mins[1], maxs[1], Db)
    ic0, wc0, wc1 = axis_setup(pts[perm[2]:perm[2] + 1, :], mins[2], maxs[2], Dc)

    # Sparse contraction-axis weights, transposed: (Dc, tn), <=2 nonzeros/col.
    c_iota = lax.broadcasted_iota(jnp.int32, (Dc, tn), 0)
    wcT = (jnp.where(c_iota == ic0, wc0, 0.0)
           + jnp.where(c_iota == ic0 + 1, wc1, 0.0))

    # Contraction-axis interpolation on the MXU (f32 accumulation):
    #   (k_tile, Dc) @ (Dc, tn) -> (k_tile, tn)
    dens = dens_ref[...]
    txT = jnp.dot(dens, wcT.astype(dens.dtype),
                  preferred_element_type=jnp.float32)

    # Combined 4-corner one-hot over the flattened k = a*Db + b axis,
    # built in-kernel (no lane-padded lookup operands).
    k_iota = lax.broadcasted_iota(jnp.int32, (k_tile, 1), 0) + k_step * k_tile
    c00 = ia0 * Db + ib0                                   # (1, tn) int32
    w00 = wa0 * wb0
    w01 = wa0 * wb1
    w10 = wa1 * wb0
    w11 = wa1 * wb1
    onehot = (jnp.where(k_iota == c00, w00, 0.0)
              + jnp.where(k_iota == c00 + 1, w01, 0.0)
              + jnp.where(k_iota == c00 + Db, w10, 0.0)
              + jnp.where(k_iota == c00 + Db + 1, w11, 0.0))   # (k_tile, tn)

    if np.dtype(compute_dtype) != np.dtype(np.float32):
        # bf16 elementwise intermediates (v6e/v7x VPU); f32 accumulator below.
        txT = txT.astype(compute_dtype)
        onehot = onehot.astype(compute_dtype)

    partial = jnp.sum((txT * onehot).astype(jnp.float32),
                      axis=0, keepdims=True)                # (1, tn) f32

    @pl.when(k_step == 0)
    def _():
        acc_ref[...] = jnp.zeros_like(acc_ref)

    acc_ref[...] += partial

    @pl.when(k_step == pl.num_programs(1) - 1)
    def _():
        d = acc_ref[...] + act_shift
        # softplus (log1p for parity with torch.nn.functional.softplus)
        softplus = jnp.where(d > 20.0, d,
                             jnp.log1p(jnp.exp(jnp.minimum(d, 20.0))))
        alpha = 1.0 - jnp.exp(-softplus * voxel_size_ratio)
        alpha_ref[...] = alpha.reshape(alpha_ref.shape)


class MaskCachePallas:
    """Pallas-TPU implementation of lib/dvgo_ori.py::MaskCache (default path)."""

    def __init__(self, density_raw, xyz_min, xyz_max, mask_cache_thres,
                 act_shift, voxel_size_ratio, ks=3,
                 compute_dtype=jnp.float32, k_tile=None):
        # __init__-time glue: F.max_pool3d(density, kernel=ks, stride=1, pad=ks//2)
        p = ks // 2
        self.density = lax.reduce_window(
            jnp.asarray(density_raw, jnp.float32), -jnp.inf, lax.max,
            (ks, ks, ks), (1, 1, 1), [(p, p)] * 3)
        self.xyz_min = np.asarray(xyz_min, np.float32)
        self.xyz_max = np.asarray(xyz_max, np.float32)
        self.mask_cache_thres = float(mask_cache_thres)
        self.act_shift = float(act_shift)
        self.voxel_size_ratio = float(voxel_size_ratio)
        self.compute_dtype = np.dtype(compute_dtype)

        dims = tuple(int(s) for s in self.density.shape)   # (Dx, Dy, Dz)
        # MXU contraction axis = largest grid dim; the other two flatten to k.
        c_ax = int(np.argmax(dims))
        a_ax, b_ax = [ax for ax in range(3) if ax != c_ax]
        self._perm = (a_ax, b_ax, c_ax)
        Da, Db, Dc = dims[a_ax], dims[b_ax], dims[c_ax]
        self._sizes = (Da, Db, Dc)
        self._mins = tuple(float(self.xyz_min[ax]) for ax in self._perm)
        self._maxs = tuple(float(self.xyz_max[ax]) for ax in self._perm)

        hw = Da * Db
        if k_tile is None:
            k_tile = min(2048, -(-hw // 8) * 8)             # multiple of 8
        assert k_tile % 8 == 0, "k_tile must be a multiple of 8 (sublanes)"
        self._k_tile = int(k_tile)
        hw_pad = -(-hw // self._k_tile) * self._k_tile
        self._n_k = hw_pad // self._k_tile

        # Permuted + flattened density: (Da*Db [zero-padded], Dc).
        dens2d = jnp.transpose(self.density, self._perm).reshape(hw, Dc)
        if hw_pad != hw:
            dens2d = jnp.pad(dens2d, ((0, hw_pad - hw), (0, 0)))
        self._dens2d = dens2d.astype(self.compute_dtype)

    def __call__(self, xyz, tile_n=1024):
        assert tile_n % 128 == 0, "tile_n must be a multiple of 128 (lane width)"
        shape = xyz.shape[:-1]
        pts = jnp.asarray(xyz, jnp.float32).reshape(-1, 3)
        n = pts.shape[0]
        n_pad = (-n) % tile_n
        if n_pad:
            pts = jnp.pad(pts, ((0, n_pad), (0, 0)))
        n_tot = pts.shape[0]
        n_tiles = n_tot // tile_n
        pts_t = pts.T                                      # (3, n_tot), lane-dense

        Da, Db, Dc = self._sizes
        k_tile = self._k_tile
        n_k = self._n_k

        kernel = functools.partial(
            _mask_cache_kernel,
            sizes=self._sizes, mins=self._mins, maxs=self._maxs,
            perm=self._perm, k_tile=k_tile,
            act_shift=self.act_shift,
            voxel_size_ratio=self.voxel_size_ratio,
            compute_dtype=self.compute_dtype)

        # VMEM budget: double-buffered blocks + per-slab intermediates.
        dens_item = self._dens2d.dtype.itemsize
        inter_item = self.compute_dtype.itemsize
        vmem_needed = int(
            2 * 3 * tile_n * 4                 # pts blocks
            + 2 * k_tile * Dc * dens_item      # density slabs
            + 2 * tile_n * 4 + tile_n * 4      # out block + acc scratch
            + 3 * k_tile * tile_n * inter_item   # txT / onehot / product
            + 3 * Dc * tile_n * 4              # contraction one-hot temporaries
            + 32 * tile_n * 4)                 # per-point scalars
        cap = _vmem_capacity_bytes()
        vmem_limit = int(min(int(0.85 * cap),               # ~15% headroom per TC
                             max(32 * 2**20, 2 * vmem_needed)))

        alpha_tiles = pl.pallas_call(
            kernel,
            out_shape=jax.ShapeDtypeStruct((n_tiles, 1, tile_n), jnp.float32),
            grid=(n_tiles, n_k),
            in_specs=[
                pl.BlockSpec((3, tile_n), lambda i, k: (0, i)),
                pl.BlockSpec((k_tile, Dc), lambda i, k: (k, 0)),
            ],
            out_specs=pl.BlockSpec((1, 1, tile_n), lambda i, k: (i, 0, 0)),
            scratch_shapes=[pltpu.VMEM((1, tile_n), jnp.float32)],
            compiler_params=pltpu.CompilerParams(
                dimension_semantics=("parallel", "arbitrary"),
                vmem_limit_bytes=vmem_limit),
        )(pts_t, self._dens2d)

        alpha = alpha_tiles.reshape(-1)[:n].reshape(shape)
        mask = alpha >= self.mask_cache_thres              # bool, as in the module
        return mask, alpha


def _reference(xyz, density, xyz_min, xyz_max, act_shift, vsr, thres):
    """Pure-JAX reference (explicit 8-corner trilinear grid_sample, f32)."""
    shape = xyz.shape[:-1]
    p = xyz.reshape(-1, 3).astype(jnp.float32)
    Dx, Dy, Dz = density.shape
    sizes = jnp.array([Dx, Dy, Dz], jnp.float32)
    f = (p - xyz_min) / (xyz_max - xyz_min) * (sizes - 1.0)
    i0 = jnp.floor(f).astype(jnp.int32)
    w1 = f - jnp.floor(f)
    w0 = 1.0 - w1
    val = jnp.zeros((p.shape[0],), jnp.float32)
    for a in range(2):
        ix = i0[:, 0] + a
        wx = w0[:, 0] if a == 0 else w1[:, 0]
        for b in range(2):
            iy = i0[:, 1] + b
            wy = w0[:, 1] if b == 0 else w1[:, 1]
            for c in range(2):
                iz = i0[:, 2] + c
                wz = w0[:, 2] if c == 0 else w1[:, 2]
                inb = ((ix >= 0) & (ix < Dx) & (iy >= 0) & (iy < Dy)
                       & (iz >= 0) & (iz < Dz))
                v = density[jnp.clip(ix, 0, Dx - 1),
                            jnp.clip(iy, 0, Dy - 1),
                            jnp.clip(iz, 0, Dz - 1)]
                val = val + jnp.where(inb, wx * wy * wz * v, 0.0)
    x = val + act_shift
    sp = jnp.where(x > 20.0, x, jnp.log1p(jnp.exp(jnp.minimum(x, 20.0))))
    alpha = 1.0 - jnp.exp(-sp * vsr)
    return (alpha >= thres).reshape(shape), alpha.reshape(shape)


if __name__ == "__main__":
    key = jax.random.PRNGKey(0)
    k_dens, k_pts = jax.random.split(key)

    # Deterministic synthetic "checkpoint" contents.
    Dx, Dy, Dz = 16, 16, 16
    density_raw = jax.random.normal(k_dens, (Dx, Dy, Dz), jnp.float32)
    xyz_min = np.array([-1.0, -1.0, -1.0], np.float32)
    xyz_max = np.array([1.0, 1.0, 1.0], np.float32)
    act_shift = -2.0
    voxel_size_ratio = 1.0
    mask_cache_thres = 0.1

    # Query points (2, 256, 3); range slightly exceeds the box to exercise the
    # padding_mode='zeros' out-of-bounds path.
    xyz = jax.random.uniform(k_pts, (2, 256, 3), jnp.float32,
                             minval=-1.15, maxval=1.15)

    # Default f32 kernel (mask-threshold parity with the f32 PyTorch module).
    mc = MaskCachePallas(density_raw, xyz_min, xyz_max, mask_cache_thres,
                         act_shift, voxel_size_ratio, ks=3)
    mask, alpha = mc(xyz)
    mask = jax.block_until_ready(mask)
    alpha = jax.block_until_ready(alpha)

    ref_mask, ref_alpha = _reference(xyz, mc.density, jnp.asarray(xyz_min),
                                     jnp.asarray(xyz_max), act_shift,
                                     voxel_size_ratio, mask_cache_thres)
    np.testing.assert_allclose(np.asarray(alpha), np.asarray(ref_alpha),
                               rtol=2e-3, atol=2e-3)
    assert mask.shape == xyz.shape[:-1] and mask.dtype == jnp.bool_.dtype
    assert bool(jnp.all(mask == ref_mask))

    # Exercise the k-axis accumulation path (multiple k slabs) explicitly.
    mc_kt = MaskCachePallas(density_raw, xyz_min, xyz_max, mask_cache_thres,
                            act_shift, voxel_size_ratio, ks=3, k_tile=64)
    _, alpha_kt = mc_kt(xyz, tile_n=128)
    alpha_kt = jax.block_until_ready(alpha_kt)
    np.testing.assert_allclose(np.asarray(alpha_kt), np.asarray(ref_alpha),
                               rtol=2e-3, atol=2e-3)

    # bf16 MXU / bf16-intermediate variant (use on v6e/v7x, not v5e).
    mc_bf16 = MaskCachePallas(density_raw, xyz_min, xyz_max, mask_cache_thres,
                              act_shift, voxel_size_ratio, ks=3,
                              compute_dtype=jnp.bfloat16)
    _, alpha_bf16 = mc_bf16(xyz)
    alpha_bf16 = jax.block_until_ready(alpha_bf16)
    np.testing.assert_allclose(np.asarray(alpha_bf16), np.asarray(ref_alpha),
                               rtol=2e-2, atol=2e-2)

    print("KERNEL_OK")
</pallas_src>

<mosaic_0001>
module attributes {stable_mosaic.version = 11 : i64} {
  func.func @_mask_cache_kernel(%arg0: i32, %arg1: i32, %arg2: memref<3x1024xf32, #tpu.memory_space<vmem>>, %arg3: memref<256x16xf32, #tpu.memory_space<vmem>>, %arg4: memref<1x1x1024xf32, #tpu.memory_space<vmem>>, %arg5: memref<1x1024xf32, #tpu.memory_space<vmem>>) attributes {dimension_semantics = [#tpu.dimension_semantics<parallel>, #tpu.dimension_semantics<arbitrary>], iteration_bounds = array<i64: 1, 1>, scalar_prefetch = 0 : i64, scratch_operands = 1 : i64, tpu.core_type = #tpu.core_type<tc>, window_params = [{transform_indices = @transform_0, window_bounds = array<i64: 3, 1024>}, {transform_indices = @transform_1, window_bounds = array<i64: 256, 16>}, {transform_indices = @transform_2, window_bounds = array<i64: 1, 1, 1024>}]} {
    %c0 = arith.constant 0 : index
    %c0_0 = arith.constant 0 : index
    %0 = vector.load %arg2[%c0, %c0_0] : memref<3x1024xf32, #tpu.memory_space<vmem>>, vector<3x1024xf32>
    %1 = vector.extract_strided_slice %0 {offsets = [1, 0], sizes = [1, 1024], strides = [1, 1]} : vector<3x1024xf32> to vector<1x1024xf32>
    %cst = arith.constant -1.000000e+00 : f32
    %2 = vector.broadcast %cst : f32 to vector<1x1024xf32>
    %3 = arith.subf %1, %2 : vector<1x1024xf32>
    %cst_1 = arith.constant 2.000000e+00 : f32
    %4 = vector.broadcast %cst_1 : f32 to vector<1x1024xf32>
    %5 = arith.divf %3, %4 : vector<1x1024xf32>
    %cst_2 = arith.constant 1.500000e+01 : f32
    %6 = vector.broadcast %cst_2 : f32 to vector<1x1024xf32>
    %7 = arith.mulf %5, %6 : vector<1x1024xf32>
    %8 = math.floor %7 : vector<1x1024xf32>
    %9 = arith.subf %7, %8 : vector<1x1024xf32>
    %cst_3 = arith.constant 1.000000e+00 : f32
    %10 = vector.broadcast %cst_3 : f32 to vector<1x1024xf32>
    %11 = arith.subf %10, %9 : vector<1x1024xf32>
    %cst_4 = arith.constant 0.000000e+00 : f32
    %12 = vector.broadcast %cst_4 : f32 to vector<1x1024xf32>
    %13 = arith.cmpf oge, %8, %12 : vector<1x1024xf32>
    %cst_5 = arith.constant 1.500000e+01 : f32
    %14 = vector.broadcast %cst_5 : f32 to vector<1x1024xf32>
    %15 = arith.cmpf ole, %8, %14 : vector<1x1024xf32>
    %16 = arith.andi %13, %15 : vector<1x1024xi1>
    %cst_6 = arith.constant -1.000000e+00 : f32
    %17 = vector.broadcast %cst_6 : f32 to vector<1x1024xf32>
    %18 = arith.cmpf oge, %8, %17 : vector<1x1024xf32>
    %cst_7 = arith.constant 1.400000e+01 : f32
    %19 = vector.broadcast %cst_7 : f32 to vector<1x1024xf32>
    %20 = arith.cmpf ole, %8, %19 : vector<1x1024xf32>
    %21 = arith.andi %18, %20 : vector<1x1024xi1>
    %cst_8 = arith.constant 0.000000e+00 : f32
    %22 = vector.broadcast %cst_8 : f32 to vector<1x1024xf32>
    %23 = arith.select %16, %11, %22 : vector<1x1024xi1>, vector<1x1024xf32>
    %cst_9 = arith.constant 0.000000e+00 : f32
    %24 = vector.broadcast %cst_9 : f32 to vector<1x1024xf32>
    %25 = arith.select %21, %9, %24 : vector<1x1024xi1>, vector<1x1024xf32>
    %26 = arith.fptosi %8 : vector<1x1024xf32> to vector<1x1024xi32>
    %27 = vector.extract_strided_slice %0 {offsets = [2, 0], sizes = [1, 1024], strides = [1, 1]} : vector<3x1024xf32> to vector<1x1024xf32>
    %cst_10 = arith.constant -1.000000e+00 : f32
    %28 = vector.broadcast %cst_10 : f32 to vector<1x1024xf32>
    %29 = arith.subf %27, %28 : vector<1x1024xf32>
    %cst_11 = arith.constant 2.000000e+00 : f32
    %30 = vector.broadcast %cst_11 : f32 to vector<1x1024xf32>
    %31 = arith.divf %29, %30 : vector<1x1024xf32>
    %cst_12 = arith.constant 1.500000e+01 : f32
    %32 = vector.broadcast %cst_12 : f32 to vector<1x1024xf32>
    %33 = arith.mulf %31, %32 : vector<1x1024xf32>
    %34 = math.floor %33 : vector<1x1024xf32>
    %35 = arith.subf %33, %34 : vector<1x1024xf32>
    %cst_13 = arith.constant 1.000000e+00 : f32
    %36 = vector.broadcast %cst_13 : f32 to vector<1x1024xf32>
    %37 = arith.subf %36, %35 : vector<1x1024xf32>
    %cst_14 = arith.constant 0.000000e+00 : f32
    %38 = vector.broadcast %cst_14 : f32 to vector<1x1024xf32>
    %39 = arith.cmpf oge, %34, %38 : vector<1x1024xf32>
    %cst_15 = arith.constant 1.500000e+01 : f32
    %40 = vector.broadcast %cst_15 : f32 to vector<1x1024xf32>
    %41 = arith.cmpf ole, %34, %40 : vector<1x1024xf32>
    %42 = arith.andi %39, %41 : vector<1x1024xi1>
    %cst_16 = arith.constant -1.000000e+00 : f32
    %43 = vector.broadcast %cst_16 : f32 to vector<1x1024xf32>
    %44 = arith.cmpf oge, %34, %43 : vector<1x1024xf32>
    %cst_17 = arith.constant 1.400000e+01 : f32
    %45 = vector.broadcast %cst_17 : f32 to vector<1x1024xf32>
    %46 = arith.cmpf ole, %34, %45 : vector<1x1024xf32>
    %47 = arith.andi %44, %46 : vector<1x1024xi1>
    %cst_18 = arith.constant 0.000000e+00 : f32
    %48 = vector.broadcast %cst_18 : f32 to vector<1x1024xf32>
    %49 = arith.select %42, %37, %48 : vector<1x1024xi1>, vector<1x1024xf32>
    %cst_19 = arith.constant 0.000000e+00 : f32
    %50 = vector.broadcast %cst_19 : f32 to vector<1x1024xf32>
    %51 = arith.select %47, %35, %50 : vector<1x1024xi1>, vector<1x1024xf32>
    %52 = arith.fptosi %34 : vector<1x1024xf32> to vector<1x1024xi32>
    %53 = vector.extract_strided_slice %0 {offsets = [0, 0], sizes = [1, 1024], strides = [1, 1]} : vector<3x1024xf32> to vector<1x1024xf32>
    %cst_20 = arith.constant -1.000000e+00 : f32
    %54 = vector.broadcast %cst_20 : f32 to vector<1x1024xf32>
    %55 = arith.subf %53, %54 : vector<1x1024xf32>
    %cst_21 = arith.constant 2.000000e+00 : f32
    %56 = vector.broadcast %cst_21 : f32 to vector<1x1024xf32>
    %57 = arith.divf %55, %56 : vector<1x1024xf32>
    %cst_22 = arith.constant 1.500000e+01 : f32
    %58 = vector.broadcast %cst_22 : f32 to vector<1x1024xf32>
    %59 = arith.mulf %57, %58 : vector<1x1024xf32>
    %60 = math.floor %59 : vector<1x1024xf32>
    %61 = arith.subf %59, %60 : vector<1x1024xf32>
    %cst_23 = arith.constant 1.000000e+00 : f32
    %62 = vector.broadcast %cst_23 : f32 to vector<1x1024xf32>
    %63 = arith.subf %62, %61 : vector<1x1024xf32>
    %cst_24 = arith.constant 0.000000e+00 : f32
    %64 = vector.broadcast %cst_24 : f32 to vector<1x1024xf32>
    %65 = arith.cmpf oge, %60, %64 : vector<1x1024xf32>
    %cst_25 = arith.constant 1.500000e+01 : f32
    %66 = vector.broadcast %cst_25 : f32 to vector<1x1024xf32>
    %67 = arith.cmpf ole, %60, %66 : vector<1x1024xf32>
    %68 = arith.andi %65, %67 : vector<1x1024xi1>
    %cst_26 = arith.constant -1.000000e+00 : f32
    %69 = vector.broadcast %cst_26 : f32 to vector<1x1024xf32>
    %70 = arith.cmpf oge, %60, %69 : vector<1x1024xf32>
    %cst_27 = arith.constant 1.400000e+01 : f32
    %71 = vector.broadcast %cst_27 : f32 to vector<1x1024xf32>
    %72 = arith.cmpf ole, %60, %71 : vector<1x1024xf32>
    %73 = arith.andi %70, %72 : vector<1x1024xi1>
    %cst_28 = arith.constant 0.000000e+00 : f32
    %74 = vector.broadcast %cst_28 : f32 to vector<1x1024xf32>
    %75 = arith.select %68, %63, %74 : vector<1x1024xi1>, vector<1x1024xf32>
    %cst_29 = arith.constant 0.000000e+00 : f32
    %76 = vector.broadcast %cst_29 : f32 to vector<1x1024xf32>
    %77 = arith.select %73, %61, %76 : vector<1x1024xi1>, vector<1x1024xf32>
    %78 = arith.fptosi %60 : vector<1x1024xf32> to vector<1x1024xi32>
    %79 = tpu.iota {dimensions = array<i32: 0>} : vector<16x1024xi32>
    %80 = vector.broadcast %78 : vector<1x1024xi32> to vector<16x1024xi32>
    %81 = arith.cmpi eq, %79, %80 : vector<16x1024xi32>
    %cst_30 = arith.constant 0.000000e+00 : f32
    %82 = vector.shape_cast %75 : vector<1x1024xf32> to vector<1x1024xf32>
    %83 = vector.broadcast %82 : vector<1x1024xf32> to vector<16x1024xf32>
    %84 = vector.broadcast %cst_30 : f32 to vector<16x1024xf32>
    %85 = arith.select %81, %83, %84 : vector<16x1024xi1>, vector<16x1024xf32>
    %c1_i32 = arith.constant 1 : i32
    %86 = vector.broadcast %c1_i32 : i32 to vector<1x1024xi32>
    %87 = arith.addi %78, %86 : vector<1x1024xi32>
    %88 = vector.broadcast %87 : vector<1x1024xi32> to vector<16x1024xi32>
    %89 = arith.cmpi eq, %79, %88 : vector<16x1024xi32>
    %cst_31 = arith.constant 0.000000e+00 : f32
    %90 = vector.shape_cast %77 : vector<1x1024xf32> to vector<1x1024xf32>
    %91 = vector.broadcast %90 : vector<1x1024xf32> to vector<16x1024xf32>
    %92 = vector.broadcast %cst_31 : f32 to vector<16x1024xf32>
    %93 = arith.select %89, %91, %92 : vector<16x1024xi1>, vector<16x1024xf32>
    %94 = arith.addf %85, %93 : vector<16x1024xf32>
    %c0_32 = arith.constant 0 : index
    %c0_33 = arith.constant 0 : index
    %95 = vector.load %arg3[%c0_32, %c0_33] : memref<256x16xf32, #tpu.memory_space<vmem>>, vector<256x16xf32>
    %cst_34 = arith.constant dense<0.000000e+00> : vector<256x1024xf32>
    %96 = tpu.matmul %95, %94, %cst_34 {dimension_numbers = #tpu.dot_dimension_numbers<[1], [0], [0], [1], [0, 0, 1, 1], [], []>} : vector<256x16xf32>, vector<16x1024xf32>, vector<256x1024xf32> -> vector<256x1024xf32>
    %97 = tpu.iota {dimensions = array<i32: 0>} : vector<256x1xi32>
    %c256_i32 = arith.constant 256 : i32
    %98 = arith.muli %arg1, %c256_i32 : i32
    %99 = vector.broadcast %98 : i32 to vector<256x1xi32>
    %100 = arith.addi %97, %99 : vector<256x1xi32>
    %c16_i32 = arith.constant 16 : i32
    %101 = vector.broadcast %c16_i32 : i32 to vector<1x1024xi32>
    %102 = arith.muli %26, %101 : vector<1x1024xi32>
    %103 = arith.addi %102, %52 : vector<1x1024xi32>
    %104 = arith.mulf %23, %49 : vector<1x1024xf32>
    %105 = arith.mulf %23, %51 : vector<1x1024xf32>
    %106 = arith.mulf %25, %49 : vector<1x1024xf32>
    %107 = arith.mulf %25, %51 : vector<1x1024xf32>
    %108 = vector.broadcast %100 : vector<256x1xi32> to vector<256x1024xi32>
    %109 = vector.broadcast %103 : vector<1x1024xi32> to vector<256x1024xi32>
    %110 = arith.cmpi eq, %108, %109 : vector<256x1024xi32>
    %cst_35 = arith.constant 0.000000e+00 : f32
    %111 = vector.shape_cast %104 : vector<1x1024xf32> to vector<1x1024xf32>
    %112 = vector.broadcast %111 : vector<1x1024xf32> to vector<256x1024xf32>
    %113 = vector.broadcast %cst_35 : f32 to vector<256x1024xf32>
    %114 = arith.select %110, %112, %113 : vector<256x1024xi1>, vector<256x1024xf32>
    %c1_i32_36 = arith.constant 1 : i32
    %115 = vector.broadcast %c1_i32_36 : i32 to vector<1x1024xi32>
    %116 = arith.addi %103, %115 : vector<1x1024xi32>
    %117 = vector.broadcast %100 : vector<256x1xi32> to vector<256x1024xi32>
    %118 = vector.broadcast %116 : vector<1x1024xi32> to vector<256x1024xi32>
    %119 = arith.cmpi eq, %117, %118 : vector<256x1024xi32>
    %cst_37 = arith.constant 0.000000e+00 : f32
    %120 = vector.shape_cast %105 : vector<1x1024xf32> to vector<1x1024xf32>
    %121 = vector.broadcast %120 : vector<1x1024xf32> to vector<256x1024xf32>
    %122 = vector.broadcast %cst_37 : f32 to vector<256x1024xf32>
    %123 = arith.select %119, %121, %122 : vector<256x1024xi1>, vector<256x1024xf32>
    %124 = arith.addf %114, %123 : vector<256x1024xf32>
    %c16_i32_38 = arith.constant 16 : i32
    %125 = vector.broadcast %c16_i32_38 : i32 to vector<1x1024xi32>
    %126 = arith.addi %103, %125 : vector<1x1024xi32>
    %127 = vector.broadcast %100 : vector<256x1xi32> to vector<256x1024xi32>
    %128 = vector.broadcast %126 : vector<1x1024xi32> to vector<256x1024xi32>
    %129 = arith.cmpi eq, %127, %128 : vector<256x1024xi32>
    %cst_39 = arith.constant 0.000000e+00 : f32
    %130 = vector.shape_cast %106 : vector<1x1024xf32> to vector<1x1024xf32>
    %131 = vector.broadcast %130 : vector<1x1024xf32> to vector<256x1024xf32>
    %132 = vector.broadcast %cst_39 : f32 to vector<256x1024xf32>
    %133 = arith.select %129, %131, %132 : vector<256x1024xi1>, vector<256x1024xf32>
    %134 = arith.addf %124, %133 : vector<256x1024xf32>
    %c16_i32_40 = arith.constant 16 : i32
    %135 = vector.broadcast %c16_i32_40 : i32 to vector<1x1024xi32>
    %136 = arith.addi %103, %135 : vector<1x1024xi32>
    %c1_i32_41 = arith.constant 1 : i32
    %137 = vector.broadcast %c1_i32_41 : i32 to vector<1x1024xi32>
    %138 = arith.addi %136, %137 : vector<1x1024xi32>
    %139 = vector.broadcast %100 : vector<256x1xi32> to vector<256x1024xi32>
    %140 = vector.broadcast %138 : vector<1x1024xi32> to vector<256x1024xi32>
    %141 = arith.cmpi eq, %139, %140 : vector<256x1024xi32>
    %cst_42 = arith.constant 0.000000e+00 : f32
    %142 = vector.shape_cast %107 : vector<1x1024xf32> to vector<1x1024xf32>
    %143 = vector.broadcast %142 : vector<1x1024xf32> to vector<256x1024xf32>
    %144 = vector.broadcast %cst_42 : f32 to vector<256x1024xf32>
    %145 = arith.select %141, %143, %144 : vector<256x1024xi1>, vector<256x1024xf32>
    %146 = arith.addf %134, %145 : vector<256x1024xf32>
    %147 = arith.mulf %96, %146 : vector<256x1024xf32>
    %cst_43 = arith.constant dense<0.000000e+00> : vector<1024xf32>
    %148 = vector.multi_reduction <add>, %147, %cst_43 [0] : vector<256x1024xf32> to vector<1024xf32>
    %149 = vector.shape_cast %148 : vector<1024xf32> to vector<1x1024xf32>
    %c0_i32 = arith.constant 0 : i32
    %150 = arith.cmpi eq, %arg1, %c0_i32 : i32
    %151 = arith.extui %150 : i1 to i32
    %c0_i32_44 = arith.constant 0 : i32
    %152 = arith.cmpi ne, %151, %c0_i32_44 : i32
    scf.if %152 {
      %cst_51 = arith.constant 0.000000e+00 : f32
      %159 = vector.broadcast %cst_51 : f32 to vector<1x1024xf32>
      %c0_52 = arith.constant 0 : index
      %c0_53 = arith.constant 0 : index
      %160 = vector.load %arg5[%c0_52, %c0_53] : memref<1x1024xf32, #tpu.memory_space<vmem>>, vector<1x1024xf32>
      tpu.vector_store %arg5[%c0_52, %c0_53], %159 {strides = array<i32>} : memref<1x1024xf32, #tpu.memory_space<vmem>>, vector<1x1024xf32>,
    } else {
    }
    %c0_45 = arith.constant 0 : index
    %c0_46 = arith.constant 0 : index
    %153 = vector.load %arg5[%c0_45, %c0_46] : memref<1x1024xf32, #tpu.memory_space<vmem>>, vector<1x1024xf32>
    %154 = arith.addf %153, %149 : vector<1x1024xf32>
    %c0_47 = arith.constant 0 : index
    %c0_48 = arith.constant 0 : index
    %155 = vector.load %arg5[%c0_47, %c0_48] : memref<1x1024xf32, #tpu.memory_space<vmem>>, vector<1x1024xf32>
    tpu.vector_store %arg5[%c0_47, %c0_48], %154 {strides = array<i32>} : memref<1x1024xf32, #tpu.memory_space<vmem>>, vector<1x1024xf32>,
    %c0_i32_49 = arith.constant 0 : i32
    %156 = arith.cmpi eq, %arg1, %c0_i32_49 : i32
    %157 = arith.extui %156 : i1 to i32
    %c0_i32_50 = arith.constant 0 : i32
    %158 = arith.cmpi ne, %157, %c0_i32_50 : i32
    scf.if %158 {
      %c0_51 = arith.constant 0 : index
      %c0_52 = arith.constant 0 : index
      %159 = vector.load %arg5[%c0_51, %c0_52] : memref<1x1024xf32, #tpu.memory_space<vmem>>, vector<1x1024xf32>
      %cst_53 = arith.constant -2.000000e+00 : f32
      %160 = vector.broadcast %cst_53 : f32 to vector<1x1024xf32>
      %161 = arith.addf %159, %160 : vector<1x1024xf32>
      %cst_54 = arith.constant 2.000000e+01 : f32
      %162 = vector.broadcast %cst_54 : f32 to vector<1x1024xf32>
      %163 = arith.cmpf ogt, %161, %162 : vector<1x1024xf32>
      %cst_55 = arith.constant 2.000000e+01 : f32
      %164 = vector.broadcast %cst_55 : f32 to vector<1x1024xf32>
      %165 = arith.minimumf %161, %164 : vector<1x1024xf32>
      %166 = math.exp %165 : vector<1x1024xf32>
      %167 = math.log1p %166 : vector<1x1024xf32>
      %168 = arith.select %163, %161, %167 : vector<1x1024xi1>, vector<1x1024xf32>
      %cst_56 = arith.constant 0.000000e+00 : f32
      %169 = vector.broadcast %cst_56 : f32 to vector<1x1024xf32>
      %170 = arith.subf %169, %168 : vector<1x1024xf32>
      %cst_57 = arith.constant 1.000000e+00 : f32
      %171 = vector.broadcast %cst_57 : f32 to vector<1x1024xf32>
      %172 = arith.mulf %170, %171 : vector<1x1024xf32>
      %173 = math.exp %172 : vector<1x1024xf32>
      %cst_58 = arith.constant 1.000000e+00 : f32
      %174 = vector.broadcast %cst_58 : f32 to vector<1x1024xf32>
      %175 = arith.subf %174, %173 : vector<1x1024xf32>
      %176 = vector.shape_cast %175 : vector<1x1024xf32> to vector<1x1x1024xf32>
      %c0_59 = arith.constant 0 : index
      %c0_60 = arith.constant 0 : index
      %c0_61 = arith.constant 0 : index
      %177 = vector.load %arg4[%c0_59, %c0_60, %c0_61] : memref<1x1x1024xf32, #tpu.memory_space<vmem>>, vector<1x1x1024xf32>
      tpu.vector_store %arg4[%c0_59, %c0_60, %c0_61], %176 {strides = array<i32>} : memref<1x1x1024xf32, #tpu.memory_space<vmem>>, vector<1x1x1024xf32>,
    } else {
    }
    return
  }
  func.func @transform_0(%arg0: i32, %arg1: i32) -> (i32, i32) {
    %c0_i32 = arith.constant 0 : i32
    %c0_i32_0 = arith.constant 0 : i32
    return %c0_i32, %arg0 : i32, i32
  }
  func.func @transform_1(%arg0: i32, %arg1: i32) -> (i32, i32) {
    %c0_i32 = arith.constant 0 : i32
    %c0_i32_0 = arith.constant 0 : i32
    return %arg1, %c0_i32 : i32, i32
  }
  func.func @transform_2(%arg0: i32, %arg1: i32) -> (i32, i32, i32) {
    %c0_i32 = arith.constant 0 : i32
    %c0_i32_0 = arith.constant 0 : i32
    %c0_i32_1 = arith.constant 0 : i32
    return %arg0, %c0_i32, %c0_i32_0 : i32, i32, i32
  }
}

</mosaic_0001>

<llo_original>
// kernel: tpu_custom_call.1
$region0: #{tpu_custom_call.1}
  #allocation0 [shape = 'u32[]', space=smem, size = 0x4, offset = 0x4, fixed_abs, tag = 'smem constant byte address 0x4 - core index']
  #allocation1 [shape = 'u32[144,128]{1,0:T(1,128)}', space=vmem, size = 0x12000, scoped, tag = 'internal scratch']
  #allocation2 [shape = 'f32[1,1024]{1,0:T(1,128)}', space=vmem, size = 0x1000, scoped, tag = 'scratch operand']
  %s0 = inlined_call_operand.vmem [shape: f32[3,1024], index: 0, kind: input, shape index: {}]
  %s1 = inlined_call_operand.vmem [shape: f32[256,16], index: 1, kind: input, shape index: {}]
  %s2 = inlined_call_operand.hbm [shape: f32[1,1,1024], index: 2, kind: output, shape index: {}]
  %s3 = sld [smem:[#allocation0]]
  $region26: #{tpu_custom_call.1} parent=0
    _
  %s5 = ssub.s32 1, %s3
  %s6 = scalar_select 0, %s5, %s3
  $region1: #{tpu_custom_call.1} parent=0
    #allocation3 [shape = 'u8[4096]{0}', space=vmem, size = 0x1000, scoped, tag = 'output window, operand 0, single buffered']
    #allocation4 [shape = 's32[1]{0}', space=sflag, size = 0x4, scoped, tag = 'scoped memory for tpu_custom_call.1']
    %7 = vsyncpa [#allocation4], 0
    // Predicated region
    $region2: #{tpu_custom_call.1} parent=1 // pred_check
      _
    $region3: #{tpu_custom_call.1} parent=1 // pred_check_branch
      %9 = sbr.rel (0) target = $region5
    $region4: #{tpu_custom_call.1} parent=1 // pred_region
      _
    $region5: #{tpu_custom_call.1} parent=1 // pred_fallthru
      _
    // Predicated region
    $region6: #{tpu_custom_call.1} parent=1 // pred_check
      _
    $region7: #{tpu_custom_call.1} parent=1 // pred_check_branch
      %11 = sbr.rel (0) target = $region9
    $region8: #{tpu_custom_call.1} parent=1 // pred_region
      _
    $region9: #{tpu_custom_call.1} parent=1 // pred_fallthru
      _
    %v12 = vld [vmem:[%s0] sm:$0x77]
    %v13 = vld [vmem:[%s0 + $0x8] sm:$0x77]
    %v14 = vld [vmem:[%s0 + $0x10] sm:$0x77]
    %v15 = vld [vmem:[%s0 + $0x18] sm:$0x77]
    %v16 = vsub.f32 %v12, -1.0
    %v17 = vsub.f32 %v13, -1.0
    %v18 = vsub.f32 %v14, -1.0
    %v19 = vsub.f32 %v15, -1.0
    %v20 = vrcp.pop 2.0
    %v21 = vmul.f32 %v16, %v20
    %v22 = vmul.f32 %v17, %v20
    %v23 = vmul.f32 %v18, %v20
    %v24 = vmul.f32 %v19, %v20
    %v25 = vmul.f32 %v21, 15.0
    %v26 = vmul.f32 %v22, 15.0
    %v27 = vmul.f32 %v23, 15.0
    %v28 = vmul.f32 %v24, 15.0
    %v29 = vfloor.f32 %v25
    %v30 = vfloor.f32 %v26
    %v31 = vfloor.f32 %v27
    %v32 = vfloor.f32 %v28
    %v33 = vsub.f32 %v25, %v29
    %v34 = vsub.f32 %v26, %v30
    %v35 = vsub.f32 %v27, %v31
    %v36 = vsub.f32 %v28, %v32
    %v37 = vsub.f32 1.0, %v33
    %v38 = vsub.f32 1.0, %v34
    %v39 = vsub.f32 1.0, %v35
    %v40 = vsub.f32 1.0, %v36
    %vm41 = vcmp.ge.f32.partialorder %v29, 0.0
    %vm42 = vcmp.ge.f32.partialorder %v30, 0.0
    %vm43 = vcmp.ge.f32.partialorder %v31, 0.0
    %vm44 = vcmp.ge.f32.partialorder %v32, 0.0
    %vm45 = vcmp.le.f32.partialorder %v29, 15.0
    %vm46 = vcmp.le.f32.partialorder %v30, 15.0
    %vm47 = vcmp.le.f32.partialorder %v31, 15.0
    %vm48 = vcmp.le.f32.partialorder %v32, 15.0
    %vm49 = vmand %vm41, %vm45
    %vm50 = vmand %vm42, %vm46
    %vm51 = vmand %vm43, %vm47
    %vm52 = vmand %vm44, %vm48
    %vm53 = vcmp.ge.f32.partialorder %v29, -1.0
    %vm54 = vcmp.ge.f32.partialorder %v30, -1.0
    %vm55 = vcmp.ge.f32.partialorder %v31, -1.0
    %vm56 = vcmp.ge.f32.partialorder %v32, -1.0
    %vm57 = vcmp.le.f32.partialorder %v29, 14.0
    %vm58 = vcmp.le.f32.partialorder %v30, 14.0
    %vm59 = vcmp.le.f32.partialorder %v31, 14.0
    %vm60 = vcmp.le.f32.partialorder %v32, 14.0
    %vm61 = vmand %vm53, %vm57
    %vm62 = vmand %vm54, %vm58
    %vm63 = vmand %vm55, %vm59
    %vm64 = vmand %vm56, %vm60
    %v65 = vsel %vm49, %v37, 0.0
    %v66 = vsel %vm50, %v38, 0.0
    %v67 = vsel %vm51, %v39, 0.0
    %v68 = vsel %vm52, %v40, 0.0
    %v69 = vsel %vm61, %v33, 0.0
    %v70 = vsel %vm62, %v34, 0.0
    %v71 = vsel %vm63, %v35, 0.0
    %v72 = vsel %vm64, %v36, 0.0
    %v73 = vcvt.f32.s32.to.zero.pseudo %v29
    %v74 = vcvt.f32.s32.to.zero.pseudo %v30
    %v75 = vcvt.f32.s32.to.zero.pseudo %v31
    %v76 = vcvt.f32.s32.to.zero.pseudo %v32
    %v77 = vlaneseq
    %v78 = vshrl.u32 %v77, 7
    %v79 = vadd.s32 %v78, 8
    %v80 = vlaneseq
    %v81 = vshrl.u32 %v80, 7
    %v82 = vsub.s32 0, %v81
    %v83 = vrot.slane %v73, %v82
    %v84 = vlaneseq
    %v85 = vshrl.u32 %v84, 7
    %v86 = vsub.s32 4, %v85
    %v87 = vrot.slane %v73, %v86
    %v88 = vlaneseq
    %v89 = vshrl.u32 %v88, 7
    %v90 = vsub.s32 0, %v89
    %v91 = vrot.slane %v74, %v90
    %v92 = vlaneseq
    %v93 = vshrl.u32 %v92, 7
    %v94 = vsub.s32 4, %v93
    %v95 = vrot.slane %v74, %v94
    %v96 = vlaneseq
    %v97 = vshrl.u32 %v96, 7
    %v98 = vsub.s32 0, %v97
    %v99 = vrot.slane %v75, %v98
    %v100 = vlaneseq
    %v101 = vshrl.u32 %v100, 7
    %v102 = vsub.s32 4, %v101
    %v103 = vrot.slane %v75, %v102
    %v104 = vlaneseq
    %v105 = vshrl.u32 %v104, 7
    %v106 = vsub.s32 0, %v105
    %v107 = vrot.slane %v76, %v106
    %v108 = vlaneseq
    %v109 = vshrl.u32 %v108, 7
    %v110 = vsub.s32 4, %v109
    %v111 = vrot.slane %v76, %v110
    %v112 = vlaneseq
    %v113 = vshrl.u32 %v112, 7
    %v114 = vsub.s32 0, %v113
    %v115 = vrot.slane %v83, %v114
    %v116 = vlaneseq
    %v117 = vshrl.u32 %v116, 7
    %v118 = vsub.s32 0, %v117
    %v119 = vrot.slane %v87, %v118
    %v120 = vlaneseq
    %v121 = vshrl.u32 %v120, 7
    %v122 = vsub.s32 0, %v121
    %v123 = vrot.slane %v91, %v122
    %v124 = vlaneseq
    %v125 = vshrl.u32 %v124, 7
    %v126 = vsub.s32 0, %v125
    %v127 = vrot.slane %v95, %v126
    %v128 = vlaneseq
    %v129 = vshrl.u32 %v128, 7
    %v130 = vsub.s32 0, %v129
    %v131 = vrot.slane %v99, %v130
    %v132 = vlaneseq
    %v133 = vshrl.u32 %v132, 7
    %v134 = vsub.s32 0, %v133
    %v135 = vrot.slane %v103, %v134
    %v136 = vlaneseq
    %v137 = vshrl.u32 %v136, 7
    %v138 = vsub.s32 0, %v137
    %v139 = vrot.slane %v107, %v138
    %v140 = vlaneseq
    %v141 = vshrl.u32 %v140, 7
    %v142 = vsub.s32 0, %v141
    %v143 = vrot.slane %v111, %v142
    %vm144 = vcmp.eq.s32.totalorder %v78, %v115
    %vm145 = vcmp.eq.s32.totalorder %v78, %v119
    %vm146 = vcmp.eq.s32.totalorder %v78, %v123
    %vm147 = vcmp.eq.s32.totalorder %v78, %v127
    %vm148 = vcmp.eq.s32.totalorder %v78, %v131
    %vm149 = vcmp.eq.s32.totalorder %v78, %v135
    %vm150 = vcmp.eq.s32.totalorder %v78, %v139
    %vm151 = vcmp.eq.s32.totalorder %v78, %v143
    %vm152 = vcmp.eq.s32.totalorder %v79, %v115
    %vm153 = vcmp.eq.s32.totalorder %v79, %v119
    %vm154 = vcmp.eq.s32.totalorder %v79, %v123
    %vm155 = vcmp.eq.s32.totalorder %v79, %v127
    %vm156 = vcmp.eq.s32.totalorder %v79, %v131
    %vm157 = vcmp.eq.s32.totalorder %v79, %v135
    %vm158 = vcmp.eq.s32.totalorder %v79, %v139
    %vm159 = vcmp.eq.s32.totalorder %v79, %v143
    %v164 = vlaneseq
    %v165 = vshrl.u32 %v164, 7
    %v166 = vsub.s32 0, %v165
    %v167 = vrot.slane %v65, %v166
    %v168 = vlaneseq
    %v169 = vshrl.u32 %v168, 7
    %v170 = vsub.s32 4, %v169
    %v171 = vrot.slane %v65, %v170
    %v172 = vlaneseq
    %v173 = vshrl.u32 %v172, 7
    %v174 = vsub.s32 0, %v173
    %v175 = vrot.slane %v66, %v174
    %v176 = vlaneseq
    %v177 = vshrl.u32 %v176, 7
    %v178 = vsub.s32 4, %v177
    %v179 = vrot.slane %v66, %v178
    %v180 = vlaneseq
    %v181 = vshrl.u32 %v180, 7
    %v182 = vsub.s32 0, %v181
    %v183 = vrot.slane %v67, %v182
    %v184 = vlaneseq
    %v185 = vshrl.u32 %v184, 7
    %v186 = vsub.s32 4, %v185
    %v187 = vrot.slane %v67, %v186
    %v188 = vlaneseq
    %v189 = vshrl.u32 %v188, 7
    %v190 = vsub.s32 0, %v189
    %v191 = vrot.slane %v68, %v190
    %v192 = vlaneseq
    %v193 = vshrl.u32 %v192, 7
    %v194 = vsub.s32 4, %v193
    %v195 = vrot.slane %v68, %v194
    %v204 = vlaneseq
    %v205 = vshrl.u32 %v204, 7
    %v206 = vsub.s32 0, %v205
    %v207 = vrot.slane %v167, %v206
    %v208 = vlaneseq
    %v209 = vshrl.u32 %v208, 7
    %v210 = vsub.s32 0, %v209
    %v211 = vrot.slane %v171, %v210
    %v212 = vlaneseq
    %v213 = vshrl.u32 %v212, 7
    %v214 = vsub.s32 0, %v213
    %v215 = vrot.slane %v175, %v214
    %v216 = vlaneseq
    %v217 = vshrl.u32 %v216, 7
    %v218 = vsub.s32 0, %v217
    %v219 = vrot.slane %v179, %v218
    %v220 = vlaneseq
    %v221 = vshrl.u32 %v220, 7
    %v222 = vsub.s32 0, %v221
    %v223 = vrot.slane %v183, %v222
    %v224 = vlaneseq
    %v225 = vshrl.u32 %v224, 7
    %v226 = vsub.s32 0, %v225
    %v227 = vrot.slane %v187, %v226
    %v228 = vlaneseq
    %v229 = vshrl.u32 %v228, 7
    %v230 = vsub.s32 0, %v229
    %v231 = vrot.slane %v191, %v230
    %v232 = vlaneseq
    %v233 = vshrl.u32 %v232, 7
    %v234 = vsub.s32 0, %v233
    %v235 = vrot.slane %v195, %v234
    %v236 = vsel %vm144, %v207, 0.0
    %v237 = vsel %vm145, %v211, 0.0
    %v238 = vsel %vm146, %v215, 0.0
    %v239 = vsel %vm147, %v219, 0.0
    %v240 = vsel %vm148, %v223, 0.0
    %v241 = vsel %vm149, %v227, 0.0
    %v242 = vsel %vm150, %v231, 0.0
    %v243 = vsel %vm151, %v235, 0.0
    %v244 = vsel %vm152, %v207, 0.0
    %v245 = vsel %vm153, %v211, 0.0
    %v246 = vsel %vm154, %v215, 0.0
    %v247 = vsel %vm155, %v219, 0.0
    %v248 = vsel %vm156, %v223, 0.0
    %v249 = vsel %vm157, %v227, 0.0
    %v250 = vsel %vm158, %v231, 0.0
    %v251 = vsel %vm159, %v235, 0.0
    %v252 = vadd.s32 %v73, 1
    %v253 = vadd.s32 %v74, 1
    %v254 = vadd.s32 %v75, 1
    %v255 = vadd.s32 %v76, 1
    %v256 = vlaneseq
    %v257 = vshrl.u32 %v256, 7
    %v258 = vsub.s32 0, %v257
    %v259 = vrot.slane %v252, %v258
    %v260 = vlaneseq
    %v261 = vshrl.u32 %v260, 7
    %v262 = vsub.s32 4, %v261
    %v263 = vrot.slane %v252, %v262
    %v264 = vlaneseq
    %v265 = vshrl.u32 %v264, 7
    %v266 = vsub.s32 0, %v265
    %v267 = vrot.slane %v253, %v266
    %v268 = vlaneseq
    %v269 = vshrl.u32 %v268, 7
    %v270 = vsub.s32 4, %v269
    %v271 = vrot.slane %v253, %v270
    %v272 = vlaneseq
    %v273 = vshrl.u32 %v272, 7
    %v274 = vsub.s32 0, %v273
    %v275 = vrot.slane %v254, %v274
    %v276 = vlaneseq
    %v277 = vshrl.u32 %v276, 7
    %v278 = vsub.s32 4, %v277
    %v279 = vrot.slane %v254, %v278
    %v280 = vlaneseq
    %v281 = vshrl.u32 %v280, 7
    %v282 = vsub.s32 0, %v281
    %v283 = vrot.slane %v255, %v282
    %v284 = vlaneseq
    %v285 = vshrl.u32 %v284, 7
    %v286 = vsub.s32 4, %v285
    %v287 = vrot.slane %v255, %v286
    %v288 = vlaneseq
    %v289 = vshrl.u32 %v288, 7
    %v290 = vsub.s32 0, %v289
    %v291 = vrot.slane %v259, %v290
    %v292 = vlaneseq
    %v293 = vshrl.u32 %v292, 7
    %v294 = vsub.s32 0, %v293
    %v295 = vrot.slane %v263, %v294
    %v296 = vlaneseq
    %v297 = vshrl.u32 %v296, 7
    %v298 = vsub.s32 0, %v297
    %v299 = vrot.slane %v267, %v298
    %v300 = vlaneseq
    %v301 = vshrl.u32 %v300, 7
    %v302 = vsub.s32 0, %v301
    %v303 = vrot.slane %v271, %v302
    %v304 = vlaneseq
    %v305 = vshrl.u32 %v304, 7
    %v306 = vsub.s32 0, %v305
    %v307 = vrot.slane %v275, %v306
    %v308 = vlaneseq
    %v309 = vshrl.u32 %v308, 7
    %v310 = vsub.s32 0, %v309
    %v311 = vrot.slane %v279, %v310
    %v312 = vlaneseq
    %v313 = vshrl.u32 %v312, 7
    %v314 = vsub.s32 0, %v313
    %v315 = vrot.slane %v283, %v314
    %v316 = vlaneseq
    %v317 = vshrl.u32 %v316, 7
    %v318 = vsub.s32 0, %v317
    %v319 = vrot.slane %v287, %v318
    %vm320 = vcmp.eq.s32.totalorder %v78, %v291
    %vm321 = vcmp.eq.s32.totalorder %v78, %v295
    %vm322 = vcmp.eq.s32.totalorder %v78, %v299
    %vm323 = vcmp.eq.s32.totalorder %v78, %v303
    %vm324 = vcmp.eq.s32.totalorder %v78, %v307
    %vm325 = vcmp.eq.s32.totalorder %v78, %v311
    %vm326 = vcmp.eq.s32.totalorder %v78, %v315
    %vm327 = vcmp.eq.s32.totalorder %v78, %v319
    %vm328 = vcmp.eq.s32.totalorder %v79, %v291
    %vm329 = vcmp.eq.s32.totalorder %v79, %v295
    %vm330 = vcmp.eq.s32.totalorder %v79, %v299
    %vm331 = vcmp.eq.s32.totalorder %v79, %v303
    %vm332 = vcmp.eq.s32.totalorder %v79, %v307
    %vm333 = vcmp.eq.s32.totalorder %v79, %v311
    %vm334 = vcmp.eq.s32.totalorder %v79, %v315
    %vm335 = vcmp.eq.s32.totalorder %v79, %v319
    %v340 = vlaneseq
    %v341 = vshrl.u32 %v340, 7
    %v342 = vsub.s32 0, %v341
    %v343 = vrot.slane %v69, %v342
    %v344 = vlaneseq
    %v345 = vshrl.u32 %v344, 7
    %v346 = vsub.s32 4, %v345
    %v347 = vrot.slane %v69, %v346
    %v348 = vlaneseq
    %v349 = vshrl.u32 %v348, 7
    %v350 = vsub.s32 0, %v349
    %v351 = vrot.slane %v70, %v350
    %v352 = vlaneseq
    %v353 = vshrl.u32 %v352, 7
    %v354 = vsub.s32 4, %v353
    %v355 = vrot.slane %v70, %v354
    %v356 = vlaneseq
    %v357 = vshrl.u32 %v356, 7
    %v358 = vsub.s32 0, %v357
    %v359 = vrot.slane %v71, %v358
    %v360 = vlaneseq
    %v361 = vshrl.u32 %v360, 7
    %v362 = vsub.s32 4, %v361
    %v363 = vrot.slane %v71, %v362
    %v364 = vlaneseq
    %v365 = vshrl.u32 %v364, 7
    %v366 = vsub.s32 0, %v365
    %v367 = vrot.slane %v72, %v366
    %v368 = vlaneseq
    %v369 = vshrl.u32 %v368, 7
    %v370 = vsub.s32 4, %v369
    %v371 = vrot.slane %v72, %v370
    %v380 = vlaneseq
    %v381 = vshrl.u32 %v380, 7
    %v382 = vsub.s32 0, %v381
    %v383 = vrot.slane %v343, %v382
    %v384 = vlaneseq
    %v385 = vshrl.u32 %v384, 7
    %v386 = vsub.s32 0, %v385
    %v387 = vrot.slane %v347, %v386
    %v388 = vlaneseq
    %v389 = vshrl.u32 %v388, 7
    %v390 = vsub.s32 0, %v389
    %v391 = vrot.slane %v351, %v390
    %v392 = vlaneseq
    %v393 = vshrl.u32 %v392, 7
    %v394 = vsub.s32 0, %v393
    %v395 = vrot.slane %v355, %v394
    %v396 = vlaneseq
    %v397 = vshrl.u32 %v396, 7
    %v398 = vsub.s32 0, %v397
    %v399 = vrot.slane %v359, %v398
    %v400 = vlaneseq
    %v401 = vshrl.u32 %v400, 7
    %v402 = vsub.s32 0, %v401
    %v403 = vrot.slane %v363, %v402
    %v404 = vlaneseq
    %v405 = vshrl.u32 %v404, 7
    %v406 = vsub.s32 0, %v405
    %v407 = vrot.slane %v367, %v406
    %v408 = vlaneseq
    %v409 = vshrl.u32 %v408, 7
    %v410 = vsub.s32 0, %v409
    %v411 = vrot.slane %v371, %v410
    %v412 = vsel %vm320, %v383, 0.0
    %v413 = vsel %vm321, %v387, 0.0
    %v414 = vsel %vm322, %v391, 0.0
    %v415 = vsel %vm323, %v395, 0.0
    %v416 = vsel %vm324, %v399, 0.0
    %v417 = vsel %vm325, %v403, 0.0
    %v418 = vsel %vm326, %v407, 0.0
    %v419 = vsel %vm327, %v411, 0.0
    %v420 = vsel %vm328, %v383, 0.0
    %v421 = vsel %vm329, %v387, 0.0
    %v422 = vsel %vm330, %v391, 0.0
    %v423 = vsel %vm331, %v395, 0.0
    %v424 = vsel %vm332, %v399, 0.0
    %v425 = vsel %vm333, %v403, 0.0
    %v426 = vsel %vm334, %v407, 0.0
    %v427 = vsel %vm335, %v411, 0.0
    %v428 = vadd.f32 %v236, %v412
    %v429 = vadd.f32 %v237, %v413
    %v430 = vadd.f32 %v238, %v414
    %v431 = vadd.f32 %v239, %v415
    %v432 = vadd.f32 %v240, %v416
    %v433 = vadd.f32 %v241, %v417
    %v434 = vadd.f32 %v242, %v418
    %v435 = vadd.f32 %v243, %v419
    %v436 = vadd.f32 %v244, %v420
    %v437 = vadd.f32 %v245, %v421
    %v438 = vadd.f32 %v246, %v422
    %v439 = vadd.f32 %v247, %v423
    %v440 = vadd.f32 %v248, %v424
    %v441 = vadd.f32 %v249, %v425
    %v442 = vadd.f32 %v250, %v426
    %v443 = vadd.f32 %v251, %v427
    %v444 = vld [vmem:[%s1] sm:$0xff]
    %v445 = vld [vmem:[%s1 + $0x8] sm:$0xff]
    %v446 = vld [vmem:[%s1 + $0x10] sm:$0xff]
    %v447 = vld [vmem:[%s1 + $0x18] sm:$0xff]
    %v448 = vld [vmem:[%s1 + $0x20] sm:$0xff]
    %v449 = vld [vmem:[%s1 + $0x28] sm:$0xff]
    %v450 = vld [vmem:[%s1 + $0x30] sm:$0xff]
    %v451 = vld [vmem:[%s1 + $0x38] sm:$0xff]
    %v452 = vld [vmem:[%s1 + $0x40] sm:$0xff]
    %v453 = vld [vmem:[%s1 + $0x48] sm:$0xff]
    %v454 = vld [vmem:[%s1 + $0x50] sm:$0xff]
    %v455 = vld [vmem:[%s1 + $0x58] sm:$0xff]
    %v456 = vld [vmem:[%s1 + $0x60] sm:$0xff]
    %v457 = vld [vmem:[%s1 + $0x68] sm:$0xff]
    %v458 = vld [vmem:[%s1 + $0x70] sm:$0xff]
    %v459 = vld [vmem:[%s1 + $0x78] sm:$0xff]
    %v460 = vld [vmem:[%s1 + $0x80] sm:$0xff]
    %v461 = vld [vmem:[%s1 + $0x88] sm:$0xff]
    %v462 = vld [vmem:[%s1 + $0x90] sm:$0xff]
    %v463 = vld [vmem:[%s1 + $0x98] sm:$0xff]
    %v464 = vld [vmem:[%s1 + $0xa0] sm:$0xff]
    %v465 = vld [vmem:[%s1 + $0xa8] sm:$0xff]
    %v466 = vld [vmem:[%s1 + $0xb0] sm:$0xff]
    %v467 = vld [vmem:[%s1 + $0xb8] sm:$0xff]
    %v468 = vld [vmem:[%s1 + $0xc0] sm:$0xff]
    %v469 = vld [vmem:[%s1 + $0xc8] sm:$0xff]
    %v470 = vld [vmem:[%s1 + $0xd0] sm:$0xff]
    %v471 = vld [vmem:[%s1 + $0xd8] sm:$0xff]
    %v472 = vld [vmem:[%s1 + $0xe0] sm:$0xff]
    %v473 = vld [vmem:[%s1 + $0xe8] sm:$0xff]
    %v474 = vld [vmem:[%s1 + $0xf0] sm:$0xff]
    %v475 = vld [vmem:[%s1 + $0xf8] sm:$0xff]
    %vm476 = vcmask 130048
    %v478 = vsel %vm476, %v444, 0
    %v481 = vsel %vm476, %v445, 0
    %v484 = vsel %vm476, %v446, 0
    %v487 = vsel %vm476, %v447, 0
    %v490 = vsel %vm476, %v448, 0
    %v493 = vsel %vm476, %v449, 0
    %v496 = vsel %vm476, %v450, 0
    %v499 = vsel %vm476, %v451, 0
    %v502 = vsel %vm476, %v452, 0
    %v505 = vsel %vm476, %v453, 0
    %v508 = vsel %vm476, %v454, 0
    %v511 = vsel %vm476, %v455, 0
    %v514 = vsel %vm476, %v456, 0
    %v517 = vsel %vm476, %v457, 0
    %v520 = vsel %vm476, %v458, 0
    %v523 = vsel %vm476, %v459, 0
    %v526 = vsel %vm476, %v460, 0
    %v529 = vsel %vm476, %v461, 0
    %v532 = vsel %vm476, %v462, 0
    %v535 = vsel %vm476, %v463, 0
    %v538 = vsel %vm476, %v464, 0
    %v541 = vsel %vm476, %v465, 0
    %v544 = vsel %vm476, %v466, 0
    %v547 = vsel %vm476, %v467, 0
    %v550 = vsel %vm476, %v468, 0
    %v553 = vsel %vm476, %v469, 0
    %v556 = vsel %vm476, %v470, 0
    %v559 = vsel %vm476, %v471, 0
    %v562 = vsel %vm476, %v472, 0
    %v565 = vsel %vm476, %v473, 0
    %v568 = vsel %vm476, %v474, 0
    %v571 = vsel %vm476, %v475, 0
    %573 = vmatprep.subr.mxu0 0.0
    %574 = vmatpush1.msra.mxu0 0.0
    %575 = vmatprep.subr.mxu0 0.0
    %576 = vmatpush1.msra.mxu0 0.0
    %577 = vmatprep.subr.mxu0 0.0
    %578 = vmatpush1.msra.mxu0 0.0
    %579 = vmatprep.subr.mxu0 0.0
    %580 = vmatpush1.msra.mxu0 0.0
    %581 = vmatprep.subr.mxu0 0.0
    %582 = vmatpush1.msra.mxu0 0.0
    %583 = vmatprep.subr.mxu0 0.0
    %584 = vmatpush1.msra.mxu0 0.0
    %585 = vmatprep.subr.mxu0 0.0
    %586 = vmatpush1.msra.mxu0 0.0
    %587 = vmatprep.subr.mxu0 0.0
    %588 = vmatpush1.msra.mxu0 0.0
    %589 = vmatprep.subr.mxu0 0.0
    %590 = vmatpush1.msra.mxu0 0.0
    %591 = vmatprep.subr.mxu0 0.0
    %592 = vmatpush1.msra.mxu0 0.0
    %593 = vmatprep.subr.mxu0 0.0
    %594 = vmatpush1.msra.mxu0 0.0
    %595 = vmatprep.subr.mxu0 0.0
    %596 = vmatpush1.msra.mxu0 0.0
    %597 = vmatprep.subr.mxu0 0.0
    %598 = vmatpush1.msra.mxu0 0.0
    %599 = vmatprep.subr.mxu0 0.0
    %600 = vmatpush1.msra.mxu0 0.0
    %601 = vmatprep.subr.mxu0 %v437
    %602 = vmatpush1.msra.mxu0 %v436
    %603 = vmatprep.subr.mxu0 %v429
    %604 = vmatpush1.msra.mxu0 %v428
    %605 = vmatprep.subr.mxu0 0.0
    %606 = vmatpush2.msra.mxu0 0.0
    %607 = vmatprep.subr.mxu0 0.0
    %608 = vmatpush2.msra.mxu0 0.0
    %609 = vmatprep.subr.mxu0 0.0
    %610 = vmatpush2.msra.mxu0 0.0
    %611 = vmatprep.subr.mxu0 0.0
    %612 = vmatpush2.msra.mxu0 0.0
    %613 = vmatprep.subr.mxu0 0.0
    %614 = vmatpush2.msra.mxu0 0.0
    %615 = vmatprep.subr.mxu0 0.0
    %616 = vmatpush2.msra.mxu0 0.0
    %617 = vmatprep.subr.mxu0 0.0
    %618 = vmatpush2.msra.mxu0 0.0
    %619 = vmatprep.subr.mxu0 0.0
    %620 = vmatpush2.msra.mxu0 0.0
    %621 = vmatprep.subr.mxu0 0.0
    %622 = vmatpush2.msra.mxu0 0.0
    %623 = vmatprep.subr.mxu0 0.0
    %624 = vmatpush2.msra.mxu0 0.0
    %625 = vmatprep.subr.mxu0 0.0
    %626 = vmatpush2.msra.mxu0 0.0
    %627 = vmatprep.subr.mxu0 0.0
    %628 = vmatpush2.msra.mxu0 0.0
    %629 = vmatprep.subr.mxu0 0.0
    %630 = vmatpush2.msra.mxu0 0.0
    %631 = vmatprep.subr.mxu0 0.0
    %632 = vmatpush2.msra.mxu0 0.0
    %633 = vmatprep.subr.mxu0 0.0
    %634 = vmatpush2.msra.mxu0 0.0
    %635 = vmatprep.subr.mxu0 0.0
    %636 = vmatpush2.msra.mxu0 0.0
    %637 = vmatprep.mubr.f32.mxu0 0.0
    %638 = vmatmul.mubr.f32.gmra.mxu0 %v478
    %v639 = vpop.f32.mrf.mxu0
    %v640 = vadd.f32 0.0, %v639
    %v641 = vpop.f32.mrf.mxu0
    %v642 = vadd.f32 0.0, %v641
    %643 = vmatprep.mubr.f32.mxu0 0.0
    %644 = vmatmul.mubr.f32.gmra.mxu0 %v481
    %v645 = vpop.f32.mrf.mxu0
    %v646 = vadd.f32 0.0, %v645
    %v647 = vpop.f32.mrf.mxu0
    %v648 = vadd.f32 0.0, %v647
    %649 = vmatprep.mubr.f32.mxu0 0.0
    %650 = vmatmul.mubr.f32.gmra.mxu0 %v484
    %v651 = vpop.f32.mrf.mxu0
    %v652 = vadd.f32 0.0, %v651
    %v653 = vpop.f32.mrf.mxu0
    %v654 = vadd.f32 0.0, %v653
    %655 = vmatprep.mubr.f32.mxu0 0.0
    %656 = vmatmul.mubr.f32.gmra.mxu0 %v487
    %v657 = vpop.f32.mrf.mxu0
    %v658 = vadd.f32 0.0, %v657
    %v659 = vpop.f32.mrf.mxu0
    %v660 = vadd.f32 0.0, %v659
    %661 = vmatprep.mubr.f32.mxu0 0.0
    %662 = vmatmul.mubr.f32.gmra.mxu0 %v490
    %v663 = vpop.f32.mrf.mxu0
    %v664 = vadd.f32 0.0, %v663
    %v665 = vpop.f32.mrf.mxu0
    %v666 = vadd.f32 0.0, %v665
    %667 = vmatprep.mubr.f32.mxu0 0.0
    %668 = vmatmul.mubr.f32.gmra.mxu0 %v493
    %v669 = vpop.f32.mrf.mxu0
    %v670 = vadd.f32 0.0, %v669
    %v671 = vpop.f32.mrf.mxu0
    %v672 = vadd.f32 0.0, %v671
    %673 = vmatprep.mubr.f32.mxu0 0.0
    %674 = vmatmul.mubr.f32.gmra.mxu0 %v496
    %v675 = vpop.f32.mrf.mxu0
    %v676 = vadd.f32 0.0, %v675
    %v677 = vpop.f32.mrf.mxu0
    %v678 = vadd.f32 0.0, %v677
    %679 = vmatprep.mubr.f32.mxu0 0.0
    %680 = vmatmul.mubr.f32.gmra.mxu0 %v499
    %v681 = vpop.f32.mrf.mxu0
    %v682 = vadd.f32 0.0, %v681
    %v683 = vpop.f32.mrf.mxu0
    %v684 = vadd.f32 0.0, %v683
    %685 = vmatprep.mubr.f32.mxu0 0.0
    %686 = vmatmul.mubr.f32.gmra.mxu0 %v502
    %v687 = vpop.f32.mrf.mxu0
    %v688 = vadd.f32 0.0, %v687
    %v689 = vpop.f32.mrf.mxu0
    %v690 = vadd.f32 0.0, %v689
    %691 = vmatprep.mubr.f32.mxu0 0.0
    %692 = vmatmul.mubr.f32.gmra.mxu0 %v505
    %v693 = vpop.f32.mrf.mxu0
    %v694 = vadd.f32 0.0, %v693
    %v695 = vpop.f32.mrf.mxu0
    %v696 = vadd.f32 0.0, %v695
    %697 = vmatprep.mubr.f32.mxu0 0.0
    %698 = vmatmul.mubr.f32.gmra.mxu0 %v508
    %v699 = vpop.f32.mrf.mxu0
    %v700 = vadd.f32 0.0, %v699
    %v701 = vpop.f32.mrf.mxu0
    %v702 = vadd.f32 0.0, %v701
    %703 = vmatprep.mubr.f32.mxu0 0.0
    %704 = vmatmul.mubr.f32.gmra.mxu0 %v511
    %v705 = vpop.f32.mrf.mxu0
    %v706 = vadd.f32 0.0, %v705
    %v707 = vpop.f32.mrf.mxu0
    %v708 = vadd.f32 0.0, %v707
    %709 = vmatprep.mubr.f32.mxu0 0.0
    %710 = vmatmul.mubr.f32.gmra.mxu0 %v514
    %v711 = vpop.f32.mrf.mxu0
    %v712 = vadd.f32 0.0, %v711
    %v713 = vpop.f32.mrf.mxu0
    %v714 = vadd.f32 0.0, %v713
    %715 = vmatprep.mubr.f32.mxu0 0.0
    %716 = vmatmul.mubr.f32.gmra.mxu0 %v517
    %v717 = vpop.f32.mrf.mxu0
    %v718 = vadd.f32 0.0, %v717
    %v719 = vpop.f32.mrf.mxu0
    %v720 = vadd.f32 0.0, %v719
    %721 = vmatprep.mubr.f32.mxu0 0.0
    %722 = vmatmul.mubr.f32.gmra.mxu0 %v520
    %v723 = vpop.f32.mrf.mxu0
    %v724 = vadd.f32 0.0, %v723
    %v725 = vpop.f32.mrf.mxu0
    %v726 = vadd.f32 0.0, %v725
    %727 = vmatprep.mubr.f32.mxu0 0.0
    %728 = vmatmul.mubr.f32.gmra.mxu0 %v523
    %v729 = vpop.f32.mrf.mxu0
    %v730 = vadd.f32 0.0, %v729
    %v731 = vpop.f32.mrf.mxu0
    %v732 = vadd.f32 0.0, %v731
    %733 = vmatprep.mubr.f32.mxu0 0.0
    %734 = vmatmul.mubr.f32.gmra.mxu0 %v526
    %v735 = vpop.f32.mrf.mxu0
    %v736 = vadd.f32 0.0, %v735
    %v737 = vpop.f32.mrf.mxu0
    %v738 = vadd.f32 0.0, %v737
    %739 = vmatprep.mubr.f32.mxu0 0.0
    %740 = vmatmul.mubr.f32.gmra.mxu0 %v529
    %v741 = vpop.f32.mrf.mxu0
    %v742 = vadd.f32 0.0, %v741
    %v743 = vpop.f32.mrf.mxu0
    %v744 = vadd.f32 0.0, %v743
    %745 = vmatprep.mubr.f32.mxu0 0.0
    %746 = vmatmul.mubr.f32.gmra.mxu0 %v532
    %v747 = vpop.f32.mrf.mxu0
    %v748 = vadd.f32 0.0, %v747
    %v749 = vpop.f32.mrf.mxu0
    %v750 = vadd.f32 0.0, %v749
    %751 = vmatprep.mubr.f32.mxu0 0.0
    %752 = vmatmul.mubr.f32.gmra.mxu0 %v535
    %v753 = vpop.f32.mrf.mxu0
    %v754 = vadd.f32 0.0, %v753
    %v755 = vpop.f32.mrf.mxu0
    %v756 = vadd.f32 0.0, %v755
    %757 = vmatprep.mubr.f32.mxu0 0.0
    %758 = vmatmul.mubr.f32.gmra.mxu0 %v538
    %v759 = vpop.f32.mrf.mxu0
    %v760 = vadd.f32 0.0, %v759
    %v761 = vpop.f32.mrf.mxu0
    %v762 = vadd.f32 0.0, %v761
    %763 = vmatprep.mubr.f32.mxu0 0.0
    %764 = vmatmul.mubr.f32.gmra.mxu0 %v541
    %v765 = vpop.f32.mrf.mxu0
    %v766 = vadd.f32 0.0, %v765
    %v767 = vpop.f32.mrf.mxu0
    %v768 = vadd.f32 0.0, %v767
    %769 = vmatprep.mubr.f32.mxu0 0.0
    %770 = vmatmul.mubr.f32.gmra.mxu0 %v544
    %v771 = vpop.f32.mrf.mxu0
    %v772 = vadd.f32 0.0, %v771
    %v773 = vpop.f32.mrf.mxu0
    %v774 = vadd.f32 0.0, %v773
    %775 = vmatprep.mubr.f32.mxu0 0.0
    %776 = vmatmul.mubr.f32.gmra.mxu0 %v547
    %v777 = vpop.f32.mrf.mxu0
    %v778 = vadd.f32 0.0, %v777
    %v779 = vpop.f32.mrf.mxu0
    %v780 = vadd.f32 0.0, %v779
    %781 = vmatprep.mubr.f32.mxu0 0.0
    %782 = vmatmul.mubr.f32.gmra.mxu0 %v550
    %v783 = vpop.f32.mrf.mxu0
    %v784 = vadd.f32 0.0, %v783
    %v785 = vpop.f32.mrf.mxu0
    %v786 = vadd.f32 0.0, %v785
    %787 = vmatprep.mubr.f32.mxu0 0.0
    %788 = vmatmul.mubr.f32.gmra.mxu0 %v553
    %v789 = vpop.f32.mrf.mxu0
    %v790 = vadd.f32 0.0, %v789
    %v791 = vpop.f32.mrf.mxu0
    %v792 = vadd.f32 0.0, %v791
    %793 = vmatprep.mubr.f32.mxu0 0.0
    %794 = vmatmul.mubr.f32.gmra.mxu0 %v556
    %v795 = vpop.f32.mrf.mxu0
    %v796 = vadd.f32 0.0, %v795
    %v797 = vpop.f32.mrf.mxu0
    %v798 = vadd.f32 0.0, %v797
    %799 = vmatprep.mubr.f32.mxu0 0.0
    %800 = vmatmul.mubr.f32.gmra.mxu0 %v559
    %v801 = vpop.f32.mrf.mxu0
    %v802 = vadd.f32 0.0, %v801
    %v803 = vpop.f32.mrf.mxu0
    %v804 = vadd.f32 0.0, %v803
    %805 = vmatprep.mubr.f32.mxu0 0.0
    %806 = vmatmul.mubr.f32.gmra.mxu0 %v562
    %v807 = vpop.f32.mrf.mxu0
    %v808 = vadd.f32 0.0, %v807
    %v809 = vpop.f32.mrf.mxu0
    %v810 = vadd.f32 0.0, %v809
    %811 = vmatprep.mubr.f32.mxu0 0.0
    %812 = vmatmul.mubr.f32.gmra.mxu0 %v565
    %v813 = vpop.f32.mrf.mxu0
    %v814 = vadd.f32 0.0, %v813
    %v815 = vpop.f32.mrf.mxu0
    %v816 = vadd.f32 0.0, %v815
    %817 = vmatprep.mubr.f32.mxu0 0.0
    %818 = vmatmul.mubr.f32.gmra.mxu0 %v568
    %v819 = vpop.f32.mrf.mxu0
    %v820 = vadd.f32 0.0, %v819
    %v821 = vpop.f32.mrf.mxu0
    %v822 = vadd.f32 0.0, %v821
    %823 = vmatprep.mubr.f32.mxu0 0.0
    %824 = vmatmul.mubr.f32.gmra.mxu0 %v571
    %v825 = vpop.f32.mrf.mxu0
    %v826 = vadd.f32 0.0, %v825
    %v827 = vpop.f32.mrf.mxu0
    %v828 = vadd.f32 0.0, %v827
    %829 = vdwg.mxu0
    %830 = vmatprep.subr.mxu0 0.0
    %831 = vmatpush1.msra.mxu0 0.0
    %832 = vmatprep.subr.mxu0 0.0
    %833 = vmatpush1.msra.mxu0 0.0
    %834 = vmatprep.subr.mxu0 0.0
    %835 = vmatpush1.msra.mxu0 0.0
    %836 = vmatprep.subr.mxu0 0.0
    %837 = vmatpush1.msra.mxu0 0.0
    %838 = vmatprep.subr.mxu0 0.0
    %839 = vmatpush1.msra.mxu0 0.0
    %840 = vmatprep.subr.mxu0 0.0
    %841 = vmatpush1.msra.mxu0 0.0
    %842 = vmatprep.subr.mxu0 0.0
    %843 = vmatpush1.msra.mxu0 0.0
    %844 = vmatprep.subr.mxu0 0.0
    %845 = vmatpush1.msra.mxu0 0.0
    %846 = vmatprep.subr.mxu0 0.0
    %847 = vmatpush1.msra.mxu0 0.0
    %848 = vmatprep.subr.mxu0 0.0
    %849 = vmatpush1.msra.mxu0 0.0
    %850 = vmatprep.subr.mxu0 0.0
    %851 = vmatpush1.msra.mxu0 0.0
    %852 = vmatprep.subr.mxu0 0.0
    %853 = vmatpush1.msra.mxu0 0.0
    %854 = vmatprep.subr.mxu0 0.0
    %855 = vmatpush1.msra.mxu0 0.0
    %856 = vmatprep.subr.mxu0 0.0
    %857 = vmatpush1.msra.mxu0 0.0
    %858 = vmatprep.subr.mxu0 %v439
    %859 = vmatpush1.msra.mxu0 %v438
    %860 = vmatprep.subr.mxu0 %v431
    %861 = vmatpush1.msra.mxu0 %v430
    %862 = vmatprep.subr.mxu0 0.0
    %863 = vmatpush2.msra.mxu0 0.0
    %864 = vmatprep.subr.mxu0 0.0
    %865 = vmatpush2.msra.mxu0 0.0
    %866 = vmatprep.subr.mxu0 0.0
    %867 = vmatpush2.msra.mxu0 0.0
    %868 = vmatprep.subr.mxu0 0.0
    %869 = vmatpush2.msra.mxu0 0.0
    %870 = vmatprep.subr.mxu0 0.0
    %871 = vmatpush2.msra.mxu0 0.0
    %872 = vmatprep.subr.mxu0 0.0
    %873 = vmatpush2.msra.mxu0 0.0
    %874 = vmatprep.subr.mxu0 0.0
    %875 = vmatpush2.msra.mxu0 0.0
    %876 = vmatprep.subr.mxu0 0.0
    %877 = vmatpush2.msra.mxu0 0.0
    %878 = vmatprep.subr.mxu0 0.0
    %879 = vmatpush2.msra.mxu0 0.0
    %880 = vmatprep.subr.mxu0 0.0
    %881 = vmatpush2.msra.mxu0 0.0
    %882 = vmatprep.subr.mxu0 0.0
    %883 = vmatpush2.msra.mxu0 0.0
    %884 = vmatprep.subr.mxu0 0.0
    %885 = vmatpush2.msra.mxu0 0.0
    %886 = vmatprep.subr.mxu0 0.0
    %887 = vmatpush2.msra.mxu0 0.0
    %888 = vmatprep.subr.mxu0 0.0
    %889 = vmatpush2.msra.mxu0 0.0
    %890 = vmatprep.subr.mxu0 0.0
    %891 = vmatpush2.msra.mxu0 0.0
    %892 = vmatprep.subr.mxu0 0.0
    %893 = vmatpush2.msra.mxu0 0.0
    %894 = vmatprep.mubr.f32.mxu0 0.0
    %895 = vmatmul.mubr.f32.gmra.mxu0 %v478
    %v896 = vpop.f32.mrf.mxu0
    %v897 = vadd.f32 0.0, %v896
    %v898 = vpop.f32.mrf.mxu0
    %v899 = vadd.f32 0.0, %v898
    %900 = vmatprep.mubr.f32.mxu0 0.0
    %901 = vmatmul.mubr.f32.gmra.mxu0 %v481
    %v902 = vpop.f32.mrf.mxu0
    %v903 = vadd.f32 0.0, %v902
    %v904 = vpop.f32.mrf.mxu0
    %v905 = vadd.f32 0.0, %v904
    %906 = vmatprep.mubr.f32.mxu0 0.0
    %907 = vmatmul.mubr.f32.gmra.mxu0 %v484
    %v908 = vpop.f32.mrf.mxu0
    %v909 = vadd.f32 0.0, %v908
    %v910 = vpop.f32.mrf.mxu0
    %v911 = vadd.f32 0.0, %v910
    %912 = vmatprep.mubr.f32.mxu0 0.0
    %913 = vmatmul.mubr.f32.gmra.mxu0 %v487
    %v914 = vpop.f32.mrf.mxu0
    %v915 = vadd.f32 0.0, %v914
    %v916 = vpop.f32.mrf.mxu0
    %v917 = vadd.f32 0.0, %v916
    %918 = vmatprep.mubr.f32.mxu0 0.0
    %919 = vmatmul.mubr.f32.gmra.mxu0 %v490
    %v920 = vpop.f32.mrf.mxu0
    %v921 = vadd.f32 0.0, %v920
    %v922 = vpop.f32.mrf.mxu0
    %v923 = vadd.f32 0.0, %v922
    %924 = vmatprep.mubr.f32.mxu0 0.0
    %925 = vmatmul.mubr.f32.gmra.mxu0 %v493
    %v926 = vpop.f32.mrf.mxu0
    %v927 = vadd.f32 0.0, %v926
    %v928 = vpop.f32.mrf.mxu0
    %v929 = vadd.f32 0.0, %v928
    %930 = vmatprep.mubr.f32.mxu0 0.0
    %931 = vmatmul.mubr.f32.gmra.mxu0 %v496
    %v932 = vpop.f32.mrf.mxu0
    %v933 = vadd.f32 0.0, %v932
    %v934 = vpop.f32.mrf.mxu0
    %v935 = vadd.f32 0.0, %v934
    %936 = vmatprep.mubr.f32.mxu0 0.0
    %937 = vmatmul.mubr.f32.gmra.mxu0 %v499
    %v938 = vpop.f32.mrf.mxu0
    %v939 = vadd.f32 0.0, %v938
    %v940 = vpop.f32.mrf.mxu0
    %v941 = vadd.f32 0.0, %v940
    %942 = vmatprep.mubr.f32.mxu0 0.0
    %943 = vmatmul.mubr.f32.gmra.mxu0 %v502
    %v944 = vpop.f32.mrf.mxu0
    %v945 = vadd.f32 0.0, %v944
    %v946 = vpop.f32.mrf.mxu0
    %v947 = vadd.f32 0.0, %v946
    %948 = vmatprep.mubr.f32.mxu0 0.0
    %949 = vmatmul.mubr.f32.gmra.mxu0 %v505
    %v950 = vpop.f32.mrf.mxu0
    %v951 = vadd.f32 0.0, %v950
    %v952 = vpop.f32.mrf.mxu0
    %v953 = vadd.f32 0.0, %v952
    %954 = vmatprep.mubr.f32.mxu0 0.0
    %955 = vmatmul.mubr.f32.gmra.mxu0 %v508
    %v956 = vpop.f32.mrf.mxu0
    %v957 = vadd.f32 0.0, %v956
    %v958 = vpop.f32.mrf.mxu0
    %v959 = vadd.f32 0.0, %v958
    %960 = vmatprep.mubr.f32.mxu0 0.0
    %961 = vmatmul.mubr.f32.gmra.mxu0 %v511
    %v962 = vpop.f32.mrf.mxu0
    %v963 = vadd.f32 0.0, %v962
    %v964 = vpop.f32.mrf.mxu0
    %v965 = vadd.f32 0.0, %v964
    %966 = vmatprep.mubr.f32.mxu0 0.0
    %967 = vmatmul.mubr.f32.gmra.mxu0 %v514
    %v968 = vpop.f32.mrf.mxu0
    %v969 = vadd.f32 0.0, %v968
    %v970 = vpop.f32.mrf.mxu0
    %v971 = vadd.f32 0.0, %v970
    %972 = vmatprep.mubr.f32.mxu0 0.0
    %973 = vmatmul.mubr.f32.gmra.mxu0 %v517
    %v974 = vpop.f32.mrf.mxu0
    %v975 = vadd.f32 0.0, %v974
    %v976 = vpop.f32.mrf.mxu0
    %v977 = vadd.f32 0.0, %v976
    %978 = vmatprep.mubr.f32.mxu0 0.0
    %979 = vmatmul.mubr.f32.gmra.mxu0 %v520
    %v980 = vpop.f32.mrf.mxu0
    %v981 = vadd.f32 0.0, %v980
    %v982 = vpop.f32.mrf.mxu0
    %v983 = vadd.f32 0.0, %v982
    %984 = vmatprep.mubr.f32.mxu0 0.0
    %985 = vmatmul.mubr.f32.gmra.mxu0 %v523
    %v986 = vpop.f32.mrf.mxu0
    %v987 = vadd.f32 0.0, %v986
    %v988 = vpop.f32.mrf.mxu0
    %v989 = vadd.f32 0.0, %v988
    %990 = vmatprep.mubr.f32.mxu0 0.0
    %991 = vmatmul.mubr.f32.gmra.mxu0 %v526
    %v992 = vpop.f32.mrf.mxu0
    %v993 = vadd.f32 0.0, %v992
    %v994 = vpop.f32.mrf.mxu0
    %v995 = vadd.f32 0.0, %v994
    %996 = vmatprep.mubr.f32.mxu0 0.0
    %997 = vmatmul.mubr.f32.gmra.mxu0 %v529
    %v998 = vpop.f32.mrf.mxu0
    %v999 = vadd.f32 0.0, %v998
    %v1000 = vpop.f32.mrf.mxu0
    %v1001 = vadd.f32 0.0, %v1000
    %1002 = vmatprep.mubr.f32.mxu0 0.0
    %1003 = vmatmul.mubr.f32.gmra.mxu0 %v532
    %v1004 = vpop.f32.mrf.mxu0
    %v1005 = vadd.f32 0.0, %v1004
    %v1006 = vpop.f32.mrf.mxu0
    %v1007 = vadd.f32 0.0, %v1006
    %1008 = vmatprep.mubr.f32.mxu0 0.0
    %1009 = vmatmul.mubr.f32.gmra.mxu0 %v535
    %v1010 = vpop.f32.mrf.mxu0
    %v1011 = vadd.f32 0.0, %v1010
    %v1012 = vpop.f32.mrf.mxu0
    %v1013 = vadd.f32 0.0, %v1012
    %1014 = vmatprep.mubr.f32.mxu0 0.0
    %1015 = vmatmul.mubr.f32.gmra.mxu0 %v538
    %v1016 = vpop.f32.mrf.mxu0
    %v1017 = vadd.f32 0.0, %v1016
    %v1018 = vpop.f32.mrf.mxu0
    %v1019 = vadd.f32 0.0, %v1018
    %1020 = vmatprep.mubr.f32.mxu0 0.0
    %1021 = vmatmul.mubr.f32.gmra.mxu0 %v541
    %v1022 = vpop.f32.mrf.mxu0
    %v1023 = vadd.f32 0.0, %v1022
    %v1024 = vpop.f32.mrf.mxu0
    %v1025 = vadd.f32 0.0, %v1024
    %1026 = vmatprep.mubr.f32.mxu0 0.0
    %1027 = vmatmul.mubr.f32.gmra.mxu0 %v544
    %v1028 = vpop.f32.mrf.mxu0
    %v1029 = vadd.f32 0.0, %v1028
    %v1030 = vpop.f32.mrf.mxu0
    %v1031 = vadd.f32 0.0, %v1030
    %1032 = vmatprep.mubr.f32.mxu0 0.0
    %1033 = vmatmul.mubr.f32.gmra.mxu0 %v547
    %v1034 = vpop.f32.mrf.mxu0
    %v1035 = vadd.f32 0.0, %v1034
    %v1036 = vpop.f32.mrf.mxu0
    %v1037 = vadd.f32 0.0, %v1036
    %1038 = vmatprep.mubr.f32.mxu0 0.0
    %1039 = vmatmul.mubr.f32.gmra.mxu0 %v550
    %v1040 = vpop.f32.mrf.mxu0
    %v1041 = vadd.f32 0.0, %v1040
    %v1042 = vpop.f32.mrf.mxu0
    %v1043 = vadd.f32 0.0, %v1042
    %1044 = vmatprep.mubr.f32.mxu0 0.0
    %1045 = vmatmul.mubr.f32.gmra.mxu0 %v553
    %v1046 = vpop.f32.mrf.mxu0
    %v1047 = vadd.f32 0.0, %v1046
    %v1048 = vpop.f32.mrf.mxu0
    %v1049 = vadd.f32 0.0, %v1048
    %1050 = vmatprep.mubr.f32.mxu0 0.0
    %1051 = vmatmul.mubr.f32.gmra.mxu0 %v556
    %v1052 = vpop.f32.mrf.mxu0
    %v1053 = vadd.f32 0.0, %v1052
    %v1054 = vpop.f32.mrf.mxu0
    %v1055 = vadd.f32 0.0, %v1054
    %1056 = vmatprep.mubr.f32.mxu0 0.0
    %1057 = vmatmul.mubr.f32.gmra.mxu0 %v559
    %v1058 = vpop.f32.mrf.mxu0
    %v1059 = vadd.f32 0.0, %v1058
    %v1060 = vpop.f32.mrf.mxu0
    %v1061 = vadd.f32 0.0, %v1060
    %1062 = vmatprep.mubr.f32.mxu0 0.0
    %1063 = vmatmul.mubr.f32.gmra.mxu0 %v562
    %v1064 = vpop.f32.mrf.mxu0
    %v1065 = vadd.f32 0.0, %v1064
    %v1066 = vpop.f32.mrf.mxu0
    %v1067 = vadd.f32 0.0, %v1066
    %1068 = vmatprep.mubr.f32.mxu0 0.0
    %1069 = vmatmul.mubr.f32.gmra.mxu0 %v565
    %v1070 = vpop.f32.mrf.mxu0
    %v1071 = vadd.f32 0.0, %v1070
    %v1072 = vpop.f32.mrf.mxu0
    %v1073 = vadd.f32 0.0, %v1072
    %1074 = vmatprep.mubr.f32.mxu0 0.0
    %1075 = vmatmul.mubr.f32.gmra.mxu0 %v568
    %v1076 = vpop.f32.mrf.mxu0
    %v1077 = vadd.f32 0.0, %v1076
    %v1078 = vpop.f32.mrf.mxu0
    %v1079 = vadd.f32 0.0, %v1078
    %1080 = vmatprep.mubr.f32.mxu0 0.0
    %1081 = vmatmul.mubr.f32.gmra.mxu0 %v571
    %v1082 = vpop.f32.mrf.mxu0
    %v1083 = vadd.f32 0.0, %v1082
    %v1084 = vpop.f32.mrf.mxu0
    %v1085 = vadd.f32 0.0, %v1084
    %1086 = vdwg.mxu0
    %1087 = vmatprep.subr.mxu0 0.0
    %1088 = vmatpush1.msra.mxu0 0.0
    %1089 = vmatprep.subr.mxu0 0.0
    %1090 = vmatpush1.msra.mxu0 0.0
    %1091 = vmatprep.subr.mxu0 0.0
    %1092 = vmatpush1.msra.mxu0 0.0
    %1093 = vmatprep.subr.mxu0 0.0
    %1094 = vmatpush1.msra.mxu0 0.0
    %1095 = vmatprep.subr.mxu0 0.0
    %1096 = vmatpush1.msra.mxu0 0.0
    %1097 = vmatprep.subr.mxu0 0.0
    %1098 = vmatpush1.msra.mxu0 0.0
    %1099 = vmatprep.subr.mxu0 0.0
    %1100 = vmatpush1.msra.mxu0 0.0
    %1101 = vmatprep.subr.mxu0 0.0
    %1102 = vmatpush1.msra.mxu0 0.0
    %1103 = vmatprep.subr.mxu0 0.0
    %1104 = vmatpush1.msra.mxu0 0.0
    %1105 = vmatprep.subr.mxu0 0.0
    %1106 = vmatpush1.msra.mxu0 0.0
    %1107 = vmatprep.subr.mxu0 0.0
    %1108 = vmatpush1.msra.mxu0 0.0
    %1109 = vmatprep.subr.mxu0 0.0
    %1110 = vmatpush1.msra.mxu0 0.0
    %1111 = vmatprep.subr.mxu0 0.0
    %1112 = vmatpush1.msra.mxu0 0.0
    %1113 = vmatprep.subr.mxu0 0.0
    %1114 = vmatpush1.msra.mxu0 0.0
    %1115 = vmatprep.subr.mxu0 %v441
    %1116 = vmatpush1.msra.mxu0 %v440
    %1117 = vmatprep.subr.mxu0 %v433
    %1118 = vmatpush1.msra.mxu0 %v432
    %1119 = vmatprep.subr.mxu0 0.0
    %1120 = vmatpush2.msra.mxu0 0.0
    %1121 = vmatprep.subr.mxu0 0.0
    %1122 = vmatpush2.msra.mxu0 0.0
    %1123 = vmatprep.subr.mxu0 0.0
    %1124 = vmatpush2.msra.mxu0 0.0
    %1125 = vmatprep.subr.mxu0 0.0
    %1126 = vmatpush2.msra.mxu0 0.0
    %1127 = vmatprep.subr.mxu0 0.0
    %1128 = vmatpush2.msra.mxu0 0.0
    %1129 = vmatprep.subr.mxu0 0.0
    %1130 = vmatpush2.msra.mxu0 0.0
    %1131 = vmatprep.subr.mxu0 0.0
    %1132 = vmatpush2.msra.mxu0 0.0
    %1133 = vmatprep.subr.mxu0 0.0
    %1134 = vmatpush2.msra.mxu0 0.0
    %1135 = vmatprep.subr.mxu0 0.0
    %1136 = vmatpush2.msra.mxu0 0.0
    %1137 = vmatprep.subr.mxu0 0.0
    %1138 = vmatpush2.msra.mxu0 0.0
    %1139 = vmatprep.subr.mxu0 0.0
    %1140 = vmatpush2.msra.mxu0 0.0
    %1141 = vmatprep.subr.mxu0 0.0
    %1142 = vmatpush2.msra.mxu0 0.0
    %1143 = vmatprep.subr.mxu0 0.0
    %1144 = vmatpush2.msra.mxu0 0.0
    %1145 = vmatprep.subr.mxu0 0.0
    %1146 = vmatpush2.msra.mxu0 0.0
    %1147 = vmatprep.subr.mxu0 0.0
    %1148 = vmatpush2.msra.mxu0 0.0
    %1149 = vmatprep.subr.mxu0 0.0
    %1150 = vmatpush2.msra.mxu0 0.0
    %1151 = vmatprep.mubr.f32.mxu0 0.0
    %1152 = vmatmul.mubr.f32.gmra.mxu0 %v478
    %v1153 = vpop.f32.mrf.mxu0
    %v1154 = vadd.f32 0.0, %v1153
    %v1155 = vpop.f32.mrf.mxu0
    %v1156 = vadd.f32 0.0, %v1155
    %1157 = vmatprep.mubr.f32.mxu0 0.0
    %1158 = vmatmul.mubr.f32.gmra.mxu0 %v481
    %v1159 = vpop.f32.mrf.mxu0
    %v1160 = vadd.f32 0.0, %v1159
    %v1161 = vpop.f32.mrf.mxu0
    %v1162 = vadd.f32 0.0, %v1161
    %1163 = vmatprep.mubr.f32.mxu0 0.0
    %1164 = vmatmul.mubr.f32.gmra.mxu0 %v484
    %v1165 = vpop.f32.mrf.mxu0
    %v1166 = vadd.f32 0.0, %v1165
    %v1167 = vpop.f32.mrf.mxu0
    %v1168 = vadd.f32 0.0, %v1167
    %1169 = vmatprep.mubr.f32.mxu0 0.0
    %1170 = vmatmul.mubr.f32.gmra.mxu0 %v487
    %v1171 = vpop.f32.mrf.mxu0
    %v1172 = vadd.f32 0.0, %v1171
    %v1173 = vpop.f32.mrf.mxu0
    %v1174 = vadd.f32 0.0, %v1173
    %1175 = vmatprep.mubr.f32.mxu0 0.0
    %1176 = vmatmul.mubr.f32.gmra.mxu0 %v490
    %v1177 = vpop.f32.mrf.mxu0
    %v1178 = vadd.f32 0.0, %v1177
    %v1179 = vpop.f32.mrf.mxu0
    %v1180 = vadd.f32 0.0, %v1179
    %1181 = vmatprep.mubr.f32.mxu0 0.0
    %1182 = vmatmul.mubr.f32.gmra.mxu0 %v493
    %v1183 = vpop.f32.mrf.mxu0
    %v1184 = vadd.f32 0.0, %v1183
    %v1185 = vpop.f32.mrf.mxu0
    %v1186 = vadd.f32 0.0, %v1185
    %1187 = vmatprep.mubr.f32.mxu0 0.0
    %1188 = vmatmul.mubr.f32.gmra.mxu0 %v496
    %v1189 = vpop.f32.mrf.mxu0
    %v1190 = vadd.f32 0.0, %v1189
    %v1191 = vpop.f32.mrf.mxu0
    %v1192 = vadd.f32 0.0, %v1191
    %1193 = vmatprep.mubr.f32.mxu0 0.0
    %1194 = vmatmul.mubr.f32.gmra.mxu0 %v499
    %v1195 = vpop.f32.mrf.mxu0
    %v1196 = vadd.f32 0.0, %v1195
    %v1197 = vpop.f32.mrf.mxu0
    %v1198 = vadd.f32 0.0, %v1197
    %1199 = vmatprep.mubr.f32.mxu0 0.0
    %1200 = vmatmul.mubr.f32.gmra.mxu0 %v502
    %v1201 = vpop.f32.mrf.mxu0
    %v1202 = vadd.f32 0.0, %v1201
    %v1203 = vpop.f32.mrf.mxu0
    %v1204 = vadd.f32 0.0, %v1203
    %1205 = vmatprep.mubr.f32.mxu0 0.0
    %1206 = vmatmul.mubr.f32.gmra.mxu0 %v505
    %v1207 = vpop.f32.mrf.mxu0
    %v1208 = vadd.f32 0.0, %v1207
    %v1209 = vpop.f32.mrf.mxu0
    %v1210 = vadd.f32 0.0, %v1209
    %1211 = vmatprep.mubr.f32.mxu0 0.0
    %1212 = vmatmul.mubr.f32.gmra.mxu0 %v508
    %v1213 = vpop.f32.mrf.mxu0
    %v1214 = vadd.f32 0.0, %v1213
    %v1215 = vpop.f32.mrf.mxu0
    %v1216 = vadd.f32 0.0, %v1215
    %1217 = vmatprep.mubr.f32.mxu0 0.0
    %1218 = vmatmul.mubr.f32.gmra.mxu0 %v511
    %v1219 = vpop.f32.mrf.mxu0
    %v1220 = vadd.f32 0.0, %v1219
    %v1221 = vpop.f32.mrf.mxu0
    %v1222 = vadd.f32 0.0, %v1221
    %1223 = vmatprep.mubr.f32.mxu0 0.0
    %1224 = vmatmul.mubr.f32.gmra.mxu0 %v514
    %v1225 = vpop.f32.mrf.mxu0
    %v1226 = vadd.f32 0.0, %v1225
    %v1227 = vpop.f32.mrf.mxu0
    %v1228 = vadd.f32 0.0, %v1227
    %1229 = vmatprep.mubr.f32.mxu0 0.0
    %1230 = vmatmul.mubr.f32.gmra.mxu0 %v517
    %v1231 = vpop.f32.mrf.mxu0
    %v1232 = vadd.f32 0.0, %v1231
    %v1233 = vpop.f32.mrf.mxu0
    %v1234 = vadd.f32 0.0, %v1233
    %1235 = vmatprep.mubr.f32.mxu0 0.0
    %1236 = vmatmul.mubr.f32.gmra.mxu0 %v520
    %v1237 = vpop.f32.mrf.mxu0
    %v1238 = vadd.f32 0.0, %v1237
    %v1239 = vpop.f32.mrf.mxu0
    %v1240 = vadd.f32 0.0, %v1239
    %1241 = vmatprep.mubr.f32.mxu0 0.0
    %1242 = vmatmul.mubr.f32.gmra.mxu0 %v523
    %v1243 = vpop.f32.mrf.mxu0
    %v1244 = vadd.f32 0.0, %v1243
    %v1245 = vpop.f32.mrf.mxu0
    %v1246 = vadd.f32 0.0, %v1245
    %1247 = vmatprep.mubr.f32.mxu0 0.0
    %1248 = vmatmul.mubr.f32.gmra.mxu0 %v526
    %v1249 = vpop.f32.mrf.mxu0
    %v1250 = vadd.f32 0.0, %v1249
    %v1251 = vpop.f32.mrf.mxu0
    %v1252 = vadd.f32 0.0, %v1251
    %1253 = vmatprep.mubr.f32.mxu0 0.0
    %1254 = vmatmul.mubr.f32.gmra.mxu0 %v529
    %v1255 = vpop.f32.mrf.mxu0
    %v1256 = vadd.f32 0.0, %v1255
    %v1257 = vpop.f32.mrf.mxu0
    %v1258 = vadd.f32 0.0, %v1257
    %1259 = vmatprep.mubr.f32.mxu0 0.0
    %1260 = vmatmul.mubr.f32.gmra.mxu0 %v532
    %v1261 = vpop.f32.mrf.mxu0
    %v1262 = vadd.f32 0.0, %v1261
    %v1263 = vpop.f32.mrf.mxu0
    %v1264 = vadd.f32 0.0, %v1263
    %1265 = vmatprep.mubr.f32.mxu0 0.0
    %1266 = vmatmul.mubr.f32.gmra.mxu0 %v535
    %v1267 = vpop.f32.mrf.mxu0
    %v1268 = vadd.f32 0.0, %v1267
    %v1269 = vpop.f32.mrf.mxu0
    %v1270 = vadd.f32 0.0, %v1269
    %1271 = vmatprep.mubr.f32.mxu0 0.0
    %1272 = vmatmul.mubr.f32.gmra.mxu0 %v538
    %v1273 = vpop.f32.mrf.mxu0
    %v1274 = vadd.f32 0.0, %v1273
    %v1275 = vpop.f32.mrf.mxu0
    %v1276 = vadd.f32 0.0, %v1275
    %1277 = vmatprep.mubr.f32.mxu0 0.0
    %1278 = vmatmul.mubr.f32.gmra.mxu0 %v541
    %v1279 = vpop.f32.mrf.mxu0
    %v1280 = vadd.f32 0.0, %v1279
    %v1281 = vpop.f32.mrf.mxu0
    %v1282 = vadd.f32 0.0, %v1281
    %1283 = vmatprep.mubr.f32.mxu0 0.0
    %1284 = vmatmul.mubr.f32.gmra.mxu0 %v544
    %v1285 = vpop.f32.mrf.mxu0
    %v1286 = vadd.f32 0.0, %v1285
    %v1287 = vpop.f32.mrf.mxu0
    %v1288 = vadd.f32 0.0, %v1287
    %1289 = vmatprep.mubr.f32.mxu0 0.0
    %1290 = vmatmul.mubr.f32.gmra.mxu0 %v547
    %v1291 = vpop.f32.mrf.mxu0
    %v1292 = vadd.f32 0.0, %v1291
    %v1293 = vpop.f32.mrf.mxu0
    %v1294 = vadd.f32 0.0, %v1293
    %1295 = vmatprep.mubr.f32.mxu0 0.0
    %1296 = vmatmul.mubr.f32.gmra.mxu0 %v550
    %v1297 = vpop.f32.mrf.mxu0
    %v1298 = vadd.f32 0.0, %v1297
    %v1299 = vpop.f32.mrf.mxu0
    %v1300 = vadd.f32 0.0, %v1299
    %1301 = vmatprep.mubr.f32.mxu0 0.0
    %1302 = vmatmul.mubr.f32.gmra.mxu0 %v553
    %v1303 = vpop.f32.mrf.mxu0
    %v1304 = vadd.f32 0.0, %v1303
    %v1305 = vpop.f32.mrf.mxu0
    %v1306 = vadd.f32 0.0, %v1305
    %1307 = vmatprep.mubr.f32.mxu0 0.0
    %1308 = vmatmul.mubr.f32.gmra.mxu0 %v556
    %v1309 = vpop.f32.mrf.mxu0
    %v1310 = vadd.f32 0.0, %v1309
    %v1311 = vpop.f32.mrf.mxu0
    %v1312 = vadd.f32 0.0, %v1311
    %1313 = vmatprep.mubr.f32.mxu0 0.0
    %1314 = vmatmul.mubr.f32.gmra.mxu0 %v559
    %v1315 = vpop.f32.mrf.mxu0
    %v1316 = vadd.f32 0.0, %v1315
    %v1317 = vpop.f32.mrf.mxu0
    %v1318 = vadd.f32 0.0, %v1317
    %1319 = vmatprep.mubr.f32.mxu0 0.0
    %1320 = vmatmul.mubr.f32.gmra.mxu0 %v562
    %v1321 = vpop.f32.mrf.mxu0
    %v1322 = vadd.f32 0.0, %v1321
    %v1323 = vpop.f32.mrf.mxu0
    %v1324 = vadd.f32 0.0, %v1323
    %1325 = vmatprep.mubr.f32.mxu0 0.0
    %1326 = vmatmul.mubr.f32.gmra.mxu0 %v565
    %v1327 = vpop.f32.mrf.mxu0
    %v1328 = vadd.f32 0.0, %v1327
    %v1329 = vpop.f32.mrf.mxu0
    %v1330 = vadd.f32 0.0, %v1329
    %1331 = vmatprep.mubr.f32.mxu0 0.0
    %1332 = vmatmul.mubr.f32.gmra.mxu0 %v568
    %v1333 = vpop.f32.mrf.mxu0
    %v1334 = vadd.f32 0.0, %v1333
    %v1335 = vpop.f32.mrf.mxu0
    %v1336 = vadd.f32 0.0, %v1335
    %1337 = vmatprep.mubr.f32.mxu0 0.0
    %1338 = vmatmul.mubr.f32.gmra.mxu0 %v571
    %v1339 = vpop.f32.mrf.mxu0
    %v1340 = vadd.f32 0.0, %v1339
    %v1341 = vpop.f32.mrf.mxu0
    %v1342 = vadd.f32 0.0, %v1341
    %1343 = vdwg.mxu0
    %1344 = vmatprep.subr.mxu0 0.0
    %1345 = vmatpush1.msra.mxu0 0.0
    %1346 = vmatprep.subr.mxu0 0.0
    %1347 = vmatpush1.msra.mxu0 0.0
    %1348 = vmatprep.subr.mxu0 0.0
    %1349 = vmatpush1.msra.mxu0 0.0
    %1350 = vmatprep.subr.mxu0 0.0
    %1351 = vmatpush1.msra.mxu0 0.0
    %1352 = vmatprep.subr.mxu0 0.0
    %1353 = vmatpush1.msra.mxu0 0.0
    %1354 = vmatprep.subr.mxu0 0.0
    %1355 = vmatpush1.msra.mxu0 0.0
    %1356 = vmatprep.subr.mxu0 0.0
    %1357 = vmatpush1.msra.mxu0 0.0
    %1358 = vmatprep.subr.mxu0 0.0
    %1359 = vmatpush1.msra.mxu0 0.0
    %1360 = vmatprep.subr.mxu0 0.0
    %1361 = vmatpush1.msra.mxu0 0.0
    %1362 = vmatprep.subr.mxu0 0.0
    %1363 = vmatpush1.msra.mxu0 0.0
    %1364 = vmatprep.subr.mxu0 0.0
    %1365 = vmatpush1.msra.mxu0 0.0
    %1366 = vmatprep.subr.mxu0 0.0
    %1367 = vmatpush1.msra.mxu0 0.0
    %1368 = vmatprep.subr.mxu0 0.0
    %1369 = vmatpush1.msra.mxu0 0.0
    %1370 = vmatprep.subr.mxu0 0.0
    %1371 = vmatpush1.msra.mxu0 0.0
    %1372 = vmatprep.subr.mxu0 %v443
    %1373 = vmatpush1.msra.mxu0 %v442
    %1374 = vmatprep.subr.mxu0 %v435
    %1375 = vmatpush1.msra.mxu0 %v434
    %1376 = vmatprep.subr.mxu0 0.0
    %1377 = vmatpush2.msra.mxu0 0.0
    %1378 = vmatprep.subr.mxu0 0.0
    %1379 = vmatpush2.msra.mxu0 0.0
    %1380 = vmatprep.subr.mxu0 0.0
    %1381 = vmatpush2.msra.mxu0 0.0
    %1382 = vmatprep.subr.mxu0 0.0
    %1383 = vmatpush2.msra.mxu0 0.0
    %1384 = vmatprep.subr.mxu0 0.0
    %1385 = vmatpush2.msra.mxu0 0.0
    %1386 = vmatprep.subr.mxu0 0.0
    %1387 = vmatpush2.msra.mxu0 0.0
    %1388 = vmatprep.subr.mxu0 0.0
    %1389 = vmatpush2.msra.mxu0 0.0
    %1390 = vmatprep.subr.mxu0 0.0
    %1391 = vmatpush2.msra.mxu0 0.0
    %1392 = vmatprep.subr.mxu0 0.0
    %1393 = vmatpush2.msra.mxu0 0.0
    %1394 = vmatprep.subr.mxu0 0.0
    %1395 = vmatpush2.msra.mxu0 0.0
    %1396 = vmatprep.subr.mxu0 0.0
    %1397 = vmatpush2.msra.mxu0 0.0
    %1398 = vmatprep.subr.mxu0 0.0
    %1399 = vmatpush2.msra.mxu0 0.0
    %1400 = vmatprep.subr.mxu0 0.0
    %1401 = vmatpush2.msra.mxu0 0.0
    %1402 = vmatprep.subr.mxu0 0.0
    %1403 = vmatpush2.msra.mxu0 0.0
    %1404 = vmatprep.subr.mxu0 0.0
    %1405 = vmatpush2.msra.mxu0 0.0
    %1406 = vmatprep.subr.mxu0 0.0
    %1407 = vmatpush2.msra.mxu0 0.0
    %1408 = vmatprep.mubr.f32.mxu0 0.0
    %1409 = vmatmul.mubr.f32.gmra.mxu0 %v478
    %v1410 = vpop.f32.mrf.mxu0
    %v1411 = vadd.f32 0.0, %v1410
    %v1412 = vpop.f32.mrf.mxu0
    %v1413 = vadd.f32 0.0, %v1412
    %1414 = vmatprep.mubr.f32.mxu0 0.0
    %1415 = vmatmul.mubr.f32.gmra.mxu0 %v481
    %v1416 = vpop.f32.mrf.mxu0
    %v1417 = vadd.f32 0.0, %v1416
    %v1418 = vpop.f32.mrf.mxu0
    %v1419 = vadd.f32 0.0, %v1418
    %1420 = vmatprep.mubr.f32.mxu0 0.0
    %1421 = vmatmul.mubr.f32.gmra.mxu0 %v484
    %v1422 = vpop.f32.mrf.mxu0
    %v1423 = vadd.f32 0.0, %v1422
    %v1424 = vpop.f32.mrf.mxu0
    %v1425 = vadd.f32 0.0, %v1424
    %1426 = vmatprep.mubr.f32.mxu0 0.0
    %1427 = vmatmul.mubr.f32.gmra.mxu0 %v487
    %v1428 = vpop.f32.mrf.mxu0
    %v1429 = vadd.f32 0.0, %v1428
    %v1430 = vpop.f32.mrf.mxu0
    %v1431 = vadd.f32 0.0, %v1430
    %1432 = vmatprep.mubr.f32.mxu0 0.0
    %1433 = vmatmul.mubr.f32.gmra.mxu0 %v490
    %v1434 = vpop.f32.mrf.mxu0
    %v1435 = vadd.f32 0.0, %v1434
    %v1436 = vpop.f32.mrf.mxu0
    %v1437 = vadd.f32 0.0, %v1436
    %1438 = vmatprep.mubr.f32.mxu0 0.0
    %1439 = vmatmul.mubr.f32.gmra.mxu0 %v493
    %v1440 = vpop.f32.mrf.mxu0
    %v1441 = vadd.f32 0.0, %v1440
    %v1442 = vpop.f32.mrf.mxu0
    %v1443 = vadd.f32 0.0, %v1442
    %1444 = vmatprep.mubr.f32.mxu0 0.0
    %1445 = vmatmul.mubr.f32.gmra.mxu0 %v496
    %v1446 = vpop.f32.mrf.mxu0
    %v1447 = vadd.f32 0.0, %v1446
    %v1448 = vpop.f32.mrf.mxu0
    %v1449 = vadd.f32 0.0, %v1448
    %1450 = vmatprep.mubr.f32.mxu0 0.0
    %1451 = vmatmul.mubr.f32.gmra.mxu0 %v499
    %v1452 = vpop.f32.mrf.mxu0
    %v1453 = vadd.f32 0.0, %v1452
    %v1454 = vpop.f32.mrf.mxu0
    %v1455 = vadd.f32 0.0, %v1454
    %1456 = vmatprep.mubr.f32.mxu0 0.0
    %1457 = vmatmul.mubr.f32.gmra.mxu0 %v502
    %v1458 = vpop.f32.mrf.mxu0
    %v1459 = vadd.f32 0.0, %v1458
    %v1460 = vpop.f32.mrf.mxu0
    %v1461 = vadd.f32 0.0, %v1460
    %1462 = vmatprep.mubr.f32.mxu0 0.0
    %1463 = vmatmul.mubr.f32.gmra.mxu0 %v505
    %v1464 = vpop.f32.mrf.mxu0
    %v1465 = vadd.f32 0.0, %v1464
    %v1466 = vpop.f32.mrf.mxu0
    %v1467 = vadd.f32 0.0, %v1466
    %1468 = vmatprep.mubr.f32.mxu0 0.0
    %1469 = vmatmul.mubr.f32.gmra.mxu0 %v508
    %v1470 = vpop.f32.mrf.mxu0
    %v1471 = vadd.f32 0.0, %v1470
    %v1472 = vpop.f32.mrf.mxu0
    %v1473 = vadd.f32 0.0, %v1472
    %1474 = vmatprep.mubr.f32.mxu0 0.0
    %1475 = vmatmul.mubr.f32.gmra.mxu0 %v511
    %v1476 = vpop.f32.mrf.mxu0
    %v1477 = vadd.f32 0.0, %v1476
    %v1478 = vpop.f32.mrf.mxu0
    %v1479 = vadd.f32 0.0, %v1478
    %1480 = vmatprep.mubr.f32.mxu0 0.0
    %1481 = vmatmul.mubr.f32.gmra.mxu0 %v514
    %v1482 = vpop.f32.mrf.mxu0
    %v1483 = vadd.f32 0.0, %v1482
    %v1484 = vpop.f32.mrf.mxu0
    %v1485 = vadd.f32 0.0, %v1484
    %1486 = vmatprep.mubr.f32.mxu0 0.0
    %1487 = vmatmul.mubr.f32.gmra.mxu0 %v517
    %v1488 = vpop.f32.mrf.mxu0
    %v1489 = vadd.f32 0.0, %v1488
    %v1490 = vpop.f32.mrf.mxu0
    %v1491 = vadd.f32 0.0, %v1490
    %1492 = vmatprep.mubr.f32.mxu0 0.0
    %1493 = vmatmul.mubr.f32.gmra.mxu0 %v520
    %v1494 = vpop.f32.mrf.mxu0
    %v1495 = vadd.f32 0.0, %v1494
    %v1496 = vpop.f32.mrf.mxu0
    %v1497 = vadd.f32 0.0, %v1496
    %1498 = vmatprep.mubr.f32.mxu0 0.0
    %1499 = vmatmul.mubr.f32.gmra.mxu0 %v523
    %v1500 = vpop.f32.mrf.mxu0
    %v1501 = vadd.f32 0.0, %v1500
    %v1502 = vpop.f32.mrf.mxu0
    %v1503 = vadd.f32 0.0, %v1502
    %1504 = vmatprep.mubr.f32.mxu0 0.0
    %1505 = vmatmul.mubr.f32.gmra.mxu0 %v526
    %v1506 = vpop.f32.mrf.mxu0
    %v1507 = vadd.f32 0.0, %v1506
    %v1508 = vpop.f32.mrf.mxu0
    %v1509 = vadd.f32 0.0, %v1508
    %1510 = vmatprep.mubr.f32.mxu0 0.0
    %1511 = vmatmul.mubr.f32.gmra.mxu0 %v529
    %v1512 = vpop.f32.mrf.mxu0
    %v1513 = vadd.f32 0.0, %v1512
    %v1514 = vpop.f32.mrf.mxu0
    %v1515 = vadd.f32 0.0, %v1514
    %1516 = vmatprep.mubr.f32.mxu0 0.0
    %1517 = vmatmul.mubr.f32.gmra.mxu0 %v532
    %v1518 = vpop.f32.mrf.mxu0
    %v1519 = vadd.f32 0.0, %v1518
    %v1520 = vpop.f32.mrf.mxu0
    %v1521 = vadd.f32 0.0, %v1520
    %1522 = vmatprep.mubr.f32.mxu0 0.0
    %1523 = vmatmul.mubr.f32.gmra.mxu0 %v535
    %v1524 = vpop.f32.mrf.mxu0
    %v1525 = vadd.f32 0.0, %v1524
    %v1526 = vpop.f32.mrf.mxu0
    %v1527 = vadd.f32 0.0, %v1526
    %1528 = vmatprep.mubr.f32.mxu0 0.0
    %1529 = vmatmul.mubr.f32.gmra.mxu0 %v538
    %v1530 = vpop.f32.mrf.mxu0
    %v1531 = vadd.f32 0.0, %v1530
    %v1532 = vpop.f32.mrf.mxu0
    %v1533 = vadd.f32 0.0, %v1532
    %1534 = vmatprep.mubr.f32.mxu0 0.0
    %1535 = vmatmul.mubr.f32.gmra.mxu0 %v541
    %v1536 = vpop.f32.mrf.mxu0
    %v1537 = vadd.f32 0.0, %v1536
    %v1538 = vpop.f32.mrf.mxu0
    %v1539 = vadd.f32 0.0, %v1538
    %1540 = vmatprep.mubr.f32.mxu0 0.0
    %1541 = vmatmul.mubr.f32.gmra.mxu0 %v544
    %v1542 = vpop.f32.mrf.mxu0
    %v1543 = vadd.f32 0.0, %v1542
    %v1544 = vpop.f32.mrf.mxu0
    %v1545 = vadd.f32 0.0, %v1544
    %1546 = vmatprep.mubr.f32.mxu0 0.0
    %1547 = vmatmul.mubr.f32.gmra.mxu0 %v547
    %v1548 = vpop.f32.mrf.mxu0
    %v1549 = vadd.f32 0.0, %v1548
    %v1550 = vpop.f32.mrf.mxu0
    %v1551 = vadd.f32 0.0, %v1550
    %1552 = vmatprep.mubr.f32.mxu0 0.0
    %1553 = vmatmul.mubr.f32.gmra.mxu0 %v550
    %v1554 = vpop.f32.mrf.mxu0
    %v1555 = vadd.f32 0.0, %v1554
    %v1556 = vpop.f32.mrf.mxu0
    %v1557 = vadd.f32 0.0, %v1556
    %1558 = vmatprep.mubr.f32.mxu0 0.0
    %1559 = vmatmul.mubr.f32.gmra.mxu0 %v553
    %v1560 = vpop.f32.mrf.mxu0
    %v1561 = vadd.f32 0.0, %v1560
    %v1562 = vpop.f32.mrf.mxu0
    %v1563 = vadd.f32 0.0, %v1562
    %1564 = vmatprep.mubr.f32.mxu0 0.0
    %1565 = vmatmul.mubr.f32.gmra.mxu0 %v556
    %v1566 = vpop.f32.mrf.mxu0
    %v1567 = vadd.f32 0.0, %v1566
    %v1568 = vpop.f32.mrf.mxu0
    %v1569 = vadd.f32 0.0, %v1568
    %1570 = vmatprep.mubr.f32.mxu0 0.0
    %1571 = vmatmul.mubr.f32.gmra.mxu0 %v559
    %v1572 = vpop.f32.mrf.mxu0
    %v1573 = vadd.f32 0.0, %v1572
    %v1574 = vpop.f32.mrf.mxu0
    %v1575 = vadd.f32 0.0, %v1574
    %1576 = vmatprep.mubr.f32.mxu0 0.0
    %1577 = vmatmul.mubr.f32.gmra.mxu0 %v562
    %v1578 = vpop.f32.mrf.mxu0
    %v1579 = vadd.f32 0.0, %v1578
    %v1580 = vpop.f32.mrf.mxu0
    %v1581 = vadd.f32 0.0, %v1580
    %1582 = vmatprep.mubr.f32.mxu0 0.0
    %1583 = vmatmul.mubr.f32.gmra.mxu0 %v565
    %v1584 = vpop.f32.mrf.mxu0
    %v1585 = vadd.f32 0.0, %v1584
    %v1586 = vpop.f32.mrf.mxu0
    %v1587 = vadd.f32 0.0, %v1586
    %1588 = vmatprep.mubr.f32.mxu0 0.0
    %1589 = vmatmul.mubr.f32.gmra.mxu0 %v568
    %v1590 = vpop.f32.mrf.mxu0
    %v1591 = vadd.f32 0.0, %v1590
    %v1592 = vpop.f32.mrf.mxu0
    %v1593 = vadd.f32 0.0, %v1592
    %1594 = vmatprep.mubr.f32.mxu0 0.0
    %1595 = vmatmul.mubr.f32.gmra.mxu0 %v571
    %v1596 = vpop.f32.mrf.mxu0
    %v1597 = vadd.f32 0.0, %v1596
    %v1598 = vpop.f32.mrf.mxu0
    %v1599 = vadd.f32 0.0, %v1598
    %1600 = vdwg.mxu0
    %v1601 = vadd.s32 %v78, 16
    %v1602 = vadd.s32 %v78, 24
    %v1603 = vadd.s32 %v78, 32
    %v1604 = vadd.s32 %v78, 40
    %v1605 = vadd.s32 %v78, 48
    %v1606 = vadd.s32 %v78, 56
    %v1607 = vadd.s32 %v78, 64
    %v1608 = vadd.s32 %v78, 72
    %v1609 = vadd.s32 %v78, 80
    %v1610 = vadd.s32 %v78, 88
    %v1611 = vadd.s32 %v78, 96
    %v1612 = vadd.s32 %v78, 104
    %v1613 = vadd.s32 %v78, 112
    %v1614 = vadd.s32 %v78, 120
    %v1615 = vadd.s32 %v78, 128
    %v1616 = vadd.s32 %v78, 136
    %v1617 = vadd.s32 %v78, 144
    %v1618 = vadd.s32 %v78, 152
    %v1619 = vadd.s32 %v78, 160
    %v1620 = vadd.s32 %v78, 168
    %v1621 = vadd.s32 %v78, 176
    %v1622 = vadd.s32 %v78, 184
    %v1623 = vadd.s32 %v78, 192
    %v1624 = vadd.s32 %v78, 200
    %v1625 = vadd.s32 %v78, 208
    %v1626 = vadd.s32 %v78, 216
    %v1627 = vadd.s32 %v78, 224
    %v1628 = vadd.s32 %v78, 232
    %v1629 = vadd.s32 %v78, 240
    %v1630 = vadd.s32 %v78, 248
    %s1631 = smul.u32 0, 256
    %v1632 = vstv %s1631
    %v1633 = vadd.s32 %v78, %v1632
    %v1634 = vadd.s32 %v79, %v1632
    %v1635 = vadd.s32 %v1601, %v1632
    %v1636 = vadd.s32 %v1602, %v1632
    %v1637 = vadd.s32 %v1603, %v1632
    %v1638 = vadd.s32 %v1604, %v1632
    %v1639 = vadd.s32 %v1605, %v1632
    %v1640 = vadd.s32 %v1606, %v1632
    %v1641 = vadd.s32 %v1607, %v1632
    %v1642 = vadd.s32 %v1608, %v1632
    %v1643 = vadd.s32 %v1609, %v1632
    %v1644 = vadd.s32 %v1610, %v1632
    %v1645 = vadd.s32 %v1611, %v1632
    %v1646 = vadd.s32 %v1612, %v1632
    %v1647 = vadd.s32 %v1613, %v1632
    %v1648 = vadd.s32 %v1614, %v1632
    %v1649 = vadd.s32 %v1615, %v1632
    %v1650 = vadd.s32 %v1616, %v1632
    %v1651 = vadd.s32 %v1617, %v1632
    %v1652 = vadd.s32 %v1618, %v1632
    %v1653 = vadd.s32 %v1619, %v1632
    %v1654 = vadd.s32 %v1620, %v1632
    %v1655 = vadd.s32 %v1621, %v1632
    %v1656 = vadd.s32 %v1622, %v1632
    %v1657 = vadd.s32 %v1623, %v1632
    %v1658 = vadd.s32 %v1624, %v1632
    %v1659 = vadd.s32 %v1625, %v1632
    %v1660 = vadd.s32 %v1626, %v1632
    %v1661 = vadd.s32 %v1627, %v1632
    %v1662 = vadd.s32 %v1628, %v1632
    %v1663 = vadd.s32 %v1629, %v1632
    %v1664 = vadd.s32 %v1630, %v1632
    %v1665 = vmul.u32 %v73, 16
    %v1666 = vmul.u32 %v74, 16
    %v1667 = vmul.u32 %v75, 16
    %v1668 = vmul.u32 %v76, 16
    %v1669 = vrot.slane %v73, 5
    %v1670 = vrot.slane %v1669, 4
    %v1671 = vrot.slane %v74, 5
    %v1672 = vrot.slane %v1671, 4
    %v1673 = vrot.slane %v75, 5
    %v1674 = vrot.slane %v1673, 4
    %v1675 = vrot.slane %v76, 5
    %v1676 = vrot.slane %v1675, 4
    %v1677 = vadd.s32 %v1665, %v1670
    %v1678 = vadd.s32 %v1666, %v1672
    %v1679 = vadd.s32 %v1667, %v1674
    %v1680 = vadd.s32 %v1668, %v1676
    %v1681 = vrot.slane %v65, 5
    %v1682 = vrot.slane %v1681, 4
    %v1683 = vrot.slane %v66, 5
    %v1684 = vrot.slane %v1683, 4
    %v1685 = vrot.slane %v67, 5
    %v1686 = vrot.slane %v1685, 4
    %v1687 = vrot.slane %v68, 5
    %v1688 = vrot.slane %v1687, 4
    %v1693 = vmul.f32 %v65, %v1682
    %v1694 = vmul.f32 %v66, %v1684
    %v1695 = vmul.f32 %v67, %v1686
    %v1696 = vmul.f32 %v68, %v1688
    %v1697 = vrot.slane %v69, 5
    %v1698 = vrot.slane %v1697, 4
    %v1699 = vrot.slane %v70, 5
    %v1700 = vrot.slane %v1699, 4
    %v1701 = vrot.slane %v71, 5
    %v1702 = vrot.slane %v1701, 4
    %v1703 = vrot.slane %v72, 5
    %v1704 = vrot.slane %v1703, 4
    %v1709 = vmul.f32 %v65, %v1698
    %v1710 = vmul.f32 %v66, %v1700
    %v1711 = vmul.f32 %v67, %v1702
    %v1712 = vmul.f32 %v68, %v1704
    %v1713 = vmul.f32 %v69, %v1682
    %v1714 = vmul.f32 %v70, %v1684
    %v1715 = vmul.f32 %v71, %v1686
    %v1716 = vmul.f32 %v72, %v1688
    %v1717 = vmul.f32 %v69, %v1698
    %v1718 = vmul.f32 %v70, %v1700
    %v1719 = vmul.f32 %v71, %v1702
    %v1720 = vmul.f32 %v72, %v1704
    %v1721 = vlaneseq
    %v1722 = vshrl.u32 %v1721, 7
    %v1723 = vsub.s32 1, %v1722
    %v1724 = vrot.slane %v1677, %v1723
    %v1725 = vlaneseq
    %v1726 = vshrl.u32 %v1725, 7
    %v1727 = vsub.s32 5, %v1726
    %v1728 = vrot.slane %v1677, %v1727
    %v1729 = vlaneseq
    %v1730 = vshrl.u32 %v1729, 7
    %v1731 = vsub.s32 1, %v1730
    %v1732 = vrot.slane %v1678, %v1731
    %v1733 = vlaneseq
    %v1734 = vshrl.u32 %v1733, 7
    %v1735 = vsub.s32 5, %v1734
    %v1736 = vrot.slane %v1678, %v1735
    %v1737 = vlaneseq
    %v1738 = vshrl.u32 %v1737, 7
    %v1739 = vsub.s32 1, %v1738
    %v1740 = vrot.slane %v1679, %v1739
    %v1741 = vlaneseq
    %v1742 = vshrl.u32 %v1741, 7
    %v1743 = vsub.s32 5, %v1742
    %v1744 = vrot.slane %v1679, %v1743
    %v1745 = vlaneseq
    %v1746 = vshrl.u32 %v1745, 7
    %v1747 = vsub.s32 1, %v1746
    %v1748 = vrot.slane %v1680, %v1747
    %v1749 = vlaneseq
    %v1750 = vshrl.u32 %v1749, 7
    %v1751 = vsub.s32 5, %v1750
    %v1752 = vrot.slane %v1680, %v1751
    %v1753 = vlaneseq
    %v1754 = vshrl.u32 %v1753, 7
    %v1755 = vsub.s32 1, %v1754
    %v1756 = vrot.slane %v1724, %v1755
    %v1757 = vlaneseq
    %v1758 = vshrl.u32 %v1757, 7
    %v1759 = vsub.s32 1, %v1758
    %v1760 = vrot.slane %v1728, %v1759
    %v1761 = vlaneseq
    %v1762 = vshrl.u32 %v1761, 7
    %v1763 = vsub.s32 1, %v1762
    %v1764 = vrot.slane %v1732, %v1763
    %v1765 = vlaneseq
    %v1766 = vshrl.u32 %v1765, 7
    %v1767 = vsub.s32 1, %v1766
    %v1768 = vrot.slane %v1736, %v1767
    %v1769 = vlaneseq
    %v1770 = vshrl.u32 %v1769, 7
    %v1771 = vsub.s32 1, %v1770
    %v1772 = vrot.slane %v1740, %v1771
    %v1773 = vlaneseq
    %v1774 = vshrl.u32 %v1773, 7
    %v1775 = vsub.s32 1, %v1774
    %v1776 = vrot.slane %v1744, %v1775
    %v1777 = vlaneseq
    %v1778 = vshrl.u32 %v1777, 7
    %v1779 = vsub.s32 1, %v1778
    %v1780 = vrot.slane %v1748, %v1779
    %v1781 = vlaneseq
    %v1782 = vshrl.u32 %v1781, 7
    %v1783 = vsub.s32 1, %v1782
    %v1784 = vrot.slane %v1752, %v1783
    %vm1785 = vcmp.eq.s32.totalorder %v1633, %v1756
    %vm1786 = vcmp.eq.s32.totalorder %v1633, %v1760
    %vm1787 = vcmp.eq.s32.totalorder %v1633, %v1764
    %vm1788 = vcmp.eq.s32.totalorder %v1633, %v1768
    %vm1789 = vcmp.eq.s32.totalorder %v1633, %v1772
    %vm1790 = vcmp.eq.s32.totalorder %v1633, %v1776
    %vm1791 = vcmp.eq.s32.totalorder %v1633, %v1780
    %vm1792 = vcmp.eq.s32.totalorder %v1633, %v1784
    %vm1793 = vcmp.eq.s32.totalorder %v1634, %v1756
    %vm1794 = vcmp.eq.s32.totalorder %v1634, %v1760
    %vm1795 = vcmp.eq.s32.totalorder %v1634, %v1764
    %vm1796 = vcmp.eq.s32.totalorder %v1634, %v1768
    %vm1797 = vcmp.eq.s32.totalorder %v1634, %v1772
    %vm1798 = vcmp.eq.s32.totalorder %v1634, %v1776
    %vm1799 = vcmp.eq.s32.totalorder %v1634, %v1780
    %vm1800 = vcmp.eq.s32.totalorder %v1634, %v1784
    %vm1801 = vcmp.eq.s32.totalorder %v1635, %v1756
    %vm1802 = vcmp.eq.s32.totalorder %v1635, %v1760
    %vm1803 = vcmp.eq.s32.totalorder %v1635, %v1764
    %vm1804 = vcmp.eq.s32.totalorder %v1635, %v1768
    %vm1805 = vcmp.eq.s32.totalorder %v1635, %v1772
    %vm1806 = vcmp.eq.s32.totalorder %v1635, %v1776
    %vm1807 = vcmp.eq.s32.totalorder %v1635, %v1780
    %vm1808 = vcmp.eq.s32.totalorder %v1635, %v1784
    %vm1809 = vcmp.eq.s32.totalorder %v1636, %v1756
    %vm1810 = vcmp.eq.s32.totalorder %v1636, %v1760
    %vm1811 = vcmp.eq.s32.totalorder %v1636, %v1764
    %vm1812 = vcmp.eq.s32.totalorder %v1636, %v1768
    %vm1813 = vcmp.eq.s32.totalorder %v1636, %v1772
    %vm1814 = vcmp.eq.s32.totalorder %v1636, %v1776
    %vm1815 = vcmp.eq.s32.totalorder %v1636, %v1780
    %vm1816 = vcmp.eq.s32.totalorder %v1636, %v1784
    %vm1817 = vcmp.eq.s32.totalorder %v1637, %v1756
    %vm1818 = vcmp.eq.s32.totalorder %v1637, %v1760
    %vm1819 = vcmp.eq.s32.totalorder %v1637, %v1764
    %vm1820 = vcmp.eq.s32.totalorder %v1637, %v1768
    %vm1821 = vcmp.eq.s32.totalorder %v1637, %v1772
    %vm1822 = vcmp.eq.s32.totalorder %v1637, %v1776
    %vm1823 = vcmp.eq.s32.totalorder %v1637, %v1780
    %vm1824 = vcmp.eq.s32.totalorder %v1637, %v1784
    %vm1825 = vcmp.eq.s32.totalorder %v1638, %v1756
    %vm1826 = vcmp.eq.s32.totalorder %v1638, %v1760
    %vm1827 = vcmp.eq.s32.totalorder %v1638, %v1764
    %vm1828 = vcmp.eq.s32.totalorder %v1638, %v1768
    %vm1829 = vcmp.eq.s32.totalorder %v1638, %v1772
    %vm1830 = vcmp.eq.s32.totalorder %v1638, %v1776
    %vm1831 = vcmp.eq.s32.totalorder %v1638, %v1780
    %vm1832 = vcmp.eq.s32.totalorder %v1638, %v1784
    %vm1833 = vcmp.eq.s32.totalorder %v1639, %v1756
    %vm1834 = vcmp.eq.s32.totalorder %v1639, %v1760
    %vm1835 = vcmp.eq.s32.totalorder %v1639, %v1764
    %vm1836 = vcmp.eq.s32.totalorder %v1639, %v1768
    %vm1837 = vcmp.eq.s32.totalorder %v1639, %v1772
    %vm1838 = vcmp.eq.s32.totalorder %v1639, %v1776
    %vm1839 = vcmp.eq.s32.totalorder %v1639, %v1780
    %vm1840 = vcmp.eq.s32.totalorder %v1639, %v1784
    %vm1841 = vcmp.eq.s32.totalorder %v1640, %v1756
    %vm1842 = vcmp.eq.s32.totalorder %v1640, %v1760
    %vm1843 = vcmp.eq.s32.totalorder %v1640, %v1764
    %vm1844 = vcmp.eq.s32.totalorder %v1640, %v1768
    %vm1845 = vcmp.eq.s32.totalorder %v1640, %v1772
    %vm1846 = vcmp.eq.s32.totalorder %v1640, %v1776
    %vm1847 = vcmp.eq.s32.totalorder %v1640, %v1780
    %vm1848 = vcmp.eq.s32.totalorder %v1640, %v1784
    %vm1849 = vcmp.eq.s32.totalorder %v1641, %v1756
    %vm1850 = vcmp.eq.s32.totalorder %v1641, %v1760
    %vm1851 = vcmp.eq.s32.totalorder %v1641, %v1764
    %vm1852 = vcmp.eq.s32.totalorder %v1641, %v1768
    %vm1853 = vcmp.eq.s32.totalorder %v1641, %v1772
    %vm1854 = vcmp.eq.s32.totalorder %v1641, %v1776
    %vm1855 = vcmp.eq.s32.totalorder %v1641, %v1780
    %vm1856 = vcmp.eq.s32.totalorder %v1641, %v1784
    %vm1857 = vcmp.eq.s32.totalorder %v1642, %v1756
    %vm1858 = vcmp.eq.s32.totalorder %v1642, %v1760
    %vm1859 = vcmp.eq.s32.totalorder %v1642, %v1764
    %vm1860 = vcmp.eq.s32.totalorder %v1642, %v1768
    %vm1861 = vcmp.eq.s32.totalorder %v1642, %v1772
    %vm1862 = vcmp.eq.s32.totalorder %v1642, %v1776
    %vm1863 = vcmp.eq.s32.totalorder %v1642, %v1780
    %vm1864 = vcmp.eq.s32.totalorder %v1642, %v1784
    %vm1865 = vcmp.eq.s32.totalorder %v1643, %v1756
    %vm1866 = vcmp.eq.s32.totalorder %v1643, %v1760
    %vm1867 = vcmp.eq.s32.totalorder %v1643, %v1764
    %vm1868 = vcmp.eq.s32.totalorder %v1643, %v1768
    %vm1869 = vcmp.eq.s32.totalorder %v1643, %v1772
    %vm1870 = vcmp.eq.s32.totalorder %v1643, %v1776
    %vm1871 = vcmp.eq.s32.totalorder %v1643, %v1780
    %vm1872 = vcmp.eq.s32.totalorder %v1643, %v1784
    %vm1873 = vcmp.eq.s32.totalorder %v1644, %v1756
    %vm1874 = vcmp.eq.s32.totalorder %v1644, %v1760
    %vm1875 = vcmp.eq.s32.totalorder %v1644, %v1764
    %vm1876 = vcmp.eq.s32.totalorder %v1644, %v1768
    %vm1877 = vcmp.eq.s32.totalorder %v1644, %v1772
    %vm1878 = vcmp.eq.s32.totalorder %v1644, %v1776
    %vm1879 = vcmp.eq.s32.totalorder %v1644, %v1780
    %vm1880 = vcmp.eq.s32.totalorder %v1644, %v1784
    %vm1881 = vcmp.eq.s32.totalorder %v1645, %v1756
    %vm1882 = vcmp.eq.s32.totalorder %v1645, %v1760
    %vm1883 = vcmp.eq.s32.totalorder %v1645, %v1764
    %vm1884 = vcmp.eq.s32.totalorder %v1645, %v1768
    %vm1885 = vcmp.eq.s32.totalorder %v1645, %v1772
    %vm1886 = vcmp.eq.s32.totalorder %v1645, %v1776
    %vm1887 = vcmp.eq.s32.totalorder %v1645, %v1780
    %vm1888 = vcmp.eq.s32.totalorder %v1645, %v1784
    %vm1889 = vcmp.eq.s32.totalorder %v1646, %v1756
    %vm1890 = vcmp.eq.s32.totalorder %v1646, %v1760
    %vm1891 = vcmp.eq.s32.totalorder %v1646, %v1764
    %vm1892 = vcmp.eq.s32.totalorder %v1646, %v1768
    %vm1893 = vcmp.eq.s32.totalorder %v1646, %v1772
    %vm1894 = vcmp.eq.s32.totalorder %v1646, %v1776
    %vm1895 = vcmp.eq.s32.totalorder %v1646, %v1780
    %vm1896 = vcmp.eq.s32.totalorder %v1646, %v1784
    %vm1897 = vcmp.eq.s32.totalorder %v1647, %v1756
    %vm1898 = vcmp.eq.s32.totalorder %v1647, %v1760
    %vm1899 = vcmp.eq.s32.totalorder %v1647, %v1764
    %vm1900 = vcmp.eq.s32.totalorder %v1647, %v1768
    %vm1901 = vcmp.eq.s32.totalorder %v1647, %v1772
    %vm1902 = vcmp.eq.s32.totalorder %v1647, %v1776
    %vm1903 = vcmp.eq.s32.totalorder %v1647, %v1780
    %vm1904 = vcmp.eq.s32.totalorder %v1647, %v1784
    %vm1905 = vcmp.eq.s32.totalorder %v1648, %v1756
    %vm1906 = vcmp.eq.s32.totalorder %v1648, %v1760
    %vm1907 = vcmp.eq.s32.totalorder %v1648, %v1764
    %vm1908 = vcmp.eq.s32.totalorder %v1648, %v1768
    %vm1909 = vcmp.eq.s32.totalorder %v1648, %v1772
    %vm1910 = vcmp.eq.s32.totalorder %v1648, %v1776
    %vm1911 = vcmp.eq.s32.totalorder %v1648, %v1780
    %vm1912 = vcmp.eq.s32.totalorder %v1648, %v1784
    %vm1913 = vcmp.eq.s32.totalorder %v1649, %v1756
    %vm1914 = vcmp.eq.s32.totalorder %v1649, %v1760
    %vm1915 = vcmp.eq.s32.totalorder %v1649, %v1764
    %vm1916 = vcmp.eq.s32.totalorder %v1649, %v1768
    %vm1917 = vcmp.eq.s32.totalorder %v1649, %v1772
    %vm1918 = vcmp.eq.s32.totalorder %v1649, %v1776
    %vm1919 = vcmp.eq.s32.totalorder %v1649, %v1780
    %vm1920 = vcmp.eq.s32.totalorder %v1649, %v1784
    %vm1921 = vcmp.eq.s32.totalorder %v1650, %v1756
    %vm1922 = vcmp.eq.s32.totalorder %v1650, %v1760
    %vm1923 = vcmp.eq.s32.totalorder %v1650, %v1764
    %vm1924 = vcmp.eq.s32.totalorder %v1650, %v1768
    %vm1925 = vcmp.eq.s32.totalorder %v1650, %v1772
    %vm1926 = vcmp.eq.s32.totalorder %v1650, %v1776
    %vm1927 = vcmp.eq.s32.totalorder %v1650, %v1780
    %vm1928 = vcmp.eq.s32.totalorder %v1650, %v1784
    %vm1929 = vcmp.eq.s32.totalorder %v1651, %v1756
    %vm1930 = vcmp.eq.s32.totalorder %v1651, %v1760
    %vm1931 = vcmp.eq.s32.totalorder %v1651, %v1764
    %vm1932 = vcmp.eq.s32.totalorder %v1651, %v1768
    %vm1933 = vcmp.eq.s32.totalorder %v1651, %v1772
    %vm1934 = vcmp.eq.s32.totalorder %v1651, %v1776
    %vm1935 = vcmp.eq.s32.totalorder %v1651, %v1780
    %vm1936 = vcmp.eq.s32.totalorder %v1651, %v1784
    %vm1937 = vcmp.eq.s32.totalorder %v1652, %v1756
    %vm1938 = vcmp.eq.s32.totalorder %v1652, %v1760
    %vm1939 = vcmp.eq.s32.totalorder %v1652, %v1764
    %vm1940 = vcmp.eq.s32.totalorder %v1652, %v1768
    %vm1941 = vcmp.eq.s32.totalorder %v1652, %v1772
    %vm1942 = vcmp.eq.s32.totalorder %v1652, %v1776
    %vm1943 = vcmp.eq.s32.totalorder %v1652, %v1780
    %vm1944 = vcmp.eq.s32.totalorder %v1652, %v1784
    %vm1945 = vcmp.eq.s32.totalorder %v1653, %v1756
    %vm1946 = vcmp.eq.s32.totalorder %v1653, %v1760
    %vm1947 = vcmp.eq.s32.totalorder %v1653, %v1764
    %vm1948 = vcmp.eq.s32.totalorder %v1653, %v1768
    %vm1949 = vcmp.eq.s32.totalorder %v1653, %v1772
    %vm1950 = vcmp.eq.s32.totalorder %v1653, %v1776
    %vm1951 = vcmp.eq.s32.totalorder %v1653, %v1780
    %vm1952 = vcmp.eq.s32.totalorder %v1653, %v1784
    %vm1953 = vcmp.eq.s32.totalorder %v1654, %v1756
    %vm1954 = vcmp.eq.s32.totalorder %v1654, %v1760
    %vm1955 = vcmp.eq.s32.totalorder %v1654, %v1764
    %vm1956 = vcmp.eq.s32.totalorder %v1654, %v1768
    %vm1957 = vcmp.eq.s32.totalorder %v1654, %v1772
    %vm1958 = vcmp.eq.s32.totalorder %v1654, %v1776
    %vm1959 = vcmp.eq.s32.totalorder %v1654, %v1780
    %vm1960 = vcmp.eq.s32.totalorder %v1654, %v1784
    %vm1961 = vcmp.eq.s32.totalorder %v1655, %v1756
    %vm1962 = vcmp.eq.s32.totalorder %v1655, %v1760
    %vm1963 = vcmp.eq.s32.totalorder %v1655, %v1764
    %vm1964 = vcmp.eq.s32.totalorder %v1655, %v1768
    %vm1965 = vcmp.eq.s32.totalorder %v1655, %v1772
    %vm1966 = vcmp.eq.s32.totalorder %v1655, %v1776
    %vm1967 = vcmp.eq.s32.totalorder %v1655, %v1780
    %vm1968 = vcmp.eq.s32.totalorder %v1655, %v1784
    %vm1969 = vcmp.eq.s32.totalorder %v1656, %v1756
    %vm1970 = vcmp.eq.s32.totalorder %v1656, %v1760
    %vm1971 = vcmp.eq.s32.totalorder %v1656, %v1764
    %vm1972 = vcmp.eq.s32.totalorder %v1656, %v1768
    %vm1973 = vcmp.eq.s32.totalorder %v1656, %v1772
    %vm1974 = vcmp.eq.s32.totalorder %v1656, %v1776
    %vm1975 = vcmp.eq.s32.totalorder %v1656, %v1780
    %vm1976 = vcmp.eq.s32.totalorder %v1656, %v1784
    %vm1977 = vcmp.eq.s32.totalorder %v1657, %v1756
    %vm1978 = vcmp.eq.s32.totalorder %v1657, %v1760
    %vm1979 = vcmp.eq.s32.totalorder %v1657, %v1764
    %vm1980 = vcmp.eq.s32.totalorder %v1657, %v1768
    %vm1981 = vcmp.eq.s32.totalorder %v1657, %v1772
    %vm1982 = vcmp.eq.s32.totalorder %v1657, %v1776
    %vm1983 = vcmp.eq.s32.totalorder %v1657, %v1780
    %vm1984 = vcmp.eq.s32.totalorder %v1657, %v1784
    %vm1985 = vcmp.eq.s32.totalorder %v1658, %v1756
    %vm1986 = vcmp.eq.s32.totalorder %v1658, %v1760
    %vm1987 = vcmp.eq.s32.totalorder %v1658, %v1764
    %vm1988 = vcmp.eq.s32.totalorder %v1658, %v1768
    %vm1989 = vcmp.eq.s32.totalorder %v1658, %v1772
    %vm1990 = vcmp.eq.s32.totalorder %v1658, %v1776
    %vm1991 = vcmp.eq.s32.totalorder %v1658, %v1780
    %vm1992 = vcmp.eq.s32.totalorder %v1658, %v1784
    %vm1993 = vcmp.eq.s32.totalorder %v1659, %v1756
    %vm1994 = vcmp.eq.s32.totalorder %v1659, %v1760
    %vm1995 = vcmp.eq.s32.totalorder %v1659, %v1764
    %vm1996 = vcmp.eq.s32.totalorder %v1659, %v1768
    %vm1997 = vcmp.eq.s32.totalorder %v1659, %v1772
    %vm1998 = vcmp.eq.s32.totalorder %v1659, %v1776
    %vm1999 = vcmp.eq.s32.totalorder %v1659, %v1780
    %vm2000 = vcmp.eq.s32.totalorder %v1659, %v1784
    %vm2001 = vcmp.eq.s32.totalorder %v1660, %v1756
    %vm2002 = vcmp.eq.s32.totalorder %v1660, %v1760
    %vm2003 = vcmp.eq.s32.totalorder %v1660, %v1764
    %vm2004 = vcmp.eq.s32.totalorder %v1660, %v1768
    %vm2005 = vcmp.eq.s32.totalorder %v1660, %v1772
    %vm2006 = vcmp.eq.s32.totalorder %v1660, %v1776
    %vm2007 = vcmp.eq.s32.totalorder %v1660, %v1780
    %vm2008 = vcmp.eq.s32.totalorder %v1660, %v1784
    %vm2009 = vcmp.eq.s32.totalorder %v1661, %v1756
    %vm2010 = vcmp.eq.s32.totalorder %v1661, %v1760
    %vm2011 = vcmp.eq.s32.totalorder %v1661, %v1764
    %vm2012 = vcmp.eq.s32.totalorder %v1661, %v1768
    %vm2013 = vcmp.eq.s32.totalorder %v1661, %v1772
    %vm2014 = vcmp.eq.s32.totalorder %v1661, %v1776
    %vm2015 = vcmp.eq.s32.totalorder %v1661, %v1780
    %vm2016 = vcmp.eq.s32.totalorder %v1661, %v1784
    %vm2017 = vcmp.eq.s32.totalorder %v1662, %v1756
    %vm2018 = vcmp.eq.s32.totalorder %v1662, %v1760
    %vm2019 = vcmp.eq.s32.totalorder %v1662, %v1764
    %vm2020 = vcmp.eq.s32.totalorder %v1662, %v1768
    %vm2021 = vcmp.eq.s32.totalorder %v1662, %v1772
    %vm2022 = vcmp.eq.s32.totalorder %v1662, %v1776
    %vm2023 = vcmp.eq.s32.totalorder %v1662, %v1780
    %vm2024 = vcmp.eq.s32.totalorder %v1662, %v1784
    %vm2025 = vcmp.eq.s32.totalorder %v1663, %v1756
    %vm2026 = vcmp.eq.s32.totalorder %v1663, %v1760
    %vm2027 = vcmp.eq.s32.totalorder %v1663, %v1764
    %vm2028 = vcmp.eq.s32.totalorder %v1663, %v1768
    %vm2029 = vcmp.eq.s32.totalorder %v1663, %v1772
    %vm2030 = vcmp.eq.s32.totalorder %v1663, %v1776
    %vm2031 = vcmp.eq.s32.totalorder %v1663, %v1780
    %vm2032 = vcmp.eq.s32.totalorder %v1663, %v1784
    %vm2033 = vcmp.eq.s32.totalorder %v1664, %v1756
    %vm2034 = vcmp.eq.s32.totalorder %v1664, %v1760
    %vm2035 = vcmp.eq.s32.totalorder %v1664, %v1764
    %vm2036 = vcmp.eq.s32.totalorder %v1664, %v1768
    %vm2037 = vcmp.eq.s32.totalorder %v1664, %v1772
    %vm2038 = vcmp.eq.s32.totalorder %v1664, %v1776
    %vm2039 = vcmp.eq.s32.totalorder %v1664, %v1780
    %vm2040 = vcmp.eq.s32.totalorder %v1664, %v1784
    %v2045 = vlaneseq
    %v2046 = vshrl.u32 %v2045, 7
    %v2047 = vsub.s32 1, %v2046
    %v2048 = vrot.slane %v1693, %v2047
    %v2049 = vlaneseq
    %v2050 = vshrl.u32 %v2049, 7
    %v2051 = vsub.s32 5, %v2050
    %v2052 = vrot.slane %v1693, %v2051
    %v2053 = vlaneseq
    %v2054 = vshrl.u32 %v2053, 7
    %v2055 = vsub.s32 1, %v2054
    %v2056 = vrot.slane %v1694, %v2055
    %v2057 = vlaneseq
    %v2058 = vshrl.u32 %v2057, 7
    %v2059 = vsub.s32 5, %v2058
    %v2060 = vrot.slane %v1694, %v2059
    %v2061 = vlaneseq
    %v2062 = vshrl.u32 %v2061, 7
    %v2063 = vsub.s32 1, %v2062
    %v2064 = vrot.slane %v1695, %v2063
    %v2065 = vlaneseq
    %v2066 = vshrl.u32 %v2065, 7
    %v2067 = vsub.s32 5, %v2066
    %v2068 = vrot.slane %v1695, %v2067
    %v2069 = vlaneseq
    %v2070 = vshrl.u32 %v2069, 7
    %v2071 = vsub.s32 1, %v2070
    %v2072 = vrot.slane %v1696, %v2071
    %v2073 = vlaneseq
    %v2074 = vshrl.u32 %v2073, 7
    %v2075 = vsub.s32 5, %v2074
    %v2076 = vrot.slane %v1696, %v2075
    %v2085 = vlaneseq
    %v2086 = vshrl.u32 %v2085, 7
    %v2087 = vsub.s32 1, %v2086
    %v2088 = vrot.slane %v2048, %v2087
    %v2089 = vlaneseq
    %v2090 = vshrl.u32 %v2089, 7
    %v2091 = vsub.s32 1, %v2090
    %v2092 = vrot.slane %v2052, %v2091
    %v2093 = vlaneseq
    %v2094 = vshrl.u32 %v2093, 7
    %v2095 = vsub.s32 1, %v2094
    %v2096 = vrot.slane %v2056, %v2095
    %v2097 = vlaneseq
    %v2098 = vshrl.u32 %v2097, 7
    %v2099 = vsub.s32 1, %v2098
    %v2100 = vrot.slane %v2060, %v2099
    %v2101 = vlaneseq
    %v2102 = vshrl.u32 %v2101, 7
    %v2103 = vsub.s32 1, %v2102
    %v2104 = vrot.slane %v2064, %v2103
    %v2105 = vlaneseq
    %v2106 = vshrl.u32 %v2105, 7
    %v2107 = vsub.s32 1, %v2106
    %v2108 = vrot.slane %v2068, %v2107
    %v2109 = vlaneseq
    %v2110 = vshrl.u32 %v2109, 7
    %v2111 = vsub.s32 1, %v2110
    %v2112 = vrot.slane %v2072, %v2111
    %v2113 = vlaneseq
    %v2114 = vshrl.u32 %v2113, 7
    %v2115 = vsub.s32 1, %v2114
    %v2116 = vrot.slane %v2076, %v2115
    %v2117 = vsel %vm1785, %v2088, 0.0
    %v2118 = vsel %vm1786, %v2092, 0.0
    %v2119 = vsel %vm1787, %v2096, 0.0
    %v2120 = vsel %vm1788, %v2100, 0.0
    %v2121 = vsel %vm1789, %v2104, 0.0
    %v2122 = vsel %vm1790, %v2108, 0.0
    %v2123 = vsel %vm1791, %v2112, 0.0
    %v2124 = vsel %vm1792, %v2116, 0.0
    %v2125 = vsel %vm1793, %v2088, 0.0
    %v2126 = vsel %vm1794, %v2092, 0.0
    %v2127 = vsel %vm1795, %v2096, 0.0
    %v2128 = vsel %vm1796, %v2100, 0.0
    %v2129 = vsel %vm1797, %v2104, 0.0
    %v2130 = vsel %vm1798, %v2108, 0.0
    %v2131 = vsel %vm1799, %v2112, 0.0
    %v2132 = vsel %vm1800, %v2116, 0.0
    %v2133 = vsel %vm1801, %v2088, 0.0
    %v2134 = vsel %vm1802, %v2092, 0.0
    %v2135 = vsel %vm1803, %v2096, 0.0
    %v2136 = vsel %vm1804, %v2100, 0.0
    %v2137 = vsel %vm1805, %v2104, 0.0
    %v2138 = vsel %vm1806, %v2108, 0.0
    %v2139 = vsel %vm1807, %v2112, 0.0
    %v2140 = vsel %vm1808, %v2116, 0.0
    %v2141 = vsel %vm1809, %v2088, 0.0
    %v2142 = vsel %vm1810, %v2092, 0.0
    %v2143 = vsel %vm1811, %v2096, 0.0
    %v2144 = vsel %vm1812, %v2100, 0.0
    %v2145 = vsel %vm1813, %v2104, 0.0
    %v2146 = vsel %vm1814, %v2108, 0.0
    %v2147 = vsel %vm1815, %v2112, 0.0
    %v2148 = vsel %vm1816, %v2116, 0.0
    %v2149 = vsel %vm1817, %v2088, 0.0
    %v2150 = vsel %vm1818, %v2092, 0.0
    %v2151 = vsel %vm1819, %v2096, 0.0
    %v2152 = vsel %vm1820, %v2100, 0.0
    %v2153 = vsel %vm1821, %v2104, 0.0
    %v2154 = vsel %vm1822, %v2108, 0.0
    %v2155 = vsel %vm1823, %v2112, 0.0
    %v2156 = vsel %vm1824, %v2116, 0.0
    %v2157 = vsel %vm1825, %v2088, 0.0
    %v2158 = vsel %vm1826, %v2092, 0.0
    %v2159 = vsel %vm1827, %v2096, 0.0
    %v2160 = vsel %vm1828, %v2100, 0.0
    %v2161 = vsel %vm1829, %v2104, 0.0
    %v2162 = vsel %vm1830, %v2108, 0.0
    %v2163 = vsel %vm1831, %v2112, 0.0
    %v2164 = vsel %vm1832, %v2116, 0.0
    %v2165 = vsel %vm1833, %v2088, 0.0
    %v2166 = vsel %vm1834, %v2092, 0.0
    %v2167 = vsel %vm1835, %v2096, 0.0
    %v2168 = vsel %vm1836, %v2100, 0.0
    %v2169 = vsel %vm1837, %v2104, 0.0
    %v2170 = vsel %vm1838, %v2108, 0.0
    %v2171 = vsel %vm1839, %v2112, 0.0
    %v2172 = vsel %vm1840, %v2116, 0.0
    %v2173 = vsel %vm1841, %v2088, 0.0
    %v2174 = vsel %vm1842, %v2092, 0.0
    %v2175 = vsel %vm1843, %v2096, 0.0
    %v2176 = vsel %vm1844, %v2100, 0.0
    %v2177 = vsel %vm1845, %v2104, 0.0
    %v2178 = vsel %vm1846, %v2108, 0.0
    %v2179 = vsel %vm1847, %v2112, 0.0
    %v2180 = vsel %vm1848, %v2116, 0.0
    %v2181 = vsel %vm1849, %v2088, 0.0
    %v2182 = vsel %vm1850, %v2092, 0.0
    %v2183 = vsel %vm1851, %v2096, 0.0
    %v2184 = vsel %vm1852, %v2100, 0.0
    %v2185 = vsel %vm1853, %v2104, 0.0
    %v2186 = vsel %vm1854, %v2108, 0.0
    %v2187 = vsel %vm1855, %v2112, 0.0
    %v2188 = vsel %vm1856, %v2116, 0.0
    %v2189 = vsel %vm1857, %v2088, 0.0
    %v2190 = vsel %vm1858, %v2092, 0.0
    %v2191 = vsel %vm1859, %v2096, 0.0
    %v2192 = vsel %vm1860, %v2100, 0.0
    %v2193 = vsel %vm1861, %v2104, 0.0
    %v2194 = vsel %vm1862, %v2108, 0.0
    %v2195 = vsel %vm1863, %v2112, 0.0
    %v2196 = vsel %vm1864, %v2116, 0.0
    %v2197 = vsel %vm1865, %v2088, 0.0
    %v2198 = vsel %vm1866, %v2092, 0.0
    %v2199 = vsel %vm1867, %v2096, 0.0
    %v2200 = vsel %vm1868, %v2100, 0.0
    %v2201 = vsel %vm1869, %v2104, 0.0
    %v2202 = vsel %vm1870, %v2108, 0.0
    %v2203 = vsel %vm1871, %v2112, 0.0
    %v2204 = vsel %vm1872, %v2116, 0.0
    %v2205 = vsel %vm1873, %v2088, 0.0
    %v2206 = vsel %vm1874, %v2092, 0.0
    %v2207 = vsel %vm1875, %v2096, 0.0
    %v2208 = vsel %vm1876, %v2100, 0.0
    %v2209 = vsel %vm1877, %v2104, 0.0
    %v2210 = vsel %vm1878, %v2108, 0.0
    %v2211 = vsel %vm1879, %v2112, 0.0
    %v2212 = vsel %vm1880, %v2116, 0.0
    %v2213 = vsel %vm1881, %v2088, 0.0
    %v2214 = vsel %vm1882, %v2092, 0.0
    %v2215 = vsel %vm1883, %v2096, 0.0
    %v2216 = vsel %vm1884, %v2100, 0.0
    %v2217 = vsel %vm1885, %v2104, 0.0
    %v2218 = vsel %vm1886, %v2108, 0.0
    %v2219 = vsel %vm1887, %v2112, 0.0
    %v2220 = vsel %vm1888, %v2116, 0.0
    %v2221 = vsel %vm1889, %v2088, 0.0
    %v2222 = vsel %vm1890, %v2092, 0.0
    %v2223 = vsel %vm1891, %v2096, 0.0
    %v2224 = vsel %vm1892, %v2100, 0.0
    %v2225 = vsel %vm1893, %v2104, 0.0
    %v2226 = vsel %vm1894, %v2108, 0.0
    %v2227 = vsel %vm1895, %v2112, 0.0
    %v2228 = vsel %vm1896, %v2116, 0.0
    %v2229 = vsel %vm1897, %v2088, 0.0
    %v2230 = vsel %vm1898, %v2092, 0.0
    %v2231 = vsel %vm1899, %v2096, 0.0
    %v2232 = vsel %vm1900, %v2100, 0.0
    %v2233 = vsel %vm1901, %v2104, 0.0
    %v2234 = vsel %vm1902, %v2108, 0.0
    %v2235 = vsel %vm1903, %v2112, 0.0
    %v2236 = vsel %vm1904, %v2116, 0.0
    %v2237 = vsel %vm1905, %v2088, 0.0
    %v2238 = vsel %vm1906, %v2092, 0.0
    %v2239 = vsel %vm1907, %v2096, 0.0
    %v2240 = vsel %vm1908, %v2100, 0.0
    %v2241 = vsel %vm1909, %v2104, 0.0
    %v2242 = vsel %vm1910, %v2108, 0.0
    %v2243 = vsel %vm1911, %v2112, 0.0
    %v2244 = vsel %vm1912, %v2116, 0.0
    %v2245 = vsel %vm1913, %v2088, 0.0
    %v2246 = vsel %vm1914, %v2092, 0.0
    %v2247 = vsel %vm1915, %v2096, 0.0
    %v2248 = vsel %vm1916, %v2100, 0.0
    %v2249 = vsel %vm1917, %v2104, 0.0
    %v2250 = vsel %vm1918, %v2108, 0.0
    %v2251 = vsel %vm1919, %v2112, 0.0
    %v2252 = vsel %vm1920, %v2116, 0.0
    %v2253 = vsel %vm1921, %v2088, 0.0
    %v2254 = vsel %vm1922, %v2092, 0.0
    %v2255 = vsel %vm1923, %v2096, 0.0
    %v2256 = vsel %vm1924, %v2100, 0.0
    %v2257 = vsel %vm1925, %v2104, 0.0
    %v2258 = vsel %vm1926, %v2108, 0.0
    %v2259 = vsel %vm1927, %v2112, 0.0
    %v2260 = vsel %vm1928, %v2116, 0.0
    %v2261 = vsel %vm1929, %v2088, 0.0
    %v2262 = vsel %vm1930, %v2092, 0.0
    %v2263 = vsel %vm1931, %v2096, 0.0
    %v2264 = vsel %vm1932, %v2100, 0.0
    %v2265 = vsel %vm1933, %v2104, 0.0
    %v2266 = vsel %vm1934, %v2108, 0.0
    %v2267 = vsel %vm1935, %v2112, 0.0
    %v2268 = vsel %vm1936, %v2116, 0.0
    %v2269 = vsel %vm1937, %v2088, 0.0
    %v2270 = vsel %vm1938, %v2092, 0.0
    %v2271 = vsel %vm1939, %v2096, 0.0
    %v2272 = vsel %vm1940, %v2100, 0.0
    %v2273 = vsel %vm1941, %v2104, 0.0
    %v2274 = vsel %vm1942, %v2108, 0.0
    %v2275 = vsel %vm1943, %v2112, 0.0
    %v2276 = vsel %vm1944, %v2116, 0.0
    %v2277 = vsel %vm1945, %v2088, 0.0
    %v2278 = vsel %vm1946, %v2092, 0.0
    %v2279 = vsel %vm1947, %v2096, 0.0
    %v2280 = vsel %vm1948, %v2100, 0.0
    %v2281 = vsel %vm1949, %v2104, 0.0
    %v2282 = vsel %vm1950, %v2108, 0.0
    %v2283 = vsel %vm1951, %v2112, 0.0
    %v2284 = vsel %vm1952, %v2116, 0.0
    %v2285 = vsel %vm1953, %v2088, 0.0
    %v2286 = vsel %vm1954, %v2092, 0.0
    %v2287 = vsel %vm1955, %v2096, 0.0
    %v2288 = vsel %vm1956, %v2100, 0.0
    %v2289 = vsel %vm1957, %v2104, 0.0
    %v2290 = vsel %vm1958, %v2108, 0.0
    %v2291 = vsel %vm1959, %v2112, 0.0
    %v2292 = vsel %vm1960, %v2116, 0.0
    %v2293 = vsel %vm1961, %v2088, 0.0
    %v2294 = vsel %vm1962, %v2092, 0.0
    %v2295 = vsel %vm1963, %v2096, 0.0
    %v2296 = vsel %vm1964, %v2100, 0.0
    %v2297 = vsel %vm1965, %v2104, 0.0
    %v2298 = vsel %vm1966, %v2108, 0.0
    %v2299 = vsel %vm1967, %v2112, 0.0
    %v2300 = vsel %vm1968, %v2116, 0.0
    %v2301 = vsel %vm1969, %v2088, 0.0
    %v2302 = vsel %vm1970, %v2092, 0.0
    %v2303 = vsel %vm1971, %v2096, 0.0
    %v2304 = vsel %vm1972, %v2100, 0.0
    %v2305 = vsel %vm1973, %v2104, 0.0
    %v2306 = vsel %vm1974, %v2108, 0.0
    %v2307 = vsel %vm1975, %v2112, 0.0
    %v2308 = vsel %vm1976, %v2116, 0.0
    %v2309 = vsel %vm1977, %v2088, 0.0
    %v2310 = vsel %vm1978, %v2092, 0.0
    %v2311 = vsel %vm1979, %v2096, 0.0
    %v2312 = vsel %vm1980, %v2100, 0.0
    %v2313 = vsel %vm1981, %v2104, 0.0
    %v2314 = vsel %vm1982, %v2108, 0.0
    %v2315 = vsel %vm1983, %v2112, 0.0
    %v2316 = vsel %vm1984, %v2116, 0.0
    %v2317 = vsel %vm1985, %v2088, 0.0
    %v2318 = vsel %vm1986, %v2092, 0.0
    %v2319 = vsel %vm1987, %v2096, 0.0
    %v2320 = vsel %vm1988, %v2100, 0.0
    %v2321 = vsel %vm1989, %v2104, 0.0
    %v2322 = vsel %vm1990, %v2108, 0.0
    %v2323 = vsel %vm1991, %v2112, 0.0
    %v2324 = vsel %vm1992, %v2116, 0.0
    %v2325 = vsel %vm1993, %v2088, 0.0
    %v2326 = vsel %vm1994, %v2092, 0.0
    %v2327 = vsel %vm1995, %v2096, 0.0
    %v2328 = vsel %vm1996, %v2100, 0.0
    %v2329 = vsel %vm1997, %v2104, 0.0
    %v2330 = vsel %vm1998, %v2108, 0.0
    %v2331 = vsel %vm1999, %v2112, 0.0
    %v2332 = vsel %vm2000, %v2116, 0.0
    %v2333 = vsel %vm2001, %v2088, 0.0
    %v2334 = vsel %vm2002, %v2092, 0.0
    %v2335 = vsel %vm2003, %v2096, 0.0
    %v2336 = vsel %vm2004, %v2100, 0.0
    %v2337 = vsel %vm2005, %v2104, 0.0
    %v2338 = vsel %vm2006, %v2108, 0.0
    %v2339 = vsel %vm2007, %v2112, 0.0
    %v2340 = vsel %vm2008, %v2116, 0.0
    %v2341 = vsel %vm2009, %v2088, 0.0
    %v2342 = vsel %vm2010, %v2092, 0.0
    %v2343 = vsel %vm2011, %v2096, 0.0
    %v2344 = vsel %vm2012, %v2100, 0.0
    %v2345 = vsel %vm2013, %v2104, 0.0
    %v2346 = vsel %vm2014, %v2108, 0.0
    %v2347 = vsel %vm2015, %v2112, 0.0
    %v2348 = vsel %vm2016, %v2116, 0.0
    %v2349 = vsel %vm2017, %v2088, 0.0
    %v2350 = vsel %vm2018, %v2092, 0.0
    %v2351 = vsel %vm2019, %v2096, 0.0
    %v2352 = vsel %vm2020, %v2100, 0.0
    %v2353 = vsel %vm2021, %v2104, 0.0
    %v2354 = vsel %vm2022, %v2108, 0.0
    %v2355 = vsel %vm2023, %v2112, 0.0
    %v2356 = vsel %vm2024, %v2116, 0.0
    %v2357 = vsel %vm2025, %v2088, 0.0
    %v2358 = vsel %vm2026, %v2092, 0.0
    %v2359 = vsel %vm2027, %v2096, 0.0
    %v2360 = vsel %vm2028, %v2100, 0.0
    %v2361 = vsel %vm2029, %v2104, 0.0
    %v2362 = vsel %vm2030, %v2108, 0.0
    %v2363 = vsel %vm2031, %v2112, 0.0
    %v2364 = vsel %vm2032, %v2116, 0.0
    %v2365 = vsel %vm2033, %v2088, 0.0
    %v2366 = vsel %vm2034, %v2092, 0.0
    %v2367 = vsel %vm2035, %v2096, 0.0
    %v2368 = vsel %vm2036, %v2100, 0.0
    %v2369 = vsel %vm2037, %v2104, 0.0
    %v2370 = vsel %vm2038, %v2108, 0.0
    %v2371 = vsel %vm2039, %v2112, 0.0
    %v2372 = vsel %vm2040, %v2116, 0.0
    %v2373 = vadd.s32 %v1677, 1
    %v2374 = vadd.s32 %v1678, 1
    %v2375 = vadd.s32 %v1679, 1
    %v2376 = vadd.s32 %v1680, 1
    %v2377 = vlaneseq
    %v2378 = vshrl.u32 %v2377, 7
    %v2379 = vsub.s32 1, %v2378
    %v2380 = vrot.slane %v2373, %v2379
    %v2381 = vlaneseq
    %v2382 = vshrl.u32 %v2381, 7
    %v2383 = vsub.s32 5, %v2382
    %v2384 = vrot.slane %v2373, %v2383
    %v2385 = vlaneseq
    %v2386 = vshrl.u32 %v2385, 7
    %v2387 = vsub.s32 1, %v2386
    %v2388 = vrot.slane %v2374, %v2387
    %v2389 = vlaneseq
    %v2390 = vshrl.u32 %v2389, 7
    %v2391 = vsub.s32 5, %v2390
    %v2392 = vrot.slane %v2374, %v2391
    %v2393 = vlaneseq
    %v2394 = vshrl.u32 %v2393, 7
    %v2395 = vsub.s32 1, %v2394
    %v2396 = vrot.slane %v2375, %v2395
    %v2397 = vlaneseq
    %v2398 = vshrl.u32 %v2397, 7
    %v2399 = vsub.s32 5, %v2398
    %v2400 = vrot.slane %v2375, %v2399
    %v2401 = vlaneseq
    %v2402 = vshrl.u32 %v2401, 7
    %v2403 = vsub.s32 1, %v2402
    %v2404 = vrot.slane %v2376, %v2403
    %v2405 = vlaneseq
    %v2406 = vshrl.u32 %v2405, 7
    %v2407 = vsub.s32 5, %v2406
    %v2408 = vrot.slane %v2376, %v2407
    %v2409 = vlaneseq
    %v2410 = vshrl.u32 %v2409, 7
    %v2411 = vsub.s32 1, %v2410
    %v2412 = vrot.slane %v2380, %v2411
    %v2413 = vlaneseq
    %v2414 = vshrl.u32 %v2413, 7
    %v2415 = vsub.s32 1, %v2414
    %v2416 = vrot.slane %v2384, %v2415
    %v2417 = vlaneseq
    %v2418 = vshrl.u32 %v2417, 7
    %v2419 = vsub.s32 1, %v2418
    %v2420 = vrot.slane %v2388, %v2419
    %v2421 = vlaneseq
    %v2422 = vshrl.u32 %v2421, 7
    %v2423 = vsub.s32 1, %v2422
    %v2424 = vrot.slane %v2392, %v2423
    %v2425 = vlaneseq
    %v2426 = vshrl.u32 %v2425, 7
    %v2427 = vsub.s32 1, %v2426
    %v2428 = vrot.slane %v2396, %v2427
    %v2429 = vlaneseq
    %v2430 = vshrl.u32 %v2429, 7
    %v2431 = vsub.s32 1, %v2430
    %v2432 = vrot.slane %v2400, %v2431
    %v2433 = vlaneseq
    %v2434 = vshrl.u32 %v2433, 7
    %v2435 = vsub.s32 1, %v2434
    %v2436 = vrot.slane %v2404, %v2435
    %v2437 = vlaneseq
    %v2438 = vshrl.u32 %v2437, 7
    %v2439 = vsub.s32 1, %v2438
    %v2440 = vrot.slane %v2408, %v2439
    %vm2441 = vcmp.eq.s32.totalorder %v1633, %v2412
    %vm2442 = vcmp.eq.s32.totalorder %v1633, %v2416
    %vm2443 = vcmp.eq.s32.totalorder %v1633, %v2420
    %vm2444 = vcmp.eq.s32.totalorder %v1633, %v2424
    %vm2445 = vcmp.eq.s32.totalorder %v1633, %v2428
    %vm2446 = vcmp.eq.s32.totalorder %v1633, %v2432
    %vm2447 = vcmp.eq.s32.totalorder %v1633, %v2436
    %vm2448 = vcmp.eq.s32.totalorder %v1633, %v2440
    %vm2449 = vcmp.eq.s32.totalorder %v1634, %v2412
    %vm2450 = vcmp.eq.s32.totalorder %v1634, %v2416
    %vm2451 = vcmp.eq.s32.totalorder %v1634, %v2420
    %vm2452 = vcmp.eq.s32.totalorder %v1634, %v2424
    %vm2453 = vcmp.eq.s32.totalorder %v1634, %v2428
    %vm2454 = vcmp.eq.s32.totalorder %v1634, %v2432
    %vm2455 = vcmp.eq.s32.totalorder %v1634, %v2436
    %vm2456 = vcmp.eq.s32.totalorder %v1634, %v2440
    %vm2457 = vcmp.eq.s32.totalorder %v1635, %v2412
    %vm2458 = vcmp.eq.s32.totalorder %v1635, %v2416
    %vm2459 = vcmp.eq.s32.totalorder %v1635, %v2420
    %vm2460 = vcmp.eq.s32.totalorder %v1635, %v2424
    %vm2461 = vcmp.eq.s32.totalorder %v1635, %v2428
    %vm2462 = vcmp.eq.s32.totalorder %v1635, %v2432
    %vm2463 = vcmp.eq.s32.totalorder %v1635, %v2436
    %vm2464 = vcmp.eq.s32.totalorder %v1635, %v2440
    %vm2465 = vcmp.eq.s32.totalorder %v1636, %v2412
    %vm2466 = vcmp.eq.s32.totalorder %v1636, %v2416
    %vm2467 = vcmp.eq.s32.totalorder %v1636, %v2420
    %vm2468 = vcmp.eq.s32.totalorder %v1636, %v2424
    %vm2469 = vcmp.eq.s32.totalorder %v1636, %v2428
    %vm2470 = vcmp.eq.s32.totalorder %v1636, %v2432
    %vm2471 = vcmp.eq.s32.totalorder %v1636, %v2436
    %vm2472 = vcmp.eq.s32.totalorder %v1636, %v2440
    %vm2473 = vcmp.eq.s32.totalorder %v1637, %v2412
    %vm2474 = vcmp.eq.s32.totalorder %v1637, %v2416
    %vm2475 = vcmp.eq.s32.totalorder %v1637, %v2420
    %vm2476 = vcmp.eq.s32.totalorder %v1637, %v2424
    %vm2477 = vcmp.eq.s32.totalorder %v1637, %v2428
    %vm2478 = vcmp.eq.s32.totalorder %v1637, %v2432
    %vm2479 = vcmp.eq.s32.totalorder %v1637, %v2436
    %vm2480 = vcmp.eq.s32.totalorder %v1637, %v2440
    %vm2481 = vcmp.eq.s32.totalorder %v1638, %v2412
    %vm2482 = vcmp.eq.s32.totalorder %v1638, %v2416
    %vm2483 = vcmp.eq.s32.totalorder %v1638, %v2420
    %vm2484 = vcmp.eq.s32.totalorder %v1638, %v2424
    %vm2485 = vcmp.eq.s32.totalorder %v1638, %v2428
    %vm2486 = vcmp.eq.s32.totalorder %v1638, %v2432
    %vm2487 = vcmp.eq.s32.totalorder %v1638, %v2436
    %vm2488 = vcmp.eq.s32.totalorder %v1638, %v2440
    %vm2489 = vcmp.eq.s32.totalorder %v1639, %v2412
    %vm2490 = vcmp.eq.s32.totalorder %v1639, %v2416
    %vm2491 = vcmp.eq.s32.totalorder %v1639, %v2420
    %vm2492 = vcmp.eq.s32.totalorder %v1639, %v2424
    %vm2493 = vcmp.eq.s32.totalorder %v1639, %v2428
    %vm2494 = vcmp.eq.s32.totalorder %v1639, %v2432
    %vm2495 = vcmp.eq.s32.totalorder %v1639, %v2436
    %vm2496 = vcmp.eq.s32.totalorder %v1639, %v2440
    %vm2497 = vcmp.eq.s32.totalorder %v1640, %v2412
    %vm2498 = vcmp.eq.s32.totalorder %v1640, %v2416
    %vm2499 = vcmp.eq.s32.totalorder %v1640, %v2420
    %vm2500 = vcmp.eq.s32.totalorder %v1640, %v2424
    %vm2501 = vcmp.eq.s32.totalorder %v1640, %v2428
    %vm2502 = vcmp.eq.s32.totalorder %v1640, %v2432
    %vm2503 = vcmp.eq.s32.totalorder %v1640, %v2436
    %vm2504 = vcmp.eq.s32.totalorder %v1640, %v2440
    %vm2505 = vcmp.eq.s32.totalorder %v1641, %v2412
    %vm2506 = vcmp.eq.s32.totalorder %v1641, %v2416
    %vm2507 = vcmp.eq.s32.totalorder %v1641, %v2420
    %vm2508 = vcmp.eq.s32.totalorder %v1641, %v2424
    %vm2509 = vcmp.eq.s32.totalorder %v1641, %v2428
    %vm2510 = vcmp.eq.s32.totalorder %v1641, %v2432
    %vm2511 = vcmp.eq.s32.totalorder %v1641, %v2436
    %vm2512 = vcmp.eq.s32.totalorder %v1641, %v2440
    %vm2513 = vcmp.eq.s32.totalorder %v1642, %v2412
    %vm2514 = vcmp.eq.s32.totalorder %v1642, %v2416
    %vm2515 = vcmp.eq.s32.totalorder %v1642, %v2420
    %vm2516 = vcmp.eq.s32.totalorder %v1642, %v2424
    %vm2517 = vcmp.eq.s32.totalorder %v1642, %v2428
    %vm2518 = vcmp.eq.s32.totalorder %v1642, %v2432
    %vm2519 = vcmp.eq.s32.totalorder %v1642, %v2436
    %vm2520 = vcmp.eq.s32.totalorder %v1642, %v2440
    %vm2521 = vcmp.eq.s32.totalorder %v1643, %v2412
    %vm2522 = vcmp.eq.s32.totalorder %v1643, %v2416
    %vm2523 = vcmp.eq.s32.totalorder %v1643, %v2420
    %vm2524 = vcmp.eq.s32.totalorder %v1643, %v2424
    %vm2525 = vcmp.eq.s32.totalorder %v1643, %v2428
    %vm2526 = vcmp.eq.s32.totalorder %v1643, %v2432
    %vm2527 = vcmp.eq.s32.totalorder %v1643, %v2436
    %vm2528 = vcmp.eq.s32.totalorder %v1643, %v2440
    %vm2529 = vcmp.eq.s32.totalorder %v1644, %v2412
    %vm2530 = vcmp.eq.s32.totalorder %v1644, %v2416
    %vm2531 = vcmp.eq.s32.totalorder %v1644, %v2420
    %vm2532 = vcmp.eq.s32.totalorder %v1644, %v2424
    %vm2533 = vcmp.eq.s32.totalorder %v1644, %v2428
    %vm2534 = vcmp.eq.s32.totalorder %v1644, %v2432
    %vm2535 = vcmp.eq.s32.totalorder %v1644, %v2436
    %vm2536 = vcmp.eq.s32.totalorder %v1644, %v2440
    %vm2537 = vcmp.eq.s32.totalorder %v1645, %v2412
    %vm2538 = vcmp.eq.s32.totalorder %v1645, %v2416
    %vm2539 = vcmp.eq.s32.totalorder %v1645, %v2420
    %vm2540 = vcmp.eq.s32.totalorder %v1645, %v2424
    %vm2541 = vcmp.eq.s32.totalorder %v1645, %v2428
    %vm2542 = vcmp.eq.s32.totalorder %v1645, %v2432
    %vm2543 = vcmp.eq.s32.totalorder %v1645, %v2436
    %vm2544 = vcmp.eq.s32.totalorder %v1645, %v2440
    %vm2545 = vcmp.eq.s32.totalorder %v1646, %v2412
    %vm2546 = vcmp.eq.s32.totalorder %v1646, %v2416
    %vm2547 = vcmp.eq.s32.totalorder %v1646, %v2420
    %vm2548 = vcmp.eq.s32.totalorder %v1646, %v2424
    %vm2549 = vcmp.eq.s32.totalorder %v1646, %v2428
    %vm2550 = vcmp.eq.s32.totalorder %v1646, %v2432
    %vm2551 = vcmp.eq.s32.totalorder %v1646, %v2436
    %vm2552 = vcmp.eq.s32.totalorder %v1646, %v2440
    %vm2553 = vcmp.eq.s32.totalorder %v1647, %v2412
    %vm2554 = vcmp.eq.s32.totalorder %v1647, %v2416
    %vm2555 = vcmp.eq.s32.totalorder %v1647, %v2420
    %vm2556 = vcmp.eq.s32.totalorder %v1647, %v2424
    %vm2557 = vcmp.eq.s32.totalorder %v1647, %v2428
    %vm2558 = vcmp.eq.s32.totalorder %v1647, %v2432
    %vm2559 = vcmp.eq.s32.totalorder %v1647, %v2436
    %vm2560 = vcmp.eq.s32.totalorder %v1647, %v2440
    %vm2561 = vcmp.eq.s32.totalorder %v1648, %v2412
    %vm2562 = vcmp.eq.s32.totalorder %v1648, %v2416
    %vm2563 = vcmp.eq.s32.totalorder %v1648, %v2420
    %vm2564 = vcmp.eq.s32.totalorder %v1648, %v2424
    %vm2565 = vcmp.eq.s32.totalorder %v1648, %v2428
    %vm2566 = vcmp.eq.s32.totalorder %v1648, %v2432
    %vm2567 = vcmp.eq.s32.totalorder %v1648, %v2436
    %vm2568 = vcmp.eq.s32.totalorder %v1648, %v2440
    %vm2569 = vcmp.eq.s32.totalorder %v1649, %v2412
    %vm2570 = vcmp.eq.s32.totalorder %v1649, %v2416
    %vm2571 = vcmp.eq.s32.totalorder %v1649, %v2420
    %vm2572 = vcmp.eq.s32.totalorder %v1649, %v2424
    %vm2573 = vcmp.eq.s32.totalorder %v1649, %v2428
    %vm2574 = vcmp.eq.s32.totalorder %v1649, %v2432
    %vm2575 = vcmp.eq.s32.totalorder %v1649, %v2436
    %vm2576 = vcmp.eq.s32.totalorder %v1649, %v2440
    %vm2577 = vcmp.eq.s32.totalorder %v1650, %v2412
    %vm2578 = vcmp.eq.s32.totalorder %v1650, %v2416
    %vm2579 = vcmp.eq.s32.totalorder %v1650, %v2420
    %vm2580 = vcmp.eq.s32.totalorder %v1650, %v2424
    %vm2581 = vcmp.eq.s32.totalorder %v1650, %v2428
    %vm2582 = vcmp.eq.s32.totalorder %v1650, %v2432
    %vm2583 = vcmp.eq.s32.totalorder %v1650, %v2436
    %vm2584 = vcmp.eq.s32.totalorder %v1650, %v2440
    %vm2585 = vcmp.eq.s32.totalorder %v1651, %v2412
    %vm2586 = vcmp.eq.s32.totalorder %v1651, %v2416
    %vm2587 = vcmp.eq.s32.totalorder %v1651, %v2420
    %vm2588 = vcmp.eq.s32.totalorder %v1651, %v2424
    %vm2589 = vcmp.eq.s32.totalorder %v1651, %v2428
    %vm2590 = vcmp.eq.s32.totalorder %v1651, %v2432
    %vm2591 = vcmp.eq.s32.totalorder %v1651, %v2436
    %vm2592 = vcmp.eq.s32.totalorder %v1651, %v2440
    %vm2593 = vcmp.eq.s32.totalorder %v1652, %v2412
    %vm2594 = vcmp.eq.s32.totalorder %v1652, %v2416
    %vm2595 = vcmp.eq.s32.totalorder %v1652, %v2420
    %vm2596 = vcmp.eq.s32.totalorder %v1652, %v2424
    %vm2597 = vcmp.eq.s32.totalorder %v1652, %v2428
    %vm2598 = vcmp.eq.s32.totalorder %v1652, %v2432
    %vm2599 = vcmp.eq.s32.totalorder %v1652, %v2436
    %vm2600 = vcmp.eq.s32.totalorder %v1652, %v2440
    %vm2601 = vcmp.eq.s32.totalorder %v1653, %v2412
    %vm2602 = vcmp.eq.s32.totalorder %v1653, %v2416
    %vm2603 = vcmp.eq.s32.totalorder %v1653, %v2420
    %vm2604 = vcmp.eq.s32.totalorder %v1653, %v2424
    %vm2605 = vcmp.eq.s32.totalorder %v1653, %v2428
    %vm2606 = vcmp.eq.s32.totalorder %v1653, %v2432
    %vm2607 = vcmp.eq.s32.totalorder %v1653, %v2436
    %vm2608 = vcmp.eq.s32.totalorder %v1653, %v2440
    %vm2609 = vcmp.eq.s32.totalorder %v1654, %v2412
    %vm2610 = vcmp.eq.s32.totalorder %v1654, %v2416
    %vm2611 = vcmp.eq.s32.totalorder %v1654, %v2420
    %vm2612 = vcmp.eq.s32.totalorder %v1654, %v2424
    %vm2613 = vcmp.eq.s32.totalorder %v1654, %v2428
    %vm2614 = vcmp.eq.s32.totalorder %v1654, %v2432
    %vm2615 = vcmp.eq.s32.totalorder %v1654, %v2436
    %vm2616 = vcmp.eq.s32.totalorder %v1654, %v2440
    %vm2617 = vcmp.eq.s32.totalorder %v1655, %v2412
    %vm2618 = vcmp.eq.s32.totalorder %v1655, %v2416
    %vm2619 = vcmp.eq.s32.totalorder %v1655, %v2420
    %vm2620 = vcmp.eq.s32.totalorder %v1655, %v2424
    %vm2621 = vcmp.eq.s32.totalorder %v1655, %v2428
    %vm2622 = vcmp.eq.s32.totalorder %v1655, %v2432
    %vm2623 = vcmp.eq.s32.totalorder %v1655, %v2436
    %vm2624 = vcmp.eq.s32.totalorder %v1655, %v2440
    %vm2625 = vcmp.eq.s32.totalorder %v1656, %v2412
    %vm2626 = vcmp.eq.s32.totalorder %v1656, %v2416
    %vm2627 = vcmp.eq.s32.totalorder %v1656, %v2420
    %vm2628 = vcmp.eq.s32.totalorder %v1656, %v2424
    %vm2629 = vcmp.eq.s32.totalorder %v1656, %v2428
    %vm2630 = vcmp.eq.s32.totalorder %v1656, %v2432
    %vm2631 = vcmp.eq.s32.totalorder %v1656, %v2436
    %vm2632 = vcmp.eq.s32.totalorder %v1656, %v2440
    %vm2633 = vcmp.eq.s32.totalorder %v1657, %v2412
    %vm2634 = vcmp.eq.s32.totalorder %v1657, %v2416
    %vm2635 = vcmp.eq.s32.totalorder %v1657, %v2420
    %vm2636 = vcmp.eq.s32.totalorder %v1657, %v2424
    %vm2637 = vcmp.eq.s32.totalorder %v1657, %v2428
    %vm2638 = vcmp.eq.s32.totalorder %v1657, %v2432
    %vm2639 = vcmp.eq.s32.totalorder %v1657, %v2436
    %vm2640 = vcmp.eq.s32.totalorder %v1657, %v2440
    %vm2641 = vcmp.eq.s32.totalorder %v1658, %v2412
    %vm2642 = vcmp.eq.s32.totalorder %v1658, %v2416
    %vm2643 = vcmp.eq.s32.totalorder %v1658, %v2420
    %vm2644 = vcmp.eq.s32.totalorder %v1658, %v2424
    %vm2645 = vcmp.eq.s32.totalorder %v1658, %v2428
    %vm2646 = vcmp.eq.s32.totalorder %v1658, %v2432
    %vm2647 = vcmp.eq.s32.totalorder %v1658, %v2436
    %vm2648 = vcmp.eq.s32.totalorder %v1658, %v2440
    %vm2649 = vcmp.eq.s32.totalorder %v1659, %v2412
    %vm2650 = vcmp.eq.s32.totalorder %v1659, %v2416
    %vm2651 = vcmp.eq.s32.totalorder %v1659, %v2420
    %vm2652 = vcmp.eq.s32.totalorder %v1659, %v2424
    %vm2653 = vcmp.eq.s32.totalorder %v1659, %v2428
    %vm2654 = vcmp.eq.s32.totalorder %v1659, %v2432
    %vm2655 = vcmp.eq.s32.totalorder %v1659, %v2436
    %vm2656 = vcmp.eq.s32.totalorder %v1659, %v2440
    %vm2657 = vcmp.eq.s32.totalorder %v1660, %v2412
    %vm2658 = vcmp.eq.s32.totalorder %v1660, %v2416
    %vm2659 = vcmp.eq.s32.totalorder %v1660, %v2420
    %vm2660 = vcmp.eq.s32.totalorder %v1660, %v2424
    %vm2661 = vcmp.eq.s32.totalorder %v1660, %v2428
    %vm2662 = vcmp.eq.s32.totalorder %v1660, %v2432
    %vm2663 = vcmp.eq.s32.totalorder %v1660, %v2436
    %vm2664 = vcmp.eq.s32.totalorder %v1660, %v2440
    %vm2665 = vcmp.eq.s32.totalorder %v1661, %v2412
    %vm2666 = vcmp.eq.s32.totalorder %v1661, %v2416
    %vm2667 = vcmp.eq.s32.totalorder %v1661, %v2420
    %vm2668 = vcmp.eq.s32.totalorder %v1661, %v2424
    %vm2669 = vcmp.eq.s32.totalorder %v1661, %v2428
    %vm2670 = vcmp.eq.s32.totalorder %v1661, %v2432
    %vm2671 = vcmp.eq.s32.totalorder %v1661, %v2436
    %vm2672 = vcmp.eq.s32.totalorder %v1661, %v2440
    %vm2673 = vcmp.eq.s32.totalorder %v1662, %v2412
    %vm2674 = vcmp.eq.s32.totalorder %v1662, %v2416
    %vm2675 = vcmp.eq.s32.totalorder %v1662, %v2420
    %vm2676 = vcmp.eq.s32.totalorder %v1662, %v2424
    %vm2677 = vcmp.eq.s32.totalorder %v1662, %v2428
    %vm2678 = vcmp.eq.s32.totalorder %v1662, %v2432
    %vm2679 = vcmp.eq.s32.totalorder %v1662, %v2436
    %vm2680 = vcmp.eq.s32.totalorder %v1662, %v2440
    %vm2681 = vcmp.eq.s32.totalorder %v1663, %v2412
    %vm2682 = vcmp.eq.s32.totalorder %v1663, %v2416
    %vm2683 = vcmp.eq.s32.totalorder %v1663, %v2420
    %vm2684 = vcmp.eq.s32.totalorder %v1663, %v2424
    %vm2685 = vcmp.eq.s32.totalorder %v1663, %v2428
    %vm2686 = vcmp.eq.s32.totalorder %v1663, %v2432
    %vm2687 = vcmp.eq.s32.totalorder %v1663, %v2436
    %vm2688 = vcmp.eq.s32.totalorder %v1663, %v2440
    %vm2689 = vcmp.eq.s32.totalorder %v1664, %v2412
    %vm2690 = vcmp.eq.s32.totalorder %v1664, %v2416
    %vm2691 = vcmp.eq.s32.totalorder %v1664, %v2420
    %vm2692 = vcmp.eq.s32.totalorder %v1664, %v2424
    %vm2693 = vcmp.eq.s32.totalorder %v1664, %v2428
    %vm2694 = vcmp.eq.s32.totalorder %v1664, %v2432
    %vm2695 = vcmp.eq.s32.totalorder %v1664, %v2436
    %vm2696 = vcmp.eq.s32.totalorder %v1664, %v2440
    %v2701 = vlaneseq
    %v2702 = vshrl.u32 %v2701, 7
    %v2703 = vsub.s32 1, %v2702
    %v2704 = vrot.slane %v1709, %v2703
    %v2705 = vlaneseq
    %v2706 = vshrl.u32 %v2705, 7
    %v2707 = vsub.s32 5, %v2706
    %v2708 = vrot.slane %v1709, %v2707
    %v2709 = vlaneseq
    %v2710 = vshrl.u32 %v2709, 7
    %v2711 = vsub.s32 1, %v2710
    %v2712 = vrot.slane %v1710, %v2711
    %v2713 = vlaneseq
    %v2714 = vshrl.u32 %v2713, 7
    %v2715 = vsub.s32 5, %v2714
    %v2716 = vrot.slane %v1710, %v2715
    %v2717 = vlaneseq
    %v2718 = vshrl.u32 %v2717, 7
    %v2719 = vsub.s32 1, %v2718
    %v2720 = vrot.slane %v1711, %v2719
    %v2721 = vlaneseq
    %v2722 = vshrl.u32 %v2721, 7
    %v2723 = vsub.s32 5, %v2722
    %v2724 = vrot.slane %v1711, %v2723
    %v2725 = vlaneseq
    %v2726 = vshrl.u32 %v2725, 7
    %v2727 = vsub.s32 1, %v2726
    %v2728 = vrot.slane %v1712, %v2727
    %v2729 = vlaneseq
    %v2730 = vshrl.u32 %v2729, 7
    %v2731 = vsub.s32 5, %v2730
    %v2732 = vrot.slane %v1712, %v2731
    %v2741 = vlaneseq
    %v2742 = vshrl.u32 %v2741, 7
    %v2743 = vsub.s32 1, %v2742
    %v2744 = vrot.slane %v2704, %v2743
    %v2745 = vlaneseq
    %v2746 = vshrl.u32 %v2745, 7
    %v2747 = vsub.s32 1, %v2746
    %v2748 = vrot.slane %v2708, %v2747
    %v2749 = vlaneseq
    %v2750 = vshrl.u32 %v2749, 7
    %v2751 = vsub.s32 1, %v2750
    %v2752 = vrot.slane %v2712, %v2751
    %v2753 = vlaneseq
    %v2754 = vshrl.u32 %v2753, 7
    %v2755 = vsub.s32 1, %v2754
    %v2756 = vrot.slane %v2716, %v2755
    %v2757 = vlaneseq
    %v2758 = vshrl.u32 %v2757, 7
    %v2759 = vsub.s32 1, %v2758
    %v2760 = vrot.slane %v2720, %v2759
    %v2761 = vlaneseq
    %v2762 = vshrl.u32 %v2761, 7
    %v2763 = vsub.s32 1, %v2762
    %v2764 = vrot.slane %v2724, %v2763
    %v2765 = vlaneseq
    %v2766 = vshrl.u32 %v2765, 7
    %v2767 = vsub.s32 1, %v2766
    %v2768 = vrot.slane %v2728, %v2767
    %v2769 = vlaneseq
    %v2770 = vshrl.u32 %v2769, 7
    %v2771 = vsub.s32 1, %v2770
    %v2772 = vrot.slane %v2732, %v2771
    %v2773 = vsel %vm2441, %v2744, 0.0
    %v2774 = vsel %vm2442, %v2748, 0.0
    %v2775 = vsel %vm2443, %v2752, 0.0
    %v2776 = vsel %vm2444, %v2756, 0.0
    %v2777 = vsel %vm2445, %v2760, 0.0
    %v2778 = vsel %vm2446, %v2764, 0.0
    %v2779 = vsel %vm2447, %v2768, 0.0
    %v2780 = vsel %vm2448, %v2772, 0.0
    %v2781 = vsel %vm2449, %v2744, 0.0
    %v2782 = vsel %vm2450, %v2748, 0.0
    %v2783 = vsel %vm2451, %v2752, 0.0
    %v2784 = vsel %vm2452, %v2756, 0.0
    %v2785 = vsel %vm2453, %v2760, 0.0
    %v2786 = vsel %vm2454, %v2764, 0.0
    %v2787 = vsel %vm2455, %v2768, 0.0
    %v2788 = vsel %vm2456, %v2772, 0.0
    %v2789 = vsel %vm2457, %v2744, 0.0
    %v2790 = vsel %vm2458, %v2748, 0.0
    %v2791 = vsel %vm2459, %v2752, 0.0
    %v2792 = vsel %vm2460, %v2756, 0.0
    %v2793 = vsel %vm2461, %v2760, 0.0
    %v2794 = vsel %vm2462, %v2764, 0.0
    %v2795 = vsel %vm2463, %v2768, 0.0
    %v2796 = vsel %vm2464, %v2772, 0.0
    %v2797 = vsel %vm2465, %v2744, 0.0
    %v2798 = vsel %vm2466, %v2748, 0.0
    %v2799 = vsel %vm2467, %v2752, 0.0
    %v2800 = vsel %vm2468, %v2756, 0.0
    %v2801 = vsel %vm2469, %v2760, 0.0
    %v2802 = vsel %vm2470, %v2764, 0.0
    %v2803 = vsel %vm2471, %v2768, 0.0
    %v2804 = vsel %vm2472, %v2772, 0.0
    %v2805 = vsel %vm2473, %v2744, 0.0
    %v2806 = vsel %vm2474, %v2748, 0.0
    %v2807 = vsel %vm2475, %v2752, 0.0
    %v2808 = vsel %vm2476, %v2756, 0.0
    %v2809 = vsel %vm2477, %v2760, 0.0
    %v2810 = vsel %vm2478, %v2764, 0.0
    %v2811 = vsel %vm2479, %v2768, 0.0
    %v2812 = vsel %vm2480, %v2772, 0.0
    %v2813 = vsel %vm2481, %v2744, 0.0
    %v2814 = vsel %vm2482, %v2748, 0.0
    %v2815 = vsel %vm2483, %v2752, 0.0
    %v2816 = vsel %vm2484, %v2756, 0.0
    %v2817 = vsel %vm2485, %v2760, 0.0
    %v2818 = vsel %vm2486, %v2764, 0.0
    %v2819 = vsel %vm2487, %v2768, 0.0
    %v2820 = vsel %vm2488, %v2772, 0.0
    %v2821 = vsel %vm2489, %v2744, 0.0
    %v2822 = vsel %vm2490, %v2748, 0.0
    %v2823 = vsel %vm2491, %v2752, 0.0
    %v2824 = vsel %vm2492, %v2756, 0.0
    %v2825 = vsel %vm2493, %v2760, 0.0
    %v2826 = vsel %vm2494, %v2764, 0.0
    %v2827 = vsel %vm2495, %v2768, 0.0
    %v2828 = vsel %vm2496, %v2772, 0.0
    %v2829 = vsel %vm2497, %v2744, 0.0
    %v2830 = vsel %vm2498, %v2748, 0.0
    %v2831 = vsel %vm2499, %v2752, 0.0
    %v2832 = vsel %vm2500, %v2756, 0.0
    %v2833 = vsel %vm2501, %v2760, 0.0
    %v2834 = vsel %vm2502, %v2764, 0.0
    %v2835 = vsel %vm2503, %v2768, 0.0
    %v2836 = vsel %vm2504, %v2772, 0.0
    %v2837 = vsel %vm2505, %v2744, 0.0
    %v2838 = vsel %vm2506, %v2748, 0.0
    %v2839 = vsel %vm2507, %v2752, 0.0
    %v2840 = vsel %vm2508, %v2756, 0.0
    %v2841 = vsel %vm2509, %v2760, 0.0
    %v2842 = vsel %vm2510, %v2764, 0.0
    %v2843 = vsel %vm2511, %v2768, 0.0
    %v2844 = vsel %vm2512, %v2772, 0.0
    %v2845 = vsel %vm2513, %v2744, 0.0
    %v2846 = vsel %vm2514, %v2748, 0.0
    %v2847 = vsel %vm2515, %v2752, 0.0
    %v2848 = vsel %vm2516, %v2756, 0.0
    %v2849 = vsel %vm2517, %v2760, 0.0
    %v2850 = vsel %vm2518, %v2764, 0.0
    %v2851 = vsel %vm2519, %v2768, 0.0
    %v2852 = vsel %vm2520, %v2772, 0.0
    %v2853 = vsel %vm2521, %v2744, 0.0
    %v2854 = vsel %vm2522, %v2748, 0.0
    %v2855 = vsel %vm2523, %v2752, 0.0
    %v2856 = vsel %vm2524, %v2756, 0.0
    %v2857 = vsel %vm2525, %v2760, 0.0
    %v2858 = vsel %vm2526, %v2764, 0.0
    %v2859 = vsel %vm2527, %v2768, 0.0
    %v2860 = vsel %vm2528, %v2772, 0.0
    %v2861 = vsel %vm2529, %v2744, 0.0
    %v2862 = vsel %vm2530, %v2748, 0.0
    %v2863 = vsel %vm2531, %v2752, 0.0
    %v2864 = vsel %vm2532, %v2756, 0.0
    %v2865 = vsel %vm2533, %v2760, 0.0
    %v2866 = vsel %vm2534, %v2764, 0.0
    %v2867 = vsel %vm2535, %v2768, 0.0
    %v2868 = vsel %vm2536, %v2772, 0.0
    %v2869 = vsel %vm2537, %v2744, 0.0
    %v2870 = vsel %vm2538, %v2748, 0.0
    %v2871 = vsel %vm2539, %v2752, 0.0
    %v2872 = vsel %vm2540, %v2756, 0.0
    %v2873 = vsel %vm2541, %v2760, 0.0
    %v2874 = vsel %vm2542, %v2764, 0.0
    %v2875 = vsel %vm2543, %v2768, 0.0
    %v2876 = vsel %vm2544, %v2772, 0.0
    %v2877 = vsel %vm2545, %v2744, 0.0
    %v2878 = vsel %vm2546, %v2748, 0.0
    %v2879 = vsel %vm2547, %v2752, 0.0
    %v2880 = vsel %vm2548, %v2756, 0.0
    %v2881 = vsel %vm2549, %v2760, 0.0
    %v2882 = vsel %vm2550, %v2764, 0.0
    %v2883 = vsel %vm2551, %v2768, 0.0
    %v2884 = vsel %vm2552, %v2772, 0.0
    %v2885 = vsel %vm2553, %v2744, 0.0
    %v2886 = vsel %vm2554, %v2748, 0.0
    %v2887 = vsel %vm2555, %v2752, 0.0
    %v2888 = vsel %vm2556, %v2756, 0.0
    %v2889 = vsel %vm2557, %v2760, 0.0
    %v2890 = vsel %vm2558, %v2764, 0.0
    %v2891 = vsel %vm2559, %v2768, 0.0
    %v2892 = vsel %vm2560, %v2772, 0.0
    %v2893 = vsel %vm2561, %v2744, 0.0
    %v2894 = vsel %vm2562, %v2748, 0.0
    %v2895 = vsel %vm2563, %v2752, 0.0
    %v2896 = vsel %vm2564, %v2756, 0.0
    %v2897 = vsel %vm2565, %v2760, 0.0
    %v2898 = vsel %vm2566, %v2764, 0.0
    %v2899 = vsel %vm2567, %v2768, 0.0
    %v2900 = vsel %vm2568, %v2772, 0.0
    %v2901 = vsel %vm2569, %v2744, 0.0
    %v2902 = vsel %vm2570, %v2748, 0.0
    %v2903 = vsel %vm2571, %v2752, 0.0
    %v2904 = vsel %vm2572, %v2756, 0.0
    %v2905 = vsel %vm2573, %v2760, 0.0
    %v2906 = vsel %vm2574, %v2764, 0.0
    %v2907 = vsel %vm2575, %v2768, 0.0
    %v2908 = vsel %vm2576, %v2772, 0.0
    %v2909 = vsel %vm2577, %v2744, 0.0
    %v2910 = vsel %vm2578, %v2748, 0.0
    %v2911 = vsel %vm2579, %v2752, 0.0
    %v2912 = vsel %vm2580, %v2756, 0.0
    %v2913 = vsel %vm2581, %v2760, 0.0
    %v2914 = vsel %vm2582, %v2764, 0.0
    %v2915 = vsel %vm2583, %v2768, 0.0
    %v2916 = vsel %vm2584, %v2772, 0.0
    %v2917 = vsel %vm2585, %v2744, 0.0
    %v2918 = vsel %vm2586, %v2748, 0.0
    %v2919 = vsel %vm2587, %v2752, 0.0
    %v2920 = vsel %vm2588, %v2756, 0.0
    %v2921 = vsel %vm2589, %v2760, 0.0
    %v2922 = vsel %vm2590, %v2764, 0.0
    %v2923 = vsel %vm2591, %v2768, 0.0
    %v2924 = vsel %vm2592, %v2772, 0.0
    %v2925 = vsel %vm2593, %v2744, 0.0
    %v2926 = vsel %vm2594, %v2748, 0.0
    %v2927 = vsel %vm2595, %v2752, 0.0
    %v2928 = vsel %vm2596, %v2756, 0.0
    %v2929 = vsel %vm2597, %v2760, 0.0
    %v2930 = vsel %vm2598, %v2764, 0.0
    %v2931 = vsel %vm2599, %v2768, 0.0
    %v2932 = vsel %vm2600, %v2772, 0.0
    %v2933 = vsel %vm2601, %v2744, 0.0
    %v2934 = vsel %vm2602, %v2748, 0.0
    %v2935 = vsel %vm2603, %v2752, 0.0
    %v2936 = vsel %vm2604, %v2756, 0.0
    %v2937 = vsel %vm2605, %v2760, 0.0
    %v2938 = vsel %vm2606, %v2764, 0.0
    %v2939 = vsel %vm2607, %v2768, 0.0
    %v2940 = vsel %vm2608, %v2772, 0.0
    %v2941 = vsel %vm2609, %v2744, 0.0
    %v2942 = vsel %vm2610, %v2748, 0.0
    %v2943 = vsel %vm2611, %v2752, 0.0
    %v2944 = vsel %vm2612, %v2756, 0.0
    %v2945 = vsel %vm2613, %v2760, 0.0
    %v2946 = vsel %vm2614, %v2764, 0.0
    %v2947 = vsel %vm2615, %v2768, 0.0
    %v2948 = vsel %vm2616, %v2772, 0.0
    %v2949 = vsel %vm2617, %v2744, 0.0
    %v2950 = vsel %vm2618, %v2748, 0.0
    %v2951 = vsel %vm2619, %v2752, 0.0
    %v2952 = vsel %vm2620, %v2756, 0.0
    %v2953 = vsel %vm2621, %v2760, 0.0
    %v2954 = vsel %vm2622, %v2764, 0.0
    %v2955 = vsel %vm2623, %v2768, 0.0
    %v2956 = vsel %vm2624, %v2772, 0.0
    %v2957 = vsel %vm2625, %v2744, 0.0
    %v2958 = vsel %vm2626, %v2748, 0.0
    %v2959 = vsel %vm2627, %v2752, 0.0
    %v2960 = vsel %vm2628, %v2756, 0.0
    %v2961 = vsel %vm2629, %v2760, 0.0
    %v2962 = vsel %vm2630, %v2764, 0.0
    %v2963 = vsel %vm2631, %v2768, 0.0
    %v2964 = vsel %vm2632, %v2772, 0.0
    %v2965 = vsel %vm2633, %v2744, 0.0
    %v2966 = vsel %vm2634, %v2748, 0.0
    %v2967 = vsel %vm2635, %v2752, 0.0
    %v2968 = vsel %vm2636, %v2756, 0.0
    %v2969 = vsel %vm2637, %v2760, 0.0
    %v2970 = vsel %vm2638, %v2764, 0.0
    %v2971 = vsel %vm2639, %v2768, 0.0
    %v2972 = vsel %vm2640, %v2772, 0.0
    %v2973 = vsel %vm2641, %v2744, 0.0
    %v2974 = vsel %vm2642, %v2748, 0.0
    %v2975 = vsel %vm2643, %v2752, 0.0
    %v2976 = vsel %vm2644, %v2756, 0.0
    %v2977 = vsel %vm2645, %v2760, 0.0
    %v2978 = vsel %vm2646, %v2764, 0.0
    %v2979 = vsel %vm2647, %v2768, 0.0
    %v2980 = vsel %vm2648, %v2772, 0.0
    %v2981 = vsel %vm2649, %v2744, 0.0
    %v2982 = vsel %vm2650, %v2748, 0.0
    %v2983 = vsel %vm2651, %v2752, 0.0
    %v2984 = vsel %vm2652, %v2756, 0.0
    %v2985 = vsel %vm2653, %v2760, 0.0
    %v2986 = vsel %vm2654, %v2764, 0.0
    %v2987 = vsel %vm2655, %v2768, 0.0
    %v2988 = vsel %vm2656, %v2772, 0.0
    %v2989 = vsel %vm2657, %v2744, 0.0
    %v2990 = vsel %vm2658, %v2748, 0.0
    %v2991 = vsel %vm2659, %v2752, 0.0
    %v2992 = vsel %vm2660, %v2756, 0.0
    %v2993 = vsel %vm2661, %v2760, 0.0
    %v2994 = vsel %vm2662, %v2764, 0.0
    %v2995 = vsel %vm2663, %v2768, 0.0
    %v2996 = vsel %vm2664, %v2772, 0.0
    %v2997 = vsel %vm2665, %v2744, 0.0
    %v2998 = vsel %vm2666, %v2748, 0.0
    %v2999 = vsel %vm2667, %v2752, 0.0
    %v3000 = vsel %vm2668, %v2756, 0.0
    %v3001 = vsel %vm2669, %v2760, 0.0
    %v3002 = vsel %vm2670, %v2764, 0.0
    %v3003 = vsel %vm2671, %v2768, 0.0
    %v3004 = vsel %vm2672, %v2772, 0.0
    %v3005 = vsel %vm2673, %v2744, 0.0
    %v3006 = vsel %vm2674, %v2748, 0.0
    %v3007 = vsel %vm2675, %v2752, 0.0
    %v3008 = vsel %vm2676, %v2756, 0.0
    %v3009 = vsel %vm2677, %v2760, 0.0
    %v3010 = vsel %vm2678, %v2764, 0.0
    %v3011 = vsel %vm2679, %v2768, 0.0
    %v3012 = vsel %vm2680, %v2772, 0.0
    %v3013 = vsel %vm2681, %v2744, 0.0
    %v3014 = vsel %vm2682, %v2748, 0.0
    %v3015 = vsel %vm2683, %v2752, 0.0
    %v3016 = vsel %vm2684, %v2756, 0.0
    %v3017 = vsel %vm2685, %v2760, 0.0
    %v3018 = vsel %vm2686, %v2764, 0.0
    %v3019 = vsel %vm2687, %v2768, 0.0
    %v3020 = vsel %vm2688, %v2772, 0.0
    %v3021 = vsel %vm2689, %v2744, 0.0
    %v3022 = vsel %vm2690, %v2748, 0.0
    %v3023 = vsel %vm2691, %v2752, 0.0
    %v3024 = vsel %vm2692, %v2756, 0.0
    %v3025 = vsel %vm2693, %v2760, 0.0
    %v3026 = vsel %vm2694, %v2764, 0.0
    %v3027 = vsel %vm2695, %v2768, 0.0
    %v3028 = vsel %vm2696, %v2772, 0.0
    %v3029 = vadd.f32 %v2117, %v2773
    %v3030 = vadd.f32 %v2118, %v2774
    %v3031 = vadd.f32 %v2119, %v2775
    %v3032 = vadd.f32 %v2120, %v2776
    %v3033 = vadd.f32 %v2121, %v2777
    %v3034 = vadd.f32 %v2122, %v2778
    %v3035 = vadd.f32 %v2123, %v2779
    %v3036 = vadd.f32 %v2124, %v2780
    %v3037 = vadd.f32 %v2125, %v2781
    %v3038 = vadd.f32 %v2126, %v2782
    %v3039 = vadd.f32 %v2127, %v2783
    %v3040 = vadd.f32 %v2128, %v2784
    %v3041 = vadd.f32 %v2129, %v2785
    %v3042 = vadd.f32 %v2130, %v2786
    %v3043 = vadd.f32 %v2131, %v2787
    %v3044 = vadd.f32 %v2132, %v2788
    %v3045 = vadd.f32 %v2133, %v2789
    %v3046 = vadd.f32 %v2134, %v2790
    %v3047 = vadd.f32 %v2135, %v2791
    %v3048 = vadd.f32 %v2136, %v2792
    %v3049 = vadd.f32 %v2137, %v2793
    %v3050 = vadd.f32 %v2138, %v2794
    %v3051 = vadd.f32 %v2139, %v2795
    %v3052 = vadd.f32 %v2140, %v2796
    %v3053 = vadd.f32 %v2141, %v2797
    %v3054 = vadd.f32 %v2142, %v2798
    %v3055 = vadd.f32 %v2143, %v2799
    %v3056 = vadd.f32 %v2144, %v2800
    %v3057 = vadd.f32 %v2145, %v2801
    %v3058 = vadd.f32 %v2146, %v2802
    %v3059 = vadd.f32 %v2147, %v2803
    %v3060 = vadd.f32 %v2148, %v2804
    %v3061 = vadd.f32 %v2149, %v2805
    %v3062 = vadd.f32 %v2150, %v2806
    %v3063 = vadd.f32 %v2151, %v2807
    %v3064 = vadd.f32 %v2152, %v2808
    %v3065 = vadd.f32 %v2153, %v2809
    %v3066 = vadd.f32 %v2154, %v2810
    %v3067 = vadd.f32 %v2155, %v2811
    %v3068 = vadd.f32 %v2156, %v2812
    %v3069 = vadd.f32 %v2157, %v2813
    %v3070 = vadd.f32 %v2158, %v2814
    %v3071 = vadd.f32 %v2159, %v2815
    %v3072 = vadd.f32 %v2160, %v2816
    %v3073 = vadd.f32 %v2161, %v2817
    %v3074 = vadd.f32 %v2162, %v2818
    %v3075 = vadd.f32 %v2163, %v2819
    %v3076 = vadd.f32 %v2164, %v2820
    %v3077 = vadd.f32 %v2165, %v2821
    %v3078 = vadd.f32 %v2166, %v2822
    %v3079 = vadd.f32 %v2167, %v2823
    %v3080 = vadd.f32 %v2168, %v2824
    %v3081 = vadd.f32 %v2169, %v2825
    %v3082 = vadd.f32 %v2170, %v2826
    %v3083 = vadd.f32 %v2171, %v2827
    %v3084 = vadd.f32 %v2172, %v2828
    %v3085 = vadd.f32 %v2173, %v2829
    %v3086 = vadd.f32 %v2174, %v2830
    %v3087 = vadd.f32 %v2175, %v2831
    %v3088 = vadd.f32 %v2176, %v2832
    %v3089 = vadd.f32 %v2177, %v2833
    %v3090 = vadd.f32 %v2178, %v2834
    %v3091 = vadd.f32 %v2179, %v2835
    %v3092 = vadd.f32 %v2180, %v2836
    %v3093 = vadd.f32 %v2181, %v2837
    %v3094 = vadd.f32 %v2182, %v2838
    %v3095 = vadd.f32 %v2183, %v2839
    %v3096 = vadd.f32 %v2184, %v2840
    %v3097 = vadd.f32 %v2185, %v2841
    %v3098 = vadd.f32 %v2186, %v2842
    %v3099 = vadd.f32 %v2187, %v2843
    %v3100 = vadd.f32 %v2188, %v2844
    %v3101 = vadd.f32 %v2189, %v2845
    %v3102 = vadd.f32 %v2190, %v2846
    %v3103 = vadd.f32 %v2191, %v2847
    %v3104 = vadd.f32 %v2192, %v2848
    %v3105 = vadd.f32 %v2193, %v2849
    %v3106 = vadd.f32 %v2194, %v2850
    %v3107 = vadd.f32 %v2195, %v2851
    %v3108 = vadd.f32 %v2196, %v2852
    %v3109 = vadd.f32 %v2197, %v2853
    %v3110 = vadd.f32 %v2198, %v2854
    %v3111 = vadd.f32 %v2199, %v2855
    %v3112 = vadd.f32 %v2200, %v2856
    %v3113 = vadd.f32 %v2201, %v2857
    %v3114 = vadd.f32 %v2202, %v2858
    %v3115 = vadd.f32 %v2203, %v2859
    %v3116 = vadd.f32 %v2204, %v2860
    %v3117 = vadd.f32 %v2205, %v2861
    %v3118 = vadd.f32 %v2206, %v2862
    %v3119 = vadd.f32 %v2207, %v2863
    %v3120 = vadd.f32 %v2208, %v2864
    %v3121 = vadd.f32 %v2209, %v2865
    %v3122 = vadd.f32 %v2210, %v2866
    %v3123 = vadd.f32 %v2211, %v2867
    %v3124 = vadd.f32 %v2212, %v2868
    %v3125 = vadd.f32 %v2213, %v2869
    %v3126 = vadd.f32 %v2214, %v2870
    %v3127 = vadd.f32 %v2215, %v2871
    %v3128 = vadd.f32 %v2216, %v2872
    %v3129 = vadd.f32 %v2217, %v2873
    %v3130 = vadd.f32 %v2218, %v2874
    %v3131 = vadd.f32 %v2219, %v2875
    %v3132 = vadd.f32 %v2220, %v2876
    %v3133 = vadd.f32 %v2221, %v2877
    %v3134 = vadd.f32 %v2222, %v2878
    %v3135 = vadd.f32 %v2223, %v2879
    %v3136 = vadd.f32 %v2224, %v2880
    %v3137 = vadd.f32 %v2225, %v2881
    %v3138 = vadd.f32 %v2226, %v2882
    %v3139 = vadd.f32 %v2227, %v2883
    %v3140 = vadd.f32 %v2228, %v2884
    %v3141 = vadd.f32 %v2229, %v2885
    %v3142 = vadd.f32 %v2230, %v2886
    %v3143 = vadd.f32 %v2231, %v2887
    %v3144 = vadd.f32 %v2232, %v2888
    %v3145 = vadd.f32 %v2233, %v2889
    %v3146 = vadd.f32 %v2234, %v2890
    %v3147 = vadd.f32 %v2235, %v2891
    %v3148 = vadd.f32 %v2236, %v2892
    %v3149 = vadd.f32 %v2237, %v2893
    %v3150 = vadd.f32 %v2238, %v2894
    %v3151 = vadd.f32 %v2239, %v2895
    %v3152 = vadd.f32 %v2240, %v2896
    %v3153 = vadd.f32 %v2241, %v2897
    %v3154 = vadd.f32 %v2242, %v2898
    %v3155 = vadd.f32 %v2243, %v2899
    %v3156 = vadd.f32 %v2244, %v2900
    %v3157 = vadd.f32 %v2245, %v2901
    %v3158 = vadd.f32 %v2246, %v2902
    %v3159 = vadd.f32 %v2247, %v2903
    %v3160 = vadd.f32 %v2248, %v2904
    %v3161 = vadd.f32 %v2249, %v2905
    %v3162 = vadd.f32 %v2250, %v2906
    %v3163 = vadd.f32 %v2251, %v2907
    %v3164 = vadd.f32 %v2252, %v2908
    %v3165 = vadd.f32 %v2253, %v2909
    %v3166 = vadd.f32 %v2254, %v2910
    %v3167 = vadd.f32 %v2255, %v2911
    %v3168 = vadd.f32 %v2256, %v2912
    %v3169 = vadd.f32 %v2257, %v2913
    %v3170 = vadd.f32 %v2258, %v2914
    %v3171 = vadd.f32 %v2259, %v2915
    %v3172 = vadd.f32 %v2260, %v2916
    %v3173 = vadd.f32 %v2261, %v2917
    %v3174 = vadd.f32 %v2262, %v2918
    %v3175 = vadd.f32 %v2263, %v2919
    %v3176 = vadd.f32 %v2264, %v2920
    %v3177 = vadd.f32 %v2265, %v2921
    %v3178 = vadd.f32 %v2266, %v2922
    %v3179 = vadd.f32 %v2267, %v2923
    %v3180 = vadd.f32 %v2268, %v2924
    %v3181 = vadd.f32 %v2269, %v2925
    %v3182 = vadd.f32 %v2270, %v2926
    %v3183 = vadd.f32 %v2271, %v2927
    %v3184 = vadd.f32 %v2272, %v2928
    %v3185 = vadd.f32 %v2273, %v2929
    %v3186 = vadd.f32 %v2274, %v2930
    %v3187 = vadd.f32 %v2275, %v2931
    %v3188 = vadd.f32 %v2276, %v2932
    %v3189 = vadd.f32 %v2277, %v2933
    %v3190 = vadd.f32 %v2278, %v2934
    %v3191 = vadd.f32 %v2279, %v2935
    %v3192 = vadd.f32 %v2280, %v2936
    %v3193 = vadd.f32 %v2281, %v2937
    %v3194 = vadd.f32 %v2282, %v2938
    %v3195 = vadd.f32 %v2283, %v2939
    %v3196 = vadd.f32 %v2284, %v2940
    %v3197 = vadd.f32 %v2285, %v2941
    %v3198 = vadd.f32 %v2286, %v2942
    %v3199 = vadd.f32 %v2287, %v2943
    %v3200 = vadd.f32 %v2288, %v2944
    %v3201 = vadd.f32 %v2289, %v2945
    %v3202 = vadd.f32 %v2290, %v2946
    %v3203 = vadd.f32 %v2291, %v2947
    %v3204 = vadd.f32 %v2292, %v2948
    %v3205 = vadd.f32 %v2293, %v2949
    %v3206 = vadd.f32 %v2294, %v2950
    %v3207 = vadd.f32 %v2295, %v2951
    %v3208 = vadd.f32 %v2296, %v2952
    %v3209 = vadd.f32 %v2297, %v2953
    %v3210 = vadd.f32 %v2298, %v2954
    %v3211 = vadd.f32 %v2299, %v2955
    %v3212 = vadd.f32 %v2300, %v2956
    %v3213 = vadd.f32 %v2301, %v2957
    %v3214 = vadd.f32 %v2302, %v2958
    %v3215 = vadd.f32 %v2303, %v2959
    %v3216 = vadd.f32 %v2304, %v2960
    %v3217 = vadd.f32 %v2305, %v2961
    %v3218 = vadd.f32 %v2306, %v2962
    %v3219 = vadd.f32 %v2307, %v2963
    %v3220 = vadd.f32 %v2308, %v2964
    %v3221 = vadd.f32 %v2309, %v2965
    %v3222 = vadd.f32 %v2310, %v2966
    %v3223 = vadd.f32 %v2311, %v2967
    %v3224 = vadd.f32 %v2312, %v2968
    %v3225 = vadd.f32 %v2313, %v2969
    %v3226 = vadd.f32 %v2314, %v2970
    %v3227 = vadd.f32 %v2315, %v2971
    %v3228 = vadd.f32 %v2316, %v2972
    %v3229 = vadd.f32 %v2317, %v2973
    %v3230 = vadd.f32 %v2318, %v2974
    %v3231 = vadd.f32 %v2319, %v2975
    %v3232 = vadd.f32 %v2320, %v2976
    %v3233 = vadd.f32 %v2321, %v2977
    %v3234 = vadd.f32 %v2322, %v2978
    %v3235 = vadd.f32 %v2323, %v2979
    %v3236 = vadd.f32 %v2324, %v2980
    %v3237 = vadd.f32 %v2325, %v2981
    %v3238 = vadd.f32 %v2326, %v2982
    %v3239 = vadd.f32 %v2327, %v2983
    %v3240 = vadd.f32 %v2328, %v2984
    %v3241 = vadd.f32 %v2329, %v2985
    %v3242 = vadd.f32 %v2330, %v2986
    %v3243 = vadd.f32 %v2331, %v2987
    %v3244 = vadd.f32 %v2332, %v2988
    %v3245 = vadd.f32 %v2333, %v2989
    %v3246 = vadd.f32 %v2334, %v2990
    %v3247 = vadd.f32 %v2335, %v2991
    %v3248 = vadd.f32 %v2336, %v2992
    %v3249 = vadd.f32 %v2337, %v2993
    %v3250 = vadd.f32 %v2338, %v2994
    %v3251 = vadd.f32 %v2339, %v2995
    %v3252 = vadd.f32 %v2340, %v2996
    %v3253 = vadd.f32 %v2341, %v2997
    %v3254 = vadd.f32 %v2342, %v2998
    %v3255 = vadd.f32 %v2343, %v2999
    %v3256 = vadd.f32 %v2344, %v3000
    %v3257 = vadd.f32 %v2345, %v3001
    %v3258 = vadd.f32 %v2346, %v3002
    %v3259 = vadd.f32 %v2347, %v3003
    %v3260 = vadd.f32 %v2348, %v3004
    %v3261 = vadd.f32 %v2349, %v3005
    %v3262 = vadd.f32 %v2350, %v3006
    %v3263 = vadd.f32 %v2351, %v3007
    %v3264 = vadd.f32 %v2352, %v3008
    %v3265 = vadd.f32 %v2353, %v3009
    %v3266 = vadd.f32 %v2354, %v3010
    %v3267 = vadd.f32 %v2355, %v3011
    %v3268 = vadd.f32 %v2356, %v3012
    %v3269 = vadd.f32 %v2357, %v3013
    %v3270 = vadd.f32 %v2358, %v3014
    %v3271 = vadd.f32 %v2359, %v3015
    %v3272 = vadd.f32 %v2360, %v3016
    %v3273 = vadd.f32 %v2361, %v3017
    %v3274 = vadd.f32 %v2362, %v3018
    %v3275 = vadd.f32 %v2363, %v3019
    %v3276 = vadd.f32 %v2364, %v3020
    %v3277 = vadd.f32 %v2365, %v3021
    %v3278 = vadd.f32 %v2366, %v3022
    %v3279 = vadd.f32 %v2367, %v3023
    %v3280 = vadd.f32 %v2368, %v3024
    %v3281 = vadd.f32 %v2369, %v3025
    %v3282 = vadd.f32 %v2370, %v3026
    %v3283 = vadd.f32 %v2371, %v3027
    %v3284 = vadd.f32 %v2372, %v3028
    %v3285 = vadd.s32 %v1677, 16
    %v3286 = vadd.s32 %v1678, 16
    %v3287 = vadd.s32 %v1679, 16
    %v3288 = vadd.s32 %v1680, 16
    %v3289 = vlaneseq
    %v3290 = vshrl.u32 %v3289, 7
    %v3291 = vsub.s32 1, %v3290
    %v3292 = vrot.slane %v3285, %v3291
    %v3293 = vlaneseq
    %v3294 = vshrl.u32 %v3293, 7
    %v3295 = vsub.s32 5, %v3294
    %v3296 = vrot.slane %v3285, %v3295
    %v3297 = vlaneseq
    %v3298 = vshrl.u32 %v3297, 7
    %v3299 = vsub.s32 1, %v3298
    %v3300 = vrot.slane %v3286, %v3299
    %v3301 = vlaneseq
    %v3302 = vshrl.u32 %v3301, 7
    %v3303 = vsub.s32 5, %v3302
    %v3304 = vrot.slane %v3286, %v3303
    %v3305 = vlaneseq
    %v3306 = vshrl.u32 %v3305, 7
    %v3307 = vsub.s32 1, %v3306
    %v3308 = vrot.slane %v3287, %v3307
    %v3309 = vlaneseq
    %v3310 = vshrl.u32 %v3309, 7
    %v3311 = vsub.s32 5, %v3310
    %v3312 = vrot.slane %v3287, %v3311
    %v3313 = vlaneseq
    %v3314 = vshrl.u32 %v3313, 7
    %v3315 = vsub.s32 1, %v3314
    %v3316 = vrot.slane %v3288, %v3315
    %v3317 = vlaneseq
    %v3318 = vshrl.u32 %v3317, 7
    %v3319 = vsub.s32 5, %v3318
    %v3320 = vrot.slane %v3288, %v3319
    %v3321 = vlaneseq
    %v3322 = vshrl.u32 %v3321, 7
    %v3323 = vsub.s32 1, %v3322
    %v3324 = vrot.slane %v3292, %v3323
    %v3325 = vlaneseq
    %v3326 = vshrl.u32 %v3325, 7
    %v3327 = vsub.s32 1, %v3326
    %v3328 = vrot.slane %v3296, %v3327
    %v3329 = vlaneseq
    %v3330 = vshrl.u32 %v3329, 7
    %v3331 = vsub.s32 1, %v3330
    %v3332 = vrot.slane %v3300, %v3331
    %v3333 = vlaneseq
    %v3334 = vshrl.u32 %v3333, 7
    %v3335 = vsub.s32 1, %v3334
    %v3336 = vrot.slane %v3304, %v3335
    %v3337 = vlaneseq
    %v3338 = vshrl.u32 %v3337, 7
    %v3339 = vsub.s32 1, %v3338
    %v3340 = vrot.slane %v3308, %v3339
    %v3341 = vlaneseq
    %v3342 = vshrl.u32 %v3341, 7
    %v3343 = vsub.s32 1, %v3342
    %v3344 = vrot.slane %v3312, %v3343
    %v3345 = vlaneseq
    %v3346 = vshrl.u32 %v3345, 7
    %v3347 = vsub.s32 1, %v3346
    %v3348 = vrot.slane %v3316, %v3347
    %v3349 = vlaneseq
    %v3350 = vshrl.u32 %v3349, 7
    %v3351 = vsub.s32 1, %v3350
    %v3352 = vrot.slane %v3320, %v3351
    %vm3353 = vcmp.eq.s32.totalorder %v1633, %v3324
    %vm3354 = vcmp.eq.s32.totalorder %v1633, %v3328
    %vm3355 = vcmp.eq.s32.totalorder %v1633, %v3332
    %vm3356 = vcmp.eq.s32.totalorder %v1633, %v3336
    %vm3357 = vcmp.eq.s32.totalorder %v1633, %v3340
    %vm3358 = vcmp.eq.s32.totalorder %v1633, %v3344
    %vm3359 = vcmp.eq.s32.totalorder %v1633, %v3348
    %vm3360 = vcmp.eq.s32.totalorder %v1633, %v3352
    %vm3361 = vcmp.eq.s32.totalorder %v1634, %v3324
    %vm3362 = vcmp.eq.s32.totalorder %v1634, %v3328
    %vm3363 = vcmp.eq.s32.totalorder %v1634, %v3332
    %vm3364 = vcmp.eq.s32.totalorder %v1634, %v3336
    %vm3365 = vcmp.eq.s32.totalorder %v1634, %v3340
    %vm3366 = vcmp.eq.s32.totalorder %v1634, %v3344
    %vm3367 = vcmp.eq.s32.totalorder %v1634, %v3348
    %vm3368 = vcmp.eq.s32.totalorder %v1634, %v3352
    %vm3369 = vcmp.eq.s32.totalorder %v1635, %v3324
    %vm3370 = vcmp.eq.s32.totalorder %v1635, %v3328
    %vm3371 = vcmp.eq.s32.totalorder %v1635, %v3332
    %vm3372 = vcmp.eq.s32.totalorder %v1635, %v3336
    %vm3373 = vcmp.eq.s32.totalorder %v1635, %v3340
    %vm3374 = vcmp.eq.s32.totalorder %v1635, %v3344
    %vm3375 = vcmp.eq.s32.totalorder %v1635, %v3348
    %vm3376 = vcmp.eq.s32.totalorder %v1635, %v3352
    %vm3377 = vcmp.eq.s32.totalorder %v1636, %v3324
    %vm3378 = vcmp.eq.s32.totalorder %v1636, %v3328
    %vm3379 = vcmp.eq.s32.totalorder %v1636, %v3332
    %vm3380 = vcmp.eq.s32.totalorder %v1636, %v3336
    %vm3381 = vcmp.eq.s32.totalorder %v1636, %v3340
    %vm3382 = vcmp.eq.s32.totalorder %v1636, %v3344
    %vm3383 = vcmp.eq.s32.totalorder %v1636, %v3348
    %vm3384 = vcmp.eq.s32.totalorder %v1636, %v3352
    %vm3385 = vcmp.eq.s32.totalorder %v1637, %v3324
    %vm3386 = vcmp.eq.s32.totalorder %v1637, %v3328
    %vm3387 = vcmp.eq.s32.totalorder %v1637, %v3332
    %vm3388 = vcmp.eq.s32.totalorder %v1637, %v3336
    %vm3389 = vcmp.eq.s32.totalorder %v1637, %v3340
    %vm3390 = vcmp.eq.s32.totalorder %v1637, %v3344
    %vm3391 = vcmp.eq.s32.totalorder %v1637, %v3348
    %vm3392 = vcmp.eq.s32.totalorder %v1637, %v3352
    %vm3393 = vcmp.eq.s32.totalorder %v1638, %v3324
    %vm3394 = vcmp.eq.s32.totalorder %v1638, %v3328
    %vm3395 = vcmp.eq.s32.totalorder %v1638, %v3332
    %vm3396 = vcmp.eq.s32.totalorder %v1638, %v3336
    %vm3397 = vcmp.eq.s32.totalorder %v1638, %v3340
    %vm3398 = vcmp.eq.s32.totalorder %v1638, %v3344
    %vm3399 = vcmp.eq.s32.totalorder %v1638, %v3348
    %vm3400 = vcmp.eq.s32.totalorder %v1638, %v3352
    %vm3401 = vcmp.eq.s32.totalorder %v1639, %v3324
    %vm3402 = vcmp.eq.s32.totalorder %v1639, %v3328
    %vm3403 = vcmp.eq.s32.totalorder %v1639, %v3332
    %vm3404 = vcmp.eq.s32.totalorder %v1639, %v3336
    %vm3405 = vcmp.eq.s32.totalorder %v1639, %v3340
    %vm3406 = vcmp.eq.s32.totalorder %v1639, %v3344
    %vm3407 = vcmp.eq.s32.totalorder %v1639, %v3348
    %vm3408 = vcmp.eq.s32.totalorder %v1639, %v3352
    %vm3409 = vcmp.eq.s32.totalorder %v1640, %v3324
    %vm3410 = vcmp.eq.s32.totalorder %v1640, %v3328
    %vm3411 = vcmp.eq.s32.totalorder %v1640, %v3332
    %vm3412 = vcmp.eq.s32.totalorder %v1640, %v3336
    %vm3413 = vcmp.eq.s32.totalorder %v1640, %v3340
    %vm3414 = vcmp.eq.s32.totalorder %v1640, %v3344
    %vm3415 = vcmp.eq.s32.totalorder %v1640, %v3348
    %vm3416 = vcmp.eq.s32.totalorder %v1640, %v3352
    %vm3417 = vcmp.eq.s32.totalorder %v1641, %v3324
    %vm3418 = vcmp.eq.s32.totalorder %v1641, %v3328
    %vm3419 = vcmp.eq.s32.totalorder %v1641, %v3332
    %vm3420 = vcmp.eq.s32.totalorder %v1641, %v3336
    %vm3421 = vcmp.eq.s32.totalorder %v1641, %v3340
    %vm3422 = vcmp.eq.s32.totalorder %v1641, %v3344
    %vm3423 = vcmp.eq.s32.totalorder %v1641, %v3348
    %vm3424 = vcmp.eq.s32.totalorder %v1641, %v3352
    %vm3425 = vcmp.eq.s32.totalorder %v1642, %v3324
    %vm3426 = vcmp.eq.s32.totalorder %v1642, %v3328
    %vm3427 = vcmp.eq.s32.totalorder %v1642, %v3332
    %vm3428 = vcmp.eq.s32.totalorder %v1642, %v3336
    %vm3429 = vcmp.eq.s32.totalorder %v1642, %v3340
    %vm3430 = vcmp.eq.s32.totalorder %v1642, %v3344
    %vm3431 = vcmp.eq.s32.totalorder %v1642, %v3348
    %vm3432 = vcmp.eq.s32.totalorder %v1642, %v3352
    %vm3433 = vcmp.eq.s32.totalorder %v1643, %v3324
    %vm3434 = vcmp.eq.s32.totalorder %v1643, %v3328
    %vm3435 = vcmp.eq.s32.totalorder %v1643, %v3332
    %vm3436 = vcmp.eq.s32.totalorder %v1643, %v3336
    %vm3437 = vcmp.eq.s32.totalorder %v1643, %v3340
    %vm3438 = vcmp.eq.s32.totalorder %v1643, %v3344
    %vm3439 = vcmp.eq.s32.totalorder %v1643, %v3348
    %vm3440 = vcmp.eq.s32.totalorder %v1643, %v3352
    %vm3441 = vcmp.eq.s32.totalorder %v1644, %v3324
    %vm3442 = vcmp.eq.s32.totalorder %v1644, %v3328
    %vm3443 = vcmp.eq.s32.totalorder %v1644, %v3332
    %vm3444 = vcmp.eq.s32.totalorder %v1644, %v3336
    %vm3445 = vcmp.eq.s32.totalorder %v1644, %v3340
    %vm3446 = vcmp.eq.s32.totalorder %v1644, %v3344
    %vm3447 = vcmp.eq.s32.totalorder %v1644, %v3348
    %vm3448 = vcmp.eq.s32.totalorder %v1644, %v3352
    %vm3449 = vcmp.eq.s32.totalorder %v1645, %v3324
    %vm3450 = vcmp.eq.s32.totalorder %v1645, %v3328
    %vm3451 = vcmp.eq.s32.totalorder %v1645, %v3332
    %vm3452 = vcmp.eq.s32.totalorder %v1645, %v3336
    %vm3453 = vcmp.eq.s32.totalorder %v1645, %v3340
    %vm3454 = vcmp.eq.s32.totalorder %v1645, %v3344
    %vm3455 = vcmp.eq.s32.totalorder %v1645, %v3348
    %vm3456 = vcmp.eq.s32.totalorder %v1645, %v3352
    %vm3457 = vcmp.eq.s32.totalorder %v1646, %v3324
    %vm3458 = vcmp.eq.s32.totalorder %v1646, %v3328
    %vm3459 = vcmp.eq.s32.totalorder %v1646, %v3332
    %vm3460 = vcmp.eq.s32.totalorder %v1646, %v3336
    %vm3461 = vcmp.eq.s32.totalorder %v1646, %v3340
    %vm3462 = vcmp.eq.s32.totalorder %v1646, %v3344
    %vm3463 = vcmp.eq.s32.totalorder %v1646, %v3348
    %vm3464 = vcmp.eq.s32.totalorder %v1646, %v3352
    %vm3465 = vcmp.eq.s32.totalorder %v1647, %v3324
    %vm3466 = vcmp.eq.s32.totalorder %v1647, %v3328
    %vm3467 = vcmp.eq.s32.totalorder %v1647, %v3332
    %vm3468 = vcmp.eq.s32.totalorder %v1647, %v3336
    %vm3469 = vcmp.eq.s32.totalorder %v1647, %v3340
    %vm3470 = vcmp.eq.s32.totalorder %v1647, %v3344
    %vm3471 = vcmp.eq.s32.totalorder %v1647, %v3348
    %vm3472 = vcmp.eq.s32.totalorder %v1647, %v3352
    %vm3473 = vcmp.eq.s32.totalorder %v1648, %v3324
    %vm3474 = vcmp.eq.s32.totalorder %v1648, %v3328
    %vm3475 = vcmp.eq.s32.totalorder %v1648, %v3332
    %vm3476 = vcmp.eq.s32.totalorder %v1648, %v3336
    %vm3477 = vcmp.eq.s32.totalorder %v1648, %v3340
    %vm3478 = vcmp.eq.s32.totalorder %v1648, %v3344
    %vm3479 = vcmp.eq.s32.totalorder %v1648, %v3348
    %vm3480 = vcmp.eq.s32.totalorder %v1648, %v3352
    %vm3481 = vcmp.eq.s32.totalorder %v1649, %v3324
    %vm3482 = vcmp.eq.s32.totalorder %v1649, %v3328
    %vm3483 = vcmp.eq.s32.totalorder %v1649, %v3332
    %vm3484 = vcmp.eq.s32.totalorder %v1649, %v3336
    %vm3485 = vcmp.eq.s32.totalorder %v1649, %v3340
    %vm3486 = vcmp.eq.s32.totalorder %v1649, %v3344
    %vm3487 = vcmp.eq.s32.totalorder %v1649, %v3348
    %vm3488 = vcmp.eq.s32.totalorder %v1649, %v3352
    %vm3489 = vcmp.eq.s32.totalorder %v1650, %v3324
    %vm3490 = vcmp.eq.s32.totalorder %v1650, %v3328
    %vm3491 = vcmp.eq.s32.totalorder %v1650, %v3332
    %vm3492 = vcmp.eq.s32.totalorder %v1650, %v3336
    %vm3493 = vcmp.eq.s32.totalorder %v1650, %v3340
    %vm3494 = vcmp.eq.s32.totalorder %v1650, %v3344
    %vm3495 = vcmp.eq.s32.totalorder %v1650, %v3348
    %vm3496 = vcmp.eq.s32.totalorder %v1650, %v3352
    %vm3497 = vcmp.eq.s32.totalorder %v1651, %v3324
    %vm3498 = vcmp.eq.s32.totalorder %v1651, %v3328
    %vm3499 = vcmp.eq.s32.totalorder %v1651, %v3332
    %vm3500 = vcmp.eq.s32.totalorder %v1651, %v3336
    %vm3501 = vcmp.eq.s32.totalorder %v1651, %v3340
    %vm3502 = vcmp.eq.s32.totalorder %v1651, %v3344
    %vm3503 = vcmp.eq.s32.totalorder %v1651, %v3348
    %vm3504 = vcmp.eq.s32.totalorder %v1651, %v3352
    %vm3505 = vcmp.eq.s32.totalorder %v1652, %v3324
    %vm3506 = vcmp.eq.s32.totalorder %v1652, %v3328
    %vm3507 = vcmp.eq.s32.totalorder %v1652, %v3332
    %vm3508 = vcmp.eq.s32.totalorder %v1652, %v3336
    %vm3509 = vcmp.eq.s32.totalorder %v1652, %v3340
    %vm3510 = vcmp.eq.s32.totalorder %v1652, %v3344
    %vm3511 = vcmp.eq.s32.totalorder %v1652, %v3348
    %vm3512 = vcmp.eq.s32.totalorder %v1652, %v3352
    %vm3513 = vcmp.eq.s32.totalorder %v1653, %v3324
    %vm3514 = vcmp.eq.s32.totalorder %v1653, %v3328
    %vm3515 = vcmp.eq.s32.totalorder %v1653, %v3332
    %vm3516 = vcmp.eq.s32.totalorder %v1653, %v3336
    %vm3517 = vcmp.eq.s32.totalorder %v1653, %v3340
    %vm3518 = vcmp.eq.s32.totalorder %v1653, %v3344
    %vm3519 = vcmp.eq.s32.totalorder %v1653, %v3348
    %vm3520 = vcmp.eq.s32.totalorder %v1653, %v3352
    %vm3521 = vcmp.eq.s32.totalorder %v1654, %v3324
    %vm3522 = vcmp.eq.s32.totalorder %v1654, %v3328
    %vm3523 = vcmp.eq.s32.totalorder %v1654, %v3332
    %vm3524 = vcmp.eq.s32.totalorder %v1654, %v3336
    %vm3525 = vcmp.eq.s32.totalorder %v1654, %v3340
    %vm3526 = vcmp.eq.s32.totalorder %v1654, %v3344
    %vm3527 = vcmp.eq.s32.totalorder %v1654, %v3348
    %vm3528 = vcmp.eq.s32.totalorder %v1654, %v3352
    %vm3529 = vcmp.eq.s32.totalorder %v1655, %v3324
    %vm3530 = vcmp.eq.s32.totalorder %v1655, %v3328
    %vm3531 = vcmp.eq.s32.totalorder %v1655, %v3332
    %vm3532 = vcmp.eq.s32.totalorder %v1655, %v3336
    %vm3533 = vcmp.eq.s32.totalorder %v1655, %v3340
    %vm3534 = vcmp.eq.s32.totalorder %v1655, %v3344
    %vm3535 = vcmp.eq.s32.totalorder %v1655, %v3348
    %vm3536 = vcmp.eq.s32.totalorder %v1655, %v3352
    %vm3537 = vcmp.eq.s32.totalorder %v1656, %v3324
    %vm3538 = vcmp.eq.s32.totalorder %v1656, %v3328
    %vm3539 = vcmp.eq.s32.totalorder %v1656, %v3332
    %vm3540 = vcmp.eq.s32.totalorder %v1656, %v3336
    %vm3541 = vcmp.eq.s32.totalorder %v1656, %v3340
    %vm3542 = vcmp.eq.s32.totalorder %v1656, %v3344
    %vm3543 = vcmp.eq.s32.totalorder %v1656, %v3348
    %vm3544 = vcmp.eq.s32.totalorder %v1656, %v3352
    %vm3545 = vcmp.eq.s32.totalorder %v1657, %v3324
    %vm3546 = vcmp.eq.s32.totalorder %v1657, %v3328
    %vm3547 = vcmp.eq.s32.totalorder %v1657, %v3332
    %vm3548 = vcmp.eq.s32.totalorder %v1657, %v3336
    %vm3549 = vcmp.eq.s32.totalorder %v1657, %v3340
    %vm3550 = vcmp.eq.s32.totalorder %v1657, %v3344
    %vm3551 = vcmp.eq.s32.totalorder %v1657, %v3348
    %vm3552 = vcmp.eq.s32.totalorder %v1657, %v3352
    %vm3553 = vcmp.eq.s32.totalorder %v1658, %v3324
    %vm3554 = vcmp.eq.s32.totalorder %v1658, %v3328
    %vm3555 = vcmp.eq.s32.totalorder %v1658, %v3332
    %vm3556 = vcmp.eq.s32.totalorder %v1658, %v3336
    %vm3557 = vcmp.eq.s32.totalorder %v1658, %v3340
    %vm3558 = vcmp.eq.s32.totalorder %v1658, %v3344
    %vm3559 = vcmp.eq.s32.totalorder %v1658, %v3348
    %vm3560 = vcmp.eq.s32.totalorder %v1658, %v3352
    %vm3561 = vcmp.eq.s32.totalorder %v1659, %v3324
    %vm3562 = vcmp.eq.s32.totalorder %v1659, %v3328
    %vm3563 = vcmp.eq.s32.totalorder %v1659, %v3332
    %vm3564 = vcmp.eq.s32.totalorder %v1659, %v3336
    %vm3565 = vcmp.eq.s32.totalorder %v1659, %v3340
    %vm3566 = vcmp.eq.s32.totalorder %v1659, %v3344
    %vm3567 = vcmp.eq.s32.totalorder %v1659, %v3348
    %vm3568 = vcmp.eq.s32.totalorder %v1659, %v3352
    %vm3569 = vcmp.eq.s32.totalorder %v1660, %v3324
    %vm3570 = vcmp.eq.s32.totalorder %v1660, %v3328
    %vm3571 = vcmp.eq.s32.totalorder %v1660, %v3332
    %vm3572 = vcmp.eq.s32.totalorder %v1660, %v3336
    %vm3573 = vcmp.eq.s32.totalorder %v1660, %v3340
    %vm3574 = vcmp.eq.s32.totalorder %v1660, %v3344
    %vm3575 = vcmp.eq.s32.totalorder %v1660, %v3348
    %vm3576 = vcmp.eq.s32.totalorder %v1660, %v3352
    %vm3577 = vcmp.eq.s32.totalorder %v1661, %v3324
    %vm3578 = vcmp.eq.s32.totalorder %v1661, %v3328
    %vm3579 = vcmp.eq.s32.totalorder %v1661, %v3332
    %vm3580 = vcmp.eq.s32.totalorder %v1661, %v3336
    %vm3581 = vcmp.eq.s32.totalorder %v1661, %v3340
    %vm3582 = vcmp.eq.s32.totalorder %v1661, %v3344
    %vm3583 = vcmp.eq.s32.totalorder %v1661, %v3348
    %vm3584 = vcmp.eq.s32.totalorder %v1661, %v3352
    %vm3585 = vcmp.eq.s32.totalorder %v1662, %v3324
    %vm3586 = vcmp.eq.s32.totalorder %v1662, %v3328
    %vm3587 = vcmp.eq.s32.totalorder %v1662, %v3332
    %vm3588 = vcmp.eq.s32.totalorder %v1662, %v3336
    %vm3589 = vcmp.eq.s32.totalorder %v1662, %v3340
    %vm3590 = vcmp.eq.s32.totalorder %v1662, %v3344
    %vm3591 = vcmp.eq.s32.totalorder %v1662, %v3348
    %vm3592 = vcmp.eq.s32.totalorder %v1662, %v3352
    %vm3593 = vcmp.eq.s32.totalorder %v1663, %v3324
    %vm3594 = vcmp.eq.s32.totalorder %v1663, %v3328
    %vm3595 = vcmp.eq.s32.totalorder %v1663, %v3332
    %vm3596 = vcmp.eq.s32.totalorder %v1663, %v3336
    %vm3597 = vcmp.eq.s32.totalorder %v1663, %v3340
    %vm3598 = vcmp.eq.s32.totalorder %v1663, %v3344
    %vm3599 = vcmp.eq.s32.totalorder %v1663, %v3348
    %vm3600 = vcmp.eq.s32.totalorder %v1663, %v3352
    %vm3601 = vcmp.eq.s32.totalorder %v1664, %v3324
    %vm3602 = vcmp.eq.s32.totalorder %v1664, %v3328
    %vm3603 = vcmp.eq.s32.totalorder %v1664, %v3332
    %vm3604 = vcmp.eq.s32.totalorder %v1664, %v3336
    %vm3605 = vcmp.eq.s32.totalorder %v1664, %v3340
    %vm3606 = vcmp.eq.s32.totalorder %v1664, %v3344
    %vm3607 = vcmp.eq.s32.totalorder %v1664, %v3348
    %vm3608 = vcmp.eq.s32.totalorder %v1664, %v3352
    %v3613 = vlaneseq
    %v3614 = vshrl.u32 %v3613, 7
    %v3615 = vsub.s32 1, %v3614
    %v3616 = vrot.slane %v1713, %v3615
    %v3617 = vlaneseq
    %v3618 = vshrl.u32 %v3617, 7
    %v3619 = vsub.s32 5, %v3618
    %v3620 = vrot.slane %v1713, %v3619
    %v3621 = vlaneseq
    %v3622 = vshrl.u32 %v3621, 7
    %v3623 = vsub.s32 1, %v3622
    %v3624 = vrot.slane %v1714, %v3623
    %v3625 = vlaneseq
    %v3626 = vshrl.u32 %v3625, 7
    %v3627 = vsub.s32 5, %v3626
    %v3628 = vrot.slane %v1714, %v3627
    %v3629 = vlaneseq
    %v3630 = vshrl.u32 %v3629, 7
    %v3631 = vsub.s32 1, %v3630
    %v3632 = vrot.slane %v1715, %v3631
    %v3633 = vlaneseq
    %v3634 = vshrl.u32 %v3633, 7
    %v3635 = vsub.s32 5, %v3634
    %v3636 = vrot.slane %v1715, %v3635
    %v3637 = vlaneseq
    %v3638 = vshrl.u32 %v3637, 7
    %v3639 = vsub.s32 1, %v3638
    %v3640 = vrot.slane %v1716, %v3639
    %v3641 = vlaneseq
    %v3642 = vshrl.u32 %v3641, 7
    %v3643 = vsub.s32 5, %v3642
    %v3644 = vrot.slane %v1716, %v3643
    %v3653 = vlaneseq
    %v3654 = vshrl.u32 %v3653, 7
    %v3655 = vsub.s32 1, %v3654
    %v3656 = vrot.slane %v3616, %v3655
    %v3657 = vlaneseq
    %v3658 = vshrl.u32 %v3657, 7
    %v3659 = vsub.s32 1, %v3658
    %v3660 = vrot.slane %v3620, %v3659
    %v3661 = vlaneseq
    %v3662 = vshrl.u32 %v3661, 7
    %v3663 = vsub.s32 1, %v3662
    %v3664 = vrot.slane %v3624, %v3663
    %v3665 = vlaneseq
    %v3666 = vshrl.u32 %v3665, 7
    %v3667 = vsub.s32 1, %v3666
    %v3668 = vrot.slane %v3628, %v3667
    %v3669 = vlaneseq
    %v3670 = vshrl.u32 %v3669, 7
    %v3671 = vsub.s32 1, %v3670
    %v3672 = vrot.slane %v3632, %v3671
    %v3673 = vlaneseq
    %v3674 = vshrl.u32 %v3673, 7
    %v3675 = vsub.s32 1, %v3674
    %v3676 = vrot.slane %v3636, %v3675
    %v3677 = vlaneseq
    %v3678 = vshrl.u32 %v3677, 7
    %v3679 = vsub.s32 1, %v3678
    %v3680 = vrot.slane %v3640, %v3679
    %v3681 = vlaneseq
    %v3682 = vshrl.u32 %v3681, 7
    %v3683 = vsub.s32 1, %v3682
    %v3684 = vrot.slane %v3644, %v3683
    %v3685 = vsel %vm3353, %v3656, 0.0
    %v3686 = vsel %vm3354, %v3660, 0.0
    %v3687 = vsel %vm3355, %v3664, 0.0
    %v3688 = vsel %vm3356, %v3668, 0.0
    %v3689 = vsel %vm3357, %v3672, 0.0
    %v3690 = vsel %vm3358, %v3676, 0.0
    %v3691 = vsel %vm3359, %v3680, 0.0
    %v3692 = vsel %vm3360, %v3684, 0.0
    %v3693 = vsel %vm3361, %v3656, 0.0
    %v3694 = vsel %vm3362, %v3660, 0.0
    %v3695 = vsel %vm3363, %v3664, 0.0
    %v3696 = vsel %vm3364, %v3668, 0.0
    %v3697 = vsel %vm3365, %v3672, 0.0
    %v3698 = vsel %vm3366, %v3676, 0.0
    %v3699 = vsel %vm3367, %v3680, 0.0
    %v3700 = vsel %vm3368, %v3684, 0.0
    %v3701 = vsel %vm3369, %v3656, 0.0
    %v3702 = vsel %vm3370, %v3660, 0.0
    %v3703 = vsel %vm3371, %v3664, 0.0
    %v3704 = vsel %vm3372, %v3668, 0.0
    %v3705 = vsel %vm3373, %v3672, 0.0
    %v3706 = vsel %vm3374, %v3676, 0.0
    %v3707 = vsel %vm3375, %v3680, 0.0
    %v3708 = vsel %vm3376, %v3684, 0.0
    %v3709 = vsel %vm3377, %v3656, 0.0
    %v3710 = vsel %vm3378, %v3660, 0.0
    %v3711 = vsel %vm3379, %v3664, 0.0
    %v3712 = vsel %vm3380, %v3668, 0.0
    %v3713 = vsel %vm3381, %v3672, 0.0
    %v3714 = vsel %vm3382, %v3676, 0.0
    %v3715 = vsel %vm3383, %v3680, 0.0
    %v3716 = vsel %vm3384, %v3684, 0.0
    %v3717 = vsel %vm3385, %v3656, 0.0
    %v3718 = vsel %vm3386, %v3660, 0.0
    %v3719 = vsel %vm3387, %v3664, 0.0
    %v3720 = vsel %vm3388, %v3668, 0.0
    %v3721 = vsel %vm3389, %v3672, 0.0
    %v3722 = vsel %vm3390, %v3676, 0.0
    %v3723 = vsel %vm3391, %v3680, 0.0
    %v3724 = vsel %vm3392, %v3684, 0.0
    %v3725 = vsel %vm3393, %v3656, 0.0
    %v3726 = vsel %vm3394, %v3660, 0.0
    %v3727 = vsel %vm3395, %v3664, 0.0
    %v3728 = vsel %vm3396, %v3668, 0.0
    %v3729 = vsel %vm3397, %v3672, 0.0
    %v3730 = vsel %vm3398, %v3676, 0.0
    %v3731 = vsel %vm3399, %v3680, 0.0
    %v3732 = vsel %vm3400, %v3684, 0.0
    %v3733 = vsel %vm3401, %v3656, 0.0
    %v3734 = vsel %vm3402, %v3660, 0.0
    %v3735 = vsel %vm3403, %v3664, 0.0
    %v3736 = vsel %vm3404, %v3668, 0.0
    %v3737 = vsel %vm3405, %v3672, 0.0
    %v3738 = vsel %vm3406, %v3676, 0.0
    %v3739 = vsel %vm3407, %v3680, 0.0
    %v3740 = vsel %vm3408, %v3684, 0.0
    %v3741 = vsel %vm3409, %v3656, 0.0
    %v3742 = vsel %vm3410, %v3660, 0.0
    %v3743 = vsel %vm3411, %v3664, 0.0
    %v3744 = vsel %vm3412, %v3668, 0.0
    %v3745 = vsel %vm3413, %v3672, 0.0
    %v3746 = vsel %vm3414, %v3676, 0.0
    %v3747 = vsel %vm3415, %v3680, 0.0
    %v3748 = vsel %vm3416, %v3684, 0.0
    %v3749 = vsel %vm3417, %v3656, 0.0
    %v3750 = vsel %vm3418, %v3660, 0.0
    %v3751 = vsel %vm3419, %v3664, 0.0
    %v3752 = vsel %vm3420, %v3668, 0.0
    %v3753 = vsel %vm3421, %v3672, 0.0
    %v3754 = vsel %vm3422, %v3676, 0.0
    %v3755 = vsel %vm3423, %v3680, 0.0
    %v3756 = vsel %vm3424, %v3684, 0.0
    %v3757 = vsel %vm3425, %v3656, 0.0
    %v3758 = vsel %vm3426, %v3660, 0.0
    %v3759 = vsel %vm3427, %v3664, 0.0
    %v3760 = vsel %vm3428, %v3668, 0.0
    %v3761 = vsel %vm3429, %v3672, 0.0
    %v3762 = vsel %vm3430, %v3676, 0.0
    %v3763 = vsel %vm3431, %v3680, 0.0
    %v3764 = vsel %vm3432, %v3684, 0.0
    %v3765 = vsel %vm3433, %v3656, 0.0
    %v3766 = vsel %vm3434, %v3660, 0.0
    %v3767 = vsel %vm3435, %v3664, 0.0
    %v3768 = vsel %vm3436, %v3668, 0.0
    %v3769 = vsel %vm3437, %v3672, 0.0
    %v3770 = vsel %vm3438, %v3676, 0.0
    %v3771 = vsel %vm3439, %v3680, 0.0
    %v3772 = vsel %vm3440, %v3684, 0.0
    %v3773 = vsel %vm3441, %v3656, 0.0
    %v3774 = vsel %vm3442, %v3660, 0.0
    %v3775 = vsel %vm3443, %v3664, 0.0
    %v3776 = vsel %vm3444, %v3668, 0.0
    %v3777 = vsel %vm3445, %v3672, 0.0
    %v3778 = vsel %vm3446, %v3676, 0.0
    %v3779 = vsel %vm3447, %v3680, 0.0
    %v3780 = vsel %vm3448, %v3684, 0.0
    %v3781 = vsel %vm3449, %v3656, 0.0
    %v3782 = vsel %vm3450, %v3660, 0.0
    %v3783 = vsel %vm3451, %v3664, 0.0
    %v3784 = vsel %vm3452, %v3668, 0.0
    %v3785 = vsel %vm3453, %v3672, 0.0
    %v3786 = vsel %vm3454, %v3676, 0.0
    %v3787 = vsel %vm3455, %v3680, 0.0
    %v3788 = vsel %vm3456, %v3684, 0.0
    %v3789 = vsel %vm3457, %v3656, 0.0
    %v3790 = vsel %vm3458, %v3660, 0.0
    %v3791 = vsel %vm3459, %v3664, 0.0
    %v3792 = vsel %vm3460, %v3668, 0.0
    %v3793 = vsel %vm3461, %v3672, 0.0
    %v3794 = vsel %vm3462, %v3676, 0.0
    %v3795 = vsel %vm3463, %v3680, 0.0
    %v3796 = vsel %vm3464, %v3684, 0.0
    %v3797 = vsel %vm3465, %v3656, 0.0
    %v3798 = vsel %vm3466, %v3660, 0.0
    %v3799 = vsel %vm3467, %v3664, 0.0
    %v3800 = vsel %vm3468, %v3668, 0.0
    %v3801 = vsel %vm3469, %v3672, 0.0
    %v3802 = vsel %vm3470, %v3676, 0.0
    %v3803 = vsel %vm3471, %v3680, 0.0
    %v3804 = vsel %vm3472, %v3684, 0.0
    %v3805 = vsel %vm3473, %v3656, 0.0
    %v3806 = vsel %vm3474, %v3660, 0.0
    %v3807 = vsel %vm3475, %v3664, 0.0
    %v3808 = vsel %vm3476, %v3668, 0.0
    %v3809 = vsel %vm3477, %v3672, 0.0
    %v3810 = vsel %vm3478, %v3676, 0.0
    %v3811 = vsel %vm3479, %v3680, 0.0
    %v3812 = vsel %vm3480, %v3684, 0.0
    %v3813 = vsel %vm3481, %v3656, 0.0
    %v3814 = vsel %vm3482, %v3660, 0.0
    %v3815 = vsel %vm3483, %v3664, 0.0
    %v3816 = vsel %vm3484, %v3668, 0.0
    %v3817 = vsel %vm3485, %v3672, 0.0
    %v3818 = vsel %vm3486, %v3676, 0.0
    %v3819 = vsel %vm3487, %v3680, 0.0
    %v3820 = vsel %vm3488, %v3684, 0.0
    %v3821 = vsel %vm3489, %v3656, 0.0
    %v3822 = vsel %vm3490, %v3660, 0.0
    %v3823 = vsel %vm3491, %v3664, 0.0
    %v3824 = vsel %vm3492, %v3668, 0.0
    %v3825 = vsel %vm3493, %v3672, 0.0
    %v3826 = vsel %vm3494, %v3676, 0.0
    %v3827 = vsel %vm3495, %v3680, 0.0
    %v3828 = vsel %vm3496, %v3684, 0.0
    %v3829 = vsel %vm3497, %v3656, 0.0
    %v3830 = vsel %vm3498, %v3660, 0.0
    %v3831 = vsel %vm3499, %v3664, 0.0
    %v3832 = vsel %vm3500, %v3668, 0.0
    %v3833 = vsel %vm3501, %v3672, 0.0
    %v3834 = vsel %vm3502, %v3676, 0.0
    %v3835 = vsel %vm3503, %v3680, 0.0
    %v3836 = vsel %vm3504, %v3684, 0.0
    %v3837 = vsel %vm3505, %v3656, 0.0
    %v3838 = vsel %vm3506, %v3660, 0.0
    %v3839 = vsel %vm3507, %v3664, 0.0
    %v3840 = vsel %vm3508, %v3668, 0.0
    %v3841 = vsel %vm3509, %v3672, 0.0
    %v3842 = vsel %vm3510, %v3676, 0.0
    %v3843 = vsel %vm3511, %v3680, 0.0
    %v3844 = vsel %vm3512, %v3684, 0.0
    %v3845 = vsel %vm3513, %v3656, 0.0
    %v3846 = vsel %vm3514, %v3660, 0.0
    %v3847 = vsel %vm3515, %v3664, 0.0
    %v3848 = vsel %vm3516, %v3668, 0.0
    %v3849 = vsel %vm3517, %v3672, 0.0
    %v3850 = vsel %vm3518, %v3676, 0.0
    %v3851 = vsel %vm3519, %v3680, 0.0
    %v3852 = vsel %vm3520, %v3684, 0.0
    %v3853 = vsel %vm3521, %v3656, 0.0
    %v3854 = vsel %vm3522, %v3660, 0.0
    %v3855 = vsel %vm3523, %v3664, 0.0
    %v3856 = vsel %vm3524, %v3668, 0.0
    %v3857 = vsel %vm3525, %v3672, 0.0
    %v3858 = vsel %vm3526, %v3676, 0.0
    %v3859 = vsel %vm3527, %v3680, 0.0
    %v3860 = vsel %vm3528, %v3684, 0.0
    %v3861 = vsel %vm3529, %v3656, 0.0
    %v3862 = vsel %vm3530, %v3660, 0.0
    %v3863 = vsel %vm3531, %v3664, 0.0
    %v3864 = vsel %vm3532, %v3668, 0.0
    %v3865 = vsel %vm3533, %v3672, 0.0
    %v3866 = vsel %vm3534, %v3676, 0.0
    %v3867 = vsel %vm3535, %v3680, 0.0
    %v3868 = vsel %vm3536, %v3684, 0.0
    %v3869 = vsel %vm3537, %v3656, 0.0
    %v3870 = vsel %vm3538, %v3660, 0.0
    %v3871 = vsel %vm3539, %v3664, 0.0
    %v3872 = vsel %vm3540, %v3668, 0.0
    %v3873 = vsel %vm3541, %v3672, 0.0
    %v3874 = vsel %vm3542, %v3676, 0.0
    %v3875 = vsel %vm3543, %v3680, 0.0
    %v3876 = vsel %vm3544, %v3684, 0.0
    %v3877 = vsel %vm3545, %v3656, 0.0
    %v3878 = vsel %vm3546, %v3660, 0.0
    %v3879 = vsel %vm3547, %v3664, 0.0
    %v3880 = vsel %vm3548, %v3668, 0.0
    %v3881 = vsel %vm3549, %v3672, 0.0
    %v3882 = vsel %vm3550, %v3676, 0.0
    %v3883 = vsel %vm3551, %v3680, 0.0
    %v3884 = vsel %vm3552, %v3684, 0.0
    %v3885 = vsel %vm3553, %v3656, 0.0
    %v3886 = vsel %vm3554, %v3660, 0.0
    %v3887 = vsel %vm3555, %v3664, 0.0
    %v3888 = vsel %vm3556, %v3668, 0.0
    %v3889 = vsel %vm3557, %v3672, 0.0
    %v3890 = vsel %vm3558, %v3676, 0.0
    %v3891 = vsel %vm3559, %v3680, 0.0
    %v3892 = vsel %vm3560, %v3684, 0.0
    %v3893 = vsel %vm3561, %v3656, 0.0
    %v3894 = vsel %vm3562, %v3660, 0.0
    %v3895 = vsel %vm3563, %v3664, 0.0
    %v3896 = vsel %vm3564, %v3668, 0.0
    %v3897 = vsel %vm3565, %v3672, 0.0
    %v3898 = vsel %vm3566, %v3676, 0.0
    %v3899 = vsel %vm3567, %v3680, 0.0
    %v3900 = vsel %vm3568, %v3684, 0.0
    %v3901 = vsel %vm3569, %v3656, 0.0
    %v3902 = vsel %vm3570, %v3660, 0.0
    %v3903 = vsel %vm3571, %v3664, 0.0
    %v3904 = vsel %vm3572, %v3668, 0.0
    %v3905 = vsel %vm3573, %v3672, 0.0
    %v3906 = vsel %vm3574, %v3676, 0.0
    %v3907 = vsel %vm3575, %v3680, 0.0
    %v3908 = vsel %vm3576, %v3684, 0.0
    %v3909 = vsel %vm3577, %v3656, 0.0
    %v3910 = vsel %vm3578, %v3660, 0.0
    %v3911 = vsel %vm3579, %v3664, 0.0
    %v3912 = vsel %vm3580, %v3668, 0.0
    %v3913 = vsel %vm3581, %v3672, 0.0
    %v3914 = vsel %vm3582, %v3676, 0.0
    %v3915 = vsel %vm3583, %v3680, 0.0
    %v3916 = vsel %vm3584, %v3684, 0.0
    %v3917 = vsel %vm3585, %v3656, 0.0
    %v3918 = vsel %vm3586, %v3660, 0.0
    %v3919 = vsel %vm3587, %v3664, 0.0
    %v3920 = vsel %vm3588, %v3668, 0.0
    %v3921 = vsel %vm3589, %v3672, 0.0
    %v3922 = vsel %vm3590, %v3676, 0.0
    %v3923 = vsel %vm3591, %v3680, 0.0
    %v3924 = vsel %vm3592, %v3684, 0.0
    %v3925 = vsel %vm3593, %v3656, 0.0
    %v3926 = vsel %vm3594, %v3660, 0.0
    %v3927 = vsel %vm3595, %v3664, 0.0
    %v3928 = vsel %vm3596, %v3668, 0.0
    %v3929 = vsel %vm3597, %v3672, 0.0
    %v3930 = vsel %vm3598, %v3676, 0.0
    %v3931 = vsel %vm3599, %v3680, 0.0
    %v3932 = vsel %vm3600, %v3684, 0.0
    %v3933 = vsel %vm3601, %v3656, 0.0
    %v3934 = vsel %vm3602, %v3660, 0.0
    %v3935 = vsel %vm3603, %v3664, 0.0
    %v3936 = vsel %vm3604, %v3668, 0.0
    %v3937 = vsel %vm3605, %v3672, 0.0
    %v3938 = vsel %vm3606, %v3676, 0.0
    %v3939 = vsel %vm3607, %v3680, 0.0
    %v3940 = vsel %vm3608, %v3684, 0.0
    %v3941 = vadd.f32 %v3029, %v3685
    %v3942 = vadd.f32 %v3030, %v3686
    %v3943 = vadd.f32 %v3031, %v3687
    %v3944 = vadd.f32 %v3032, %v3688
    %v3945 = vadd.f32 %v3033, %v3689
    %v3946 = vadd.f32 %v3034, %v3690
    %v3947 = vadd.f32 %v3035, %v3691
    %v3948 = vadd.f32 %v3036, %v3692
    %v3949 = vadd.f32 %v3037, %v3693
    %v3950 = vadd.f32 %v3038, %v3694
    %v3951 = vadd.f32 %v3039, %v3695
    %v3952 = vadd.f32 %v3040, %v3696
    %v3953 = vadd.f32 %v3041, %v3697
    %v3954 = vadd.f32 %v3042, %v3698
    %v3955 = vadd.f32 %v3043, %v3699
    %v3956 = vadd.f32 %v3044, %v3700
    %v3957 = vadd.f32 %v3045, %v3701
    %v3958 = vadd.f32 %v3046, %v3702
    %v3959 = vadd.f32 %v3047, %v3703
    %v3960 = vadd.f32 %v3048, %v3704
    %v3961 = vadd.f32 %v3049, %v3705
    %v3962 = vadd.f32 %v3050, %v3706
    %v3963 = vadd.f32 %v3051, %v3707
    %v3964 = vadd.f32 %v3052, %v3708
    %v3965 = vadd.f32 %v3053, %v3709
    %v3966 = vadd.f32 %v3054, %v3710
    %v3967 = vadd.f32 %v3055, %v3711
    %v3968 = vadd.f32 %v3056, %v3712
    %v3969 = vadd.f32 %v3057, %v3713
    %v3970 = vadd.f32 %v3058, %v3714
    %v3971 = vadd.f32 %v3059, %v3715
    %v3972 = vadd.f32 %v3060, %v3716
    %v3973 = vadd.f32 %v3061, %v3717
    %v3974 = vadd.f32 %v3062, %v3718
    %v3975 = vadd.f32 %v3063, %v3719
    %v3976 = vadd.f32 %v3064, %v3720
    %v3977 = vadd.f32 %v3065, %v3721
    %v3978 = vadd.f32 %v3066, %v3722
    %v3979 = vadd.f32 %v3067, %v3723
    %v3980 = vadd.f32 %v3068, %v3724
    %v3981 = vadd.f32 %v3069, %v3725
    %v3982 = vadd.f32 %v3070, %v3726
    %v3983 = vadd.f32 %v3071, %v3727
    %v3984 = vadd.f32 %v3072, %v3728
    %v3985 = vadd.f32 %v3073, %v3729
    %v3986 = vadd.f32 %v3074, %v3730
    %v3987 = vadd.f32 %v3075, %v3731
    %v3988 = vadd.f32 %v3076, %v3732
    %v3989 = vadd.f32 %v3077, %v3733
    %v3990 = vadd.f32 %v3078, %v3734
    %v3991 = vadd.f32 %v3079, %v3735
    %v3992 = vadd.f32 %v3080, %v3736
    %v3993 = vadd.f32 %v3081, %v3737
    %v3994 = vadd.f32 %v3082, %v3738
    %v3995 = vadd.f32 %v3083, %v3739
    %v3996 = vadd.f32 %v3084, %v3740
    %v3997 = vadd.f32 %v3085, %v3741
    %v3998 = vadd.f32 %v3086, %v3742
    %v3999 = vadd.f32 %v3087, %v3743
    %v4000 = vadd.f32 %v3088, %v3744
    %v4001 = vadd.f32 %v3089, %v3745
    %v4002 = vadd.f32 %v3090, %v3746
    %v4003 = vadd.f32 %v3091, %v3747
    %v4004 = vadd.f32 %v3092, %v3748
    %v4005 = vadd.f32 %v3093, %v3749
    %v4006 = vadd.f32 %v3094, %v3750
    %v4007 = vadd.f32 %v3095, %v3751
    %v4008 = vadd.f32 %v3096, %v3752
    %v4009 = vadd.f32 %v3097, %v3753
    %v4010 = vadd.f32 %v3098, %v3754
    %v4011 = vadd.f32 %v3099, %v3755
    %v4012 = vadd.f32 %v3100, %v3756
    %v4013 = vadd.f32 %v3101, %v3757
    %v4014 = vadd.f32 %v3102, %v3758
    %v4015 = vadd.f32 %v3103, %v3759
    %v4016 = vadd.f32 %v3104, %v3760
    %v4017 = vadd.f32 %v3105, %v3761
    %v4018 = vadd.f32 %v3106, %v3762
    %v4019 = vadd.f32 %v3107, %v3763
    %v4020 = vadd.f32 %v3108, %v3764
    %v4021 = vadd.f32 %v3109, %v3765
    %v4022 = vadd.f32 %v3110, %v3766
    %v4023 = vadd.f32 %v3111, %v3767
    %v4024 = vadd.f32 %v3112, %v3768
    %v4025 = vadd.f32 %v3113, %v3769
    %v4026 = vadd.f32 %v3114, %v3770
    %v4027 = vadd.f32 %v3115, %v3771
    %v4028 = vadd.f32 %v3116, %v3772
    %v4029 = vadd.f32 %v3117, %v3773
    %v4030 = vadd.f32 %v3118, %v3774
    %v4031 = vadd.f32 %v3119, %v3775
    %v4032 = vadd.f32 %v3120, %v3776
    %v4033 = vadd.f32 %v3121, %v3777
    %v4034 = vadd.f32 %v3122, %v3778
    %v4035 = vadd.f32 %v3123, %v3779
    %v4036 = vadd.f32 %v3124, %v3780
    %v4037 = vadd.f32 %v3125, %v3781
    %v4038 = vadd.f32 %v3126, %v3782
    %v4039 = vadd.f32 %v3127, %v3783
    %v4040 = vadd.f32 %v3128, %v3784
    %v4041 = vadd.f32 %v3129, %v3785
    %v4042 = vadd.f32 %v3130, %v3786
    %v4043 = vadd.f32 %v3131, %v3787
    %v4044 = vadd.f32 %v3132, %v3788
    %v4045 = vadd.f32 %v3133, %v3789
    %v4046 = vadd.f32 %v3134, %v3790
    %v4047 = vadd.f32 %v3135, %v3791
    %v4048 = vadd.f32 %v3136, %v3792
    %v4049 = vadd.f32 %v3137, %v3793
    %v4050 = vadd.f32 %v3138, %v3794
    %v4051 = vadd.f32 %v3139, %v3795
    %v4052 = vadd.f32 %v3140, %v3796
    %v4053 = vadd.f32 %v3141, %v3797
    %v4054 = vadd.f32 %v3142, %v3798
    %v4055 = vadd.f32 %v3143, %v3799
    %v4056 = vadd.f32 %v3144, %v3800
    %v4057 = vadd.f32 %v3145, %v3801
    %v4058 = vadd.f32 %v3146, %v3802
    %v4059 = vadd.f32 %v3147, %v3803
    %v4060 = vadd.f32 %v3148, %v3804
    %v4061 = vadd.f32 %v3149, %v3805
    %v4062 = vadd.f32 %v3150, %v3806
    %v4063 = vadd.f32 %v3151, %v3807
    %v4064 = vadd.f32 %v3152, %v3808
    %v4065 = vadd.f32 %v3153, %v3809
    %v4066 = vadd.f32 %v3154, %v3810
    %v4067 = vadd.f32 %v3155, %v3811
    %v4068 = vadd.f32 %v3156, %v3812
    %v4069 = vadd.f32 %v3157, %v3813
    %v4070 = vadd.f32 %v3158, %v3814
    %v4071 = vadd.f32 %v3159, %v3815
    %v4072 = vadd.f32 %v3160, %v3816
    %v4073 = vadd.f32 %v3161, %v3817
    %v4074 = vadd.f32 %v3162, %v3818
    %v4075 = vadd.f32 %v3163, %v3819
    %v4076 = vadd.f32 %v3164, %v3820
    %v4077 = vadd.f32 %v3165, %v3821
    %v4078 = vadd.f32 %v3166, %v3822
    %v4079 = vadd.f32 %v3167, %v3823
    %v4080 = vadd.f32 %v3168, %v3824
    %v4081 = vadd.f32 %v3169, %v3825
    %v4082 = vadd.f32 %v3170, %v3826
    %v4083 = vadd.f32 %v3171, %v3827
    %v4084 = vadd.f32 %v3172, %v3828
    %v4085 = vadd.f32 %v3173, %v3829
    %v4086 = vadd.f32 %v3174, %v3830
    %v4087 = vadd.f32 %v3175, %v3831
    %v4088 = vadd.f32 %v3176, %v3832
    %v4089 = vadd.f32 %v3177, %v3833
    %v4090 = vadd.f32 %v3178, %v3834
    %v4091 = vadd.f32 %v3179, %v3835
    %v4092 = vadd.f32 %v3180, %v3836
    %v4093 = vadd.f32 %v3181, %v3837
    %v4094 = vadd.f32 %v3182, %v3838
    %v4095 = vadd.f32 %v3183, %v3839
    %v4096 = vadd.f32 %v3184, %v3840
    %v4097 = vadd.f32 %v3185, %v3841
    %v4098 = vadd.f32 %v3186, %v3842
    %v4099 = vadd.f32 %v3187, %v3843
    %v4100 = vadd.f32 %v3188, %v3844
    %v4101 = vadd.f32 %v3189, %v3845
    %v4102 = vadd.f32 %v3190, %v3846
    %v4103 = vadd.f32 %v3191, %v3847
    %v4104 = vadd.f32 %v3192, %v3848
    %v4105 = vadd.f32 %v3193, %v3849
    %v4106 = vadd.f32 %v3194, %v3850
    %v4107 = vadd.f32 %v3195, %v3851
    %v4108 = vadd.f32 %v3196, %v3852
    %v4109 = vadd.f32 %v3197, %v3853
    %v4110 = vadd.f32 %v3198, %v3854
    %v4111 = vadd.f32 %v3199, %v3855
    %v4112 = vadd.f32 %v3200, %v3856
    %v4113 = vadd.f32 %v3201, %v3857
    %v4114 = vadd.f32 %v3202, %v3858
    %v4115 = vadd.f32 %v3203, %v3859
    %v4116 = vadd.f32 %v3204, %v3860
    %v4117 = vadd.f32 %v3205, %v3861
    %v4118 = vadd.f32 %v3206, %v3862
    %v4119 = vadd.f32 %v3207, %v3863
    %v4120 = vadd.f32 %v3208, %v3864
    %v4121 = vadd.f32 %v3209, %v3865
    %v4122 = vadd.f32 %v3210, %v3866
    %v4123 = vadd.f32 %v3211, %v3867
    %v4124 = vadd.f32 %v3212, %v3868
    %v4125 = vadd.f32 %v3213, %v3869
    %v4126 = vadd.f32 %v3214, %v3870
    %v4127 = vadd.f32 %v3215, %v3871
    %v4128 = vadd.f32 %v3216, %v3872
    %v4129 = vadd.f32 %v3217, %v3873
    %v4130 = vadd.f32 %v3218, %v3874
    %v4131 = vadd.f32 %v3219, %v3875
    %v4132 = vadd.f32 %v3220, %v3876
    %v4133 = vadd.f32 %v3221, %v3877
    %v4134 = vadd.f32 %v3222, %v3878
    %v4135 = vadd.f32 %v3223, %v3879
    %v4136 = vadd.f32 %v3224, %v3880
    %v4137 = vadd.f32 %v3225, %v3881
    %v4138 = vadd.f32 %v3226, %v3882
    %v4139 = vadd.f32 %v3227, %v3883
    %v4140 = vadd.f32 %v3228, %v3884
    %v4141 = vadd.f32 %v3229, %v3885
    %v4142 = vadd.f32 %v3230, %v3886
    %v4143 = vadd.f32 %v3231, %v3887
    %v4144 = vadd.f32 %v3232, %v3888
    %v4145 = vadd.f32 %v3233, %v3889
    %v4146 = vadd.f32 %v3234, %v3890
    %v4147 = vadd.f32 %v3235, %v3891
    %v4148 = vadd.f32 %v3236, %v3892
    %v4149 = vadd.f32 %v3237, %v3893
    %v4150 = vadd.f32 %v3238, %v3894
    %v4151 = vadd.f32 %v3239, %v3895
    %v4152 = vadd.f32 %v3240, %v3896
    %v4153 = vadd.f32 %v3241, %v3897
    %v4154 = vadd.f32 %v3242, %v3898
    %v4155 = vadd.f32 %v3243, %v3899
    %v4156 = vadd.f32 %v3244, %v3900
    %v4157 = vadd.f32 %v3245, %v3901
    %v4158 = vadd.f32 %v3246, %v3902
    %v4159 = vadd.f32 %v3247, %v3903
    %v4160 = vadd.f32 %v3248, %v3904
    %v4161 = vadd.f32 %v3249, %v3905
    %v4162 = vadd.f32 %v3250, %v3906
    %v4163 = vadd.f32 %v3251, %v3907
    %v4164 = vadd.f32 %v3252, %v3908
    %v4165 = vadd.f32 %v3253, %v3909
    %v4166 = vadd.f32 %v3254, %v3910
    %v4167 = vadd.f32 %v3255, %v3911
    %v4168 = vadd.f32 %v3256, %v3912
    %v4169 = vadd.f32 %v3257, %v3913
    %v4170 = vadd.f32 %v3258, %v3914
    %v4171 = vadd.f32 %v3259, %v3915
    %v4172 = vadd.f32 %v3260, %v3916
    %v4173 = vadd.f32 %v3261, %v3917
    %v4174 = vadd.f32 %v3262, %v3918
    %v4175 = vadd.f32 %v3263, %v3919
    %v4176 = vadd.f32 %v3264, %v3920
    %v4177 = vadd.f32 %v3265, %v3921
    %v4178 = vadd.f32 %v3266, %v3922
    %v4179 = vadd.f32 %v3267, %v3923
    %v4180 = vadd.f32 %v3268, %v3924
    %v4181 = vadd.f32 %v3269, %v3925
    %v4182 = vadd.f32 %v3270, %v3926
    %v4183 = vadd.f32 %v3271, %v3927
    %v4184 = vadd.f32 %v3272, %v3928
    %v4185 = vadd.f32 %v3273, %v3929
    %v4186 = vadd.f32 %v3274, %v3930
    %v4187 = vadd.f32 %v3275, %v3931
    %v4188 = vadd.f32 %v3276, %v3932
    %v4189 = vadd.f32 %v3277, %v3933
    %v4190 = vadd.f32 %v3278, %v3934
    %v4191 = vadd.f32 %v3279, %v3935
    %v4192 = vadd.f32 %v3280, %v3936
    %v4193 = vadd.f32 %v3281, %v3937
    %v4194 = vadd.f32 %v3282, %v3938
    %v4195 = vadd.f32 %v3283, %v3939
    %v4196 = vadd.f32 %v3284, %v3940
    %v4197 = vadd.s32 %v3285, 1
    %v4198 = vadd.s32 %v3286, 1
    %v4199 = vadd.s32 %v3287, 1
    %v4200 = vadd.s32 %v3288, 1
    %v4201 = vlaneseq
    %v4202 = vshrl.u32 %v4201, 7
    %v4203 = vsub.s32 1, %v4202
    %v4204 = vrot.slane %v4197, %v4203
    %v4205 = vlaneseq
    %v4206 = vshrl.u32 %v4205, 7
    %v4207 = vsub.s32 5, %v4206
    %v4208 = vrot.slane %v4197, %v4207
    %v4209 = vlaneseq
    %v4210 = vshrl.u32 %v4209, 7
    %v4211 = vsub.s32 1, %v4210
    %v4212 = vrot.slane %v4198, %v4211
    %v4213 = vlaneseq
    %v4214 = vshrl.u32 %v4213, 7
    %v4215 = vsub.s32 5, %v4214
    %v4216 = vrot.slane %v4198, %v4215
    %v4217 = vlaneseq
    %v4218 = vshrl.u32 %v4217, 7
    %v4219 = vsub.s32 1, %v4218
    %v4220 = vrot.slane %v4199, %v4219
    %v4221 = vlaneseq
    %v4222 = vshrl.u32 %v4221, 7
    %v4223 = vsub.s32 5, %v4222
    %v4224 = vrot.slane %v4199, %v4223
    %v4225 = vlaneseq
    %v4226 = vshrl.u32 %v4225, 7
    %v4227 = vsub.s32 1, %v4226
    %v4228 = vrot.slane %v4200, %v4227
    %v4229 = vlaneseq
    %v4230 = vshrl.u32 %v4229, 7
    %v4231 = vsub.s32 5, %v4230
    %v4232 = vrot.slane %v4200, %v4231
    %v4233 = vlaneseq
    %v4234 = vshrl.u32 %v4233, 7
    %v4235 = vsub.s32 1, %v4234
    %v4236 = vrot.slane %v4204, %v4235
    %v4237 = vlaneseq
    %v4238 = vshrl.u32 %v4237, 7
    %v4239 = vsub.s32 1, %v4238
    %v4240 = vrot.slane %v4208, %v4239
    %v4241 = vlaneseq
    %v4242 = vshrl.u32 %v4241, 7
    %v4243 = vsub.s32 1, %v4242
    %v4244 = vrot.slane %v4212, %v4243
    %v4245 = vlaneseq
    %v4246 = vshrl.u32 %v4245, 7
    %v4247 = vsub.s32 1, %v4246
    %v4248 = vrot.slane %v4216, %v4247
    %v4249 = vlaneseq
    %v4250 = vshrl.u32 %v4249, 7
    %v4251 = vsub.s32 1, %v4250
    %v4252 = vrot.slane %v4220, %v4251
    %v4253 = vlaneseq
    %v4254 = vshrl.u32 %v4253, 7
    %v4255 = vsub.s32 1, %v4254
    %v4256 = vrot.slane %v4224, %v4255
    %v4257 = vlaneseq
    %v4258 = vshrl.u32 %v4257, 7
    %v4259 = vsub.s32 1, %v4258
    %v4260 = vrot.slane %v4228, %v4259
    %v4261 = vlaneseq
    %v4262 = vshrl.u32 %v4261, 7
    %v4263 = vsub.s32 1, %v4262
    %v4264 = vrot.slane %v4232, %v4263
    %vm4265 = vcmp.eq.s32.totalorder %v1633, %v4236
    %vm4266 = vcmp.eq.s32.totalorder %v1633, %v4240
    %vm4267 = vcmp.eq.s32.totalorder %v1633, %v4244
    %vm4268 = vcmp.eq.s32.totalorder %v1633, %v4248
    %vm4269 = vcmp.eq.s32.totalorder %v1633, %v4252
    %vm4270 = vcmp.eq.s32.totalorder %v1633, %v4256
    %vm4271 = vcmp.eq.s32.totalorder %v1633, %v4260
    %vm4272 = vcmp.eq.s32.totalorder %v1633, %v4264
    %vm4273 = vcmp.eq.s32.totalorder %v1634, %v4236
    %vm4274 = vcmp.eq.s32.totalorder %v1634, %v4240
    %vm4275 = vcmp.eq.s32.totalorder %v1634, %v4244
    %vm4276 = vcmp.eq.s32.totalorder %v1634, %v4248
    %vm4277 = vcmp.eq.s32.totalorder %v1634, %v4252
    %vm4278 = vcmp.eq.s32.totalorder %v1634, %v4256
    %vm4279 = vcmp.eq.s32.totalorder %v1634, %v4260
    %vm4280 = vcmp.eq.s32.totalorder %v1634, %v4264
    %vm4281 = vcmp.eq.s32.totalorder %v1635, %v4236
    %vm4282 = vcmp.eq.s32.totalorder %v1635, %v4240
    %vm4283 = vcmp.eq.s32.totalorder %v1635, %v4244
    %vm4284 = vcmp.eq.s32.totalorder %v1635, %v4248
    %vm4285 = vcmp.eq.s32.totalorder %v1635, %v4252
    %vm4286 = vcmp.eq.s32.totalorder %v1635, %v4256
    %vm4287 = vcmp.eq.s32.totalorder %v1635, %v4260
    %vm4288 = vcmp.eq.s32.totalorder %v1635, %v4264
    %vm4289 = vcmp.eq.s32.totalorder %v1636, %v4236
    %vm4290 = vcmp.eq.s32.totalorder %v1636, %v4240
    %vm4291 = vcmp.eq.s32.totalorder %v1636, %v4244
    %vm4292 = vcmp.eq.s32.totalorder %v1636, %v4248
    %vm4293 = vcmp.eq.s32.totalorder %v1636, %v4252
    %vm4294 = vcmp.eq.s32.totalorder %v1636, %v4256
    %vm4295 = vcmp.eq.s32.totalorder %v1636, %v4260
    %vm4296 = vcmp.eq.s32.totalorder %v1636, %v4264
    %vm4297 = vcmp.eq.s32.totalorder %v1637, %v4236
    %vm4298 = vcmp.eq.s32.totalorder %v1637, %v4240
    %vm4299 = vcmp.eq.s32.totalorder %v1637, %v4244
    %vm4300 = vcmp.eq.s32.totalorder %v1637, %v4248
    %vm4301 = vcmp.eq.s32.totalorder %v1637, %v4252
    %vm4302 = vcmp.eq.s32.totalorder %v1637, %v4256
    %vm4303 = vcmp.eq.s32.totalorder %v1637, %v4260
    %vm4304 = vcmp.eq.s32.totalorder %v1637, %v4264
    %vm4305 = vcmp.eq.s32.totalorder %v1638, %v4236
    %vm4306 = vcmp.eq.s32.totalorder %v1638, %v4240
    %vm4307 = vcmp.eq.s32.totalorder %v1638, %v4244
    %vm4308 = vcmp.eq.s32.totalorder %v1638, %v4248
    %vm4309 = vcmp.eq.s32.totalorder %v1638, %v4252
    %vm4310 = vcmp.eq.s32.totalorder %v1638, %v4256
    %vm4311 = vcmp.eq.s32.totalorder %v1638, %v4260
    %vm4312 = vcmp.eq.s32.totalorder %v1638, %v4264
    %vm4313 = vcmp.eq.s32.totalorder %v1639, %v4236
    %vm4314 = vcmp.eq.s32.totalorder %v1639, %v4240
    %vm4315 = vcmp.eq.s32.totalorder %v1639, %v4244
    %vm4316 = vcmp.eq.s32.totalorder %v1639, %v4248
    %vm4317 = vcmp.eq.s32.totalorder %v1639, %v4252
    %vm4318 = vcmp.eq.s32.totalorder %v1639, %v4256
    %vm4319 = vcmp.eq.s32.totalorder %v1639, %v4260
    %vm4320 = vcmp.eq.s32.totalorder %v1639, %v4264
    %vm4321 = vcmp.eq.s32.totalorder %v1640, %v4236
    %vm4322 = vcmp.eq.s32.totalorder %v1640, %v4240
    %vm4323 = vcmp.eq.s32.totalorder %v1640, %v4244
    %vm4324 = vcmp.eq.s32.totalorder %v1640, %v4248
    %vm4325 = vcmp.eq.s32.totalorder %v1640, %v4252
    %vm4326 = vcmp.eq.s32.totalorder %v1640, %v4256
    %vm4327 = vcmp.eq.s32.totalorder %v1640, %v4260
    %vm4328 = vcmp.eq.s32.totalorder %v1640, %v4264
    %vm4329 = vcmp.eq.s32.totalorder %v1641, %v4236
    %vm4330 = vcmp.eq.s32.totalorder %v1641, %v4240
    %vm4331 = vcmp.eq.s32.totalorder %v1641, %v4244
    %vm4332 = vcmp.eq.s32.totalorder %v1641, %v4248
    %vm4333 = vcmp.eq.s32.totalorder %v1641, %v4252
    %vm4334 = vcmp.eq.s32.totalorder %v1641, %v4256
    %vm4335 = vcmp.eq.s32.totalorder %v1641, %v4260
    %vm4336 = vcmp.eq.s32.totalorder %v1641, %v4264
    %vm4337 = vcmp.eq.s32.totalorder %v1642, %v4236
    %vm4338 = vcmp.eq.s32.totalorder %v1642, %v4240
    %vm4339 = vcmp.eq.s32.totalorder %v1642, %v4244
    %vm4340 = vcmp.eq.s32.totalorder %v1642, %v4248
    %vm4341 = vcmp.eq.s32.totalorder %v1642, %v4252
    %vm4342 = vcmp.eq.s32.totalorder %v1642, %v4256
    %vm4343 = vcmp.eq.s32.totalorder %v1642, %v4260
    %vm4344 = vcmp.eq.s32.totalorder %v1642, %v4264
    %vm4345 = vcmp.eq.s32.totalorder %v1643, %v4236
    %vm4346 = vcmp.eq.s32.totalorder %v1643, %v4240
    %vm4347 = vcmp.eq.s32.totalorder %v1643, %v4244
    %vm4348 = vcmp.eq.s32.totalorder %v1643, %v4248
    %vm4349 = vcmp.eq.s32.totalorder %v1643, %v4252
    %vm4350 = vcmp.eq.s32.totalorder %v1643, %v4256
    %vm4351 = vcmp.eq.s32.totalorder %v1643, %v4260
    %vm4352 = vcmp.eq.s32.totalorder %v1643, %v4264
    %vm4353 = vcmp.eq.s32.totalorder %v1644, %v4236
    %vm4354 = vcmp.eq.s32.totalorder %v1644, %v4240
    %vm4355 = vcmp.eq.s32.totalorder %v1644, %v4244
    %vm4356 = vcmp.eq.s32.totalorder %v1644, %v4248
    %vm4357 = vcmp.eq.s32.totalorder %v1644, %v4252
    %vm4358 = vcmp.eq.s32.totalorder %v1644, %v4256
    %vm4359 = vcmp.eq.s32.totalorder %v1644, %v4260
    %vm4360 = vcmp.eq.s32.totalorder %v1644, %v4264
    %vm4361 = vcmp.eq.s32.totalorder %v1645, %v4236
    %vm4362 = vcmp.eq.s32.totalorder %v1645, %v4240
    %vm4363 = vcmp.eq.s32.totalorder %v1645, %v4244
    %vm4364 = vcmp.eq.s32.totalorder %v1645, %v4248
    %vm4365 = vcmp.eq.s32.totalorder %v1645, %v4252
    %vm4366 = vcmp.eq.s32.totalorder %v1645, %v4256
    %vm4367 = vcmp.eq.s32.totalorder %v1645, %v4260
    %vm4368 = vcmp.eq.s32.totalorder %v1645, %v4264
    %vm4369 = vcmp.eq.s32.totalorder %v1646, %v4236
    %vm4370 = vcmp.eq.s32.totalorder %v1646, %v4240
    %vm4371 = vcmp.eq.s32.totalorder %v1646, %v4244
    %vm4372 = vcmp.eq.s32.totalorder %v1646, %v4248
    %vm4373 = vcmp.eq.s32.totalorder %v1646, %v4252
    %vm4374 = vcmp.eq.s32.totalorder %v1646, %v4256
    %vm4375 = vcmp.eq.s32.totalorder %v1646, %v4260
    %vm4376 = vcmp.eq.s32.totalorder %v1646, %v4264
    %vm4377 = vcmp.eq.s32.totalorder %v1647, %v4236
    %vm4378 = vcmp.eq.s32.totalorder %v1647, %v4240
    %vm4379 = vcmp.eq.s32.totalorder %v1647, %v4244
    %vm4380 = vcmp.eq.s32.totalorder %v1647, %v4248
    %vm4381 = vcmp.eq.s32.totalorder %v1647, %v4252
    %vm4382 = vcmp.eq.s32.totalorder %v1647, %v4256
    %vm4383 = vcmp.eq.s32.totalorder %v1647, %v4260
    %vm4384 = vcmp.eq.s32.totalorder %v1647, %v4264
    %vm4385 = vcmp.eq.s32.totalorder %v1648, %v4236
    %vm4386 = vcmp.eq.s32.totalorder %v1648, %v4240
    %vm4387 = vcmp.eq.s32.totalorder %v1648, %v4244
    %vm4388 = vcmp.eq.s32.totalorder %v1648, %v4248
    %vm4389 = vcmp.eq.s32.totalorder %v1648, %v4252
    %vm4390 = vcmp.eq.s32.totalorder %v1648, %v4256
    %vm4391 = vcmp.eq.s32.totalorder %v1648, %v4260
    %vm4392 = vcmp.eq.s32.totalorder %v1648, %v4264
    %vm4393 = vcmp.eq.s32.totalorder %v1649, %v4236
    %vm4394 = vcmp.eq.s32.totalorder %v1649, %v4240
    %vm4395 = vcmp.eq.s32.totalorder %v1649, %v4244
    %vm4396 = vcmp.eq.s32.totalorder %v1649, %v4248
    %vm4397 = vcmp.eq.s32.totalorder %v1649, %v4252
    %vm4398 = vcmp.eq.s32.totalorder %v1649, %v4256
    %vm4399 = vcmp.eq.s32.totalorder %v1649, %v4260
    %vm4400 = vcmp.eq.s32.totalorder %v1649, %v4264
    %vm4401 = vcmp.eq.s32.totalorder %v1650, %v4236
    %vm4402 = vcmp.eq.s32.totalorder %v1650, %v4240
    %vm4403 = vcmp.eq.s32.totalorder %v1650, %v4244
    %vm4404 = vcmp.eq.s32.totalorder %v1650, %v4248
    %vm4405 = vcmp.eq.s32.totalorder %v1650, %v4252
    %vm4406 = vcmp.eq.s32.totalorder %v1650, %v4256
    %vm4407 = vcmp.eq.s32.totalorder %v1650, %v4260
    %vm4408 = vcmp.eq.s32.totalorder %v1650, %v4264
    %vm4409 = vcmp.eq.s32.totalorder %v1651, %v4236
    %vm4410 = vcmp.eq.s32.totalorder %v1651, %v4240
    %vm4411 = vcmp.eq.s32.totalorder %v1651, %v4244
    %vm4412 = vcmp.eq.s32.totalorder %v1651, %v4248
    %vm4413 = vcmp.eq.s32.totalorder %v1651, %v4252
    %vm4414 = vcmp.eq.s32.totalorder %v1651, %v4256
    %vm4415 = vcmp.eq.s32.totalorder %v1651, %v4260
    %vm4416 = vcmp.eq.s32.totalorder %v1651, %v4264
    %vm4417 = vcmp.eq.s32.totalorder %v1652, %v4236
    %vm4418 = vcmp.eq.s32.totalorder %v1652, %v4240
    %vm4419 = vcmp.eq.s32.totalorder %v1652, %v4244
    %vm4420 = vcmp.eq.s32.totalorder %v1652, %v4248
    %vm4421 = vcmp.eq.s32.totalorder %v1652, %v4252
    %vm4422 = vcmp.eq.s32.totalorder %v1652, %v4256
    %vm4423 = vcmp.eq.s32.totalorder %v1652, %v4260
    %vm4424 = vcmp.eq.s32.totalorder %v1652, %v4264
    %vm4425 = vcmp.eq.s32.totalorder %v1653, %v4236
    %vm4426 = vcmp.eq.s32.totalorder %v1653, %v4240
    %vm4427 = vcmp.eq.s32.totalorder %v1653, %v4244
    %vm4428 = vcmp.eq.s32.totalorder %v1653, %v4248
    %vm4429 = vcmp.eq.s32.totalorder %v1653, %v4252
    %vm4430 = vcmp.eq.s32.totalorder %v1653, %v4256
    %vm4431 = vcmp.eq.s32.totalorder %v1653, %v4260
    %vm4432 = vcmp.eq.s32.totalorder %v1653, %v4264
    %vm4433 = vcmp.eq.s32.totalorder %v1654, %v4236
    %vm4434 = vcmp.eq.s32.totalorder %v1654, %v4240
    %vm4435 = vcmp.eq.s32.totalorder %v1654, %v4244
    %vm4436 = vcmp.eq.s32.totalorder %v1654, %v4248
    %vm4437 = vcmp.eq.s32.totalorder %v1654, %v4252
    %vm4438 = vcmp.eq.s32.totalorder %v1654, %v4256
    %vm4439 = vcmp.eq.s32.totalorder %v1654, %v4260
    %vm4440 = vcmp.eq.s32.totalorder %v1654, %v4264
    %vm4441 = vcmp.eq.s32.totalorder %v1655, %v4236
    %vm4442 = vcmp.eq.s32.totalorder %v1655, %v4240
    %vm4443 = vcmp.eq.s32.totalorder %v1655, %v4244
    %vm4444 = vcmp.eq.s32.totalorder %v1655, %v4248
    %vm4445 = vcmp.eq.s32.totalorder %v1655, %v4252
    %vm4446 = vcmp.eq.s32.totalorder %v1655, %v4256
    %vm4447 = vcmp.eq.s32.totalorder %v1655, %v4260
    %vm4448 = vcmp.eq.s32.totalorder %v1655, %v4264
    %vm4449 = vcmp.eq.s32.totalorder %v1656, %v4236
    %vm4450 = vcmp.eq.s32.totalorder %v1656, %v4240
    %vm4451 = vcmp.eq.s32.totalorder %v1656, %v4244
    %vm4452 = vcmp.eq.s32.totalorder %v1656, %v4248
    %vm4453 = vcmp.eq.s32.totalorder %v1656, %v4252
    %vm4454 = vcmp.eq.s32.totalorder %v1656, %v4256
    %vm4455 = vcmp.eq.s32.totalorder %v1656, %v4260
    %vm4456 = vcmp.eq.s32.totalorder %v1656, %v4264
    %vm4457 = vcmp.eq.s32.totalorder %v1657, %v4236
    %vm4458 = vcmp.eq.s32.totalorder %v1657, %v4240
    %vm4459 = vcmp.eq.s32.totalorder %v1657, %v4244
    %vm4460 = vcmp.eq.s32.totalorder %v1657, %v4248
    %vm4461 = vcmp.eq.s32.totalorder %v1657, %v4252
    %vm4462 = vcmp.eq.s32.totalorder %v1657, %v4256
    %vm4463 = vcmp.eq.s32.totalorder %v1657, %v4260
    %vm4464 = vcmp.eq.s32.totalorder %v1657, %v4264
    %vm4465 = vcmp.eq.s32.totalorder %v1658, %v4236
    %vm4466 = vcmp.eq.s32.totalorder %v1658, %v4240
    %vm4467 = vcmp.eq.s32.totalorder %v1658, %v4244
    %vm4468 = vcmp.eq.s32.totalorder %v1658, %v4248
    %vm4469 = vcmp.eq.s32.totalorder %v1658, %v4252
    %vm4470 = vcmp.eq.s32.totalorder %v1658, %v4256
    %vm4471 = vcmp.eq.s32.totalorder %v1658, %v4260
    %vm4472 = vcmp.eq.s32.totalorder %v1658, %v4264
    %vm4473 = vcmp.eq.s32.totalorder %v1659, %v4236
    %vm4474 = vcmp.eq.s32.totalorder %v1659, %v4240
    %vm4475 = vcmp.eq.s32.totalorder %v1659, %v4244
    %vm4476 = vcmp.eq.s32.totalorder %v1659, %v4248
    %vm4477 = vcmp.eq.s32.totalorder %v1659, %v4252
    %vm4478 = vcmp.eq.s32.totalorder %v1659, %v4256
    %vm4479 = vcmp.eq.s32.totalorder %v1659, %v4260
    %vm4480 = vcmp.eq.s32.totalorder %v1659, %v4264
    %vm4481 = vcmp.eq.s32.totalorder %v1660, %v4236
    %vm4482 = vcmp.eq.s32.totalorder %v1660, %v4240
    %vm4483 = vcmp.eq.s32.totalorder %v1660, %v4244
    %vm4484 = vcmp.eq.s32.totalorder %v1660, %v4248
    %vm4485 = vcmp.eq.s32.totalorder %v1660, %v4252
    %vm4486 = vcmp.eq.s32.totalorder %v1660, %v4256
    %vm4487 = vcmp.eq.s32.totalorder %v1660, %v4260
    %vm4488 = vcmp.eq.s32.totalorder %v1660, %v4264
    %vm4489 = vcmp.eq.s32.totalorder %v1661, %v4236
    %vm4490 = vcmp.eq.s32.totalorder %v1661, %v4240
    %vm4491 = vcmp.eq.s32.totalorder %v1661, %v4244
    %vm4492 = vcmp.eq.s32.totalorder %v1661, %v4248
    %vm4493 = vcmp.eq.s32.totalorder %v1661, %v4252
    %vm4494 = vcmp.eq.s32.totalorder %v1661, %v4256
    %vm4495 = vcmp.eq.s32.totalorder %v1661, %v4260
    %vm4496 = vcmp.eq.s32.totalorder %v1661, %v4264
    %vm4497 = vcmp.eq.s32.totalorder %v1662, %v4236
    %vm4498 = vcmp.eq.s32.totalorder %v1662, %v4240
    %vm4499 = vcmp.eq.s32.totalorder %v1662, %v4244
    %vm4500 = vcmp.eq.s32.totalorder %v1662, %v4248
    %vm4501 = vcmp.eq.s32.totalorder %v1662, %v4252
    %vm4502 = vcmp.eq.s32.totalorder %v1662, %v4256
    %vm4503 = vcmp.eq.s32.totalorder %v1662, %v4260
    %vm4504 = vcmp.eq.s32.totalorder %v1662, %v4264
    %vm4505 = vcmp.eq.s32.totalorder %v1663, %v4236
    %vm4506 = vcmp.eq.s32.totalorder %v1663, %v4240
    %vm4507 = vcmp.eq.s32.totalorder %v1663, %v4244
    %vm4508 = vcmp.eq.s32.totalorder %v1663, %v4248
    %vm4509 = vcmp.eq.s32.totalorder %v1663, %v4252
    %vm4510 = vcmp.eq.s32.totalorder %v1663, %v4256
    %vm4511 = vcmp.eq.s32.totalorder %v1663, %v4260
    %vm4512 = vcmp.eq.s32.totalorder %v1663, %v4264
    %vm4513 = vcmp.eq.s32.totalorder %v1664, %v4236
    %vm4514 = vcmp.eq.s32.totalorder %v1664, %v4240
    %vm4515 = vcmp.eq.s32.totalorder %v1664, %v4244
    %vm4516 = vcmp.eq.s32.totalorder %v1664, %v4248
    %vm4517 = vcmp.eq.s32.totalorder %v1664, %v4252
    %vm4518 = vcmp.eq.s32.totalorder %v1664, %v4256
    %vm4519 = vcmp.eq.s32.totalorder %v1664, %v4260
    %vm4520 = vcmp.eq.s32.totalorder %v1664, %v4264
    %v4525 = vlaneseq
    %v4526 = vshrl.u32 %v4525, 7
    %v4527 = vsub.s32 1, %v4526
    %v4528 = vrot.slane %v1717, %v4527
    %v4529 = vlaneseq
    %v4530 = vshrl.u32 %v4529, 7
    %v4531 = vsub.s32 5, %v4530
    %v4532 = vrot.slane %v1717, %v4531
    %v4533 = vlaneseq
    %v4534 = vshrl.u32 %v4533, 7
    %v4535 = vsub.s32 1, %v4534
    %v4536 = vrot.slane %v1718, %v4535
    %v4537 = vlaneseq
    %v4538 = vshrl.u32 %v4537, 7
    %v4539 = vsub.s32 5, %v4538
    %v4540 = vrot.slane %v1718, %v4539
    %v4541 = vlaneseq
    %v4542 = vshrl.u32 %v4541, 7
    %v4543 = vsub.s32 1, %v4542
    %v4544 = vrot.slane %v1719, %v4543
    %v4545 = vlaneseq
    %v4546 = vshrl.u32 %v4545, 7
    %v4547 = vsub.s32 5, %v4546
    %v4548 = vrot.slane %v1719, %v4547
    %v4549 = vlaneseq
    %v4550 = vshrl.u32 %v4549, 7
    %v4551 = vsub.s32 1, %v4550
    %v4552 = vrot.slane %v1720, %v4551
    %v4553 = vlaneseq
    %v4554 = vshrl.u32 %v4553, 7
    %v4555 = vsub.s32 5, %v4554
    %v4556 = vrot.slane %v1720, %v4555
    %v4565 = vlaneseq
    %v4566 = vshrl.u32 %v4565, 7
    %v4567 = vsub.s32 1, %v4566
    %v4568 = vrot.slane %v4528, %v4567
    %v4569 = vlaneseq
    %v4570 = vshrl.u32 %v4569, 7
    %v4571 = vsub.s32 1, %v4570
    %v4572 = vrot.slane %v4532, %v4571
    %v4573 = vlaneseq
    %v4574 = vshrl.u32 %v4573, 7
    %v4575 = vsub.s32 1, %v4574
    %v4576 = vrot.slane %v4536, %v4575
    %v4577 = vlaneseq
    %v4578 = vshrl.u32 %v4577, 7
    %v4579 = vsub.s32 1, %v4578
    %v4580 = vrot.slane %v4540, %v4579
    %v4581 = vlaneseq
    %v4582 = vshrl.u32 %v4581, 7
    %v4583 = vsub.s32 1, %v4582
    %v4584 = vrot.slane %v4544, %v4583
    %v4585 = vlaneseq
    %v4586 = vshrl.u32 %v4585, 7
    %v4587 = vsub.s32 1, %v4586
    %v4588 = vrot.slane %v4548, %v4587
    %v4589 = vlaneseq
    %v4590 = vshrl.u32 %v4589, 7
    %v4591 = vsub.s32 1, %v4590
    %v4592 = vrot.slane %v4552, %v4591
    %v4593 = vlaneseq
    %v4594 = vshrl.u32 %v4593, 7
    %v4595 = vsub.s32 1, %v4594
    %v4596 = vrot.slane %v4556, %v4595
    %v4597 = vsel %vm4265, %v4568, 0.0
    %v4598 = vsel %vm4266, %v4572, 0.0
    %v4599 = vsel %vm4267, %v4576, 0.0
    %v4600 = vsel %vm4268, %v4580, 0.0
    %v4601 = vsel %vm4269, %v4584, 0.0
    %v4602 = vsel %vm4270, %v4588, 0.0
    %v4603 = vsel %vm4271, %v4592, 0.0
    %v4604 = vsel %vm4272, %v4596, 0.0
    %v4605 = vsel %vm4273, %v4568, 0.0
    %v4606 = vsel %vm4274, %v4572, 0.0
    %v4607 = vsel %vm4275, %v4576, 0.0
    %v4608 = vsel %vm4276, %v4580, 0.0
    %v4609 = vsel %vm4277, %v4584, 0.0
    %v4610 = vsel %vm4278, %v4588, 0.0
    %v4611 = vsel %vm4279, %v4592, 0.0
    %v4612 = vsel %vm4280, %v4596, 0.0
    %v4613 = vsel %vm4281, %v4568, 0.0
    %v4614 = vsel %vm4282, %v4572, 0.0
    %v4615 = vsel %vm4283, %v4576, 0.0
    %v4616 = vsel %vm4284, %v4580, 0.0
    %v4617 = vsel %vm4285, %v4584, 0.0
    %v4618 = vsel %vm4286, %v4588, 0.0
    %v4619 = vsel %vm4287, %v4592, 0.0
    %v4620 = vsel %vm4288, %v4596, 0.0
    %v4621 = vsel %vm4289, %v4568, 0.0
    %v4622 = vsel %vm4290, %v4572, 0.0
    %v4623 = vsel %vm4291, %v4576, 0.0
    %v4624 = vsel %vm4292, %v4580, 0.0
    %v4625 = vsel %vm4293, %v4584, 0.0
    %v4626 = vsel %vm4294, %v4588, 0.0
    %v4627 = vsel %vm4295, %v4592, 0.0
    %v4628 = vsel %vm4296, %v4596, 0.0
    %v4629 = vsel %vm4297, %v4568, 0.0
    %v4630 = vsel %vm4298, %v4572, 0.0
    %v4631 = vsel %vm4299, %v4576, 0.0
    %v4632 = vsel %vm4300, %v4580, 0.0
    %v4633 = vsel %vm4301, %v4584, 0.0
    %v4634 = vsel %vm4302, %v4588, 0.0
    %v4635 = vsel %vm4303, %v4592, 0.0
    %v4636 = vsel %vm4304, %v4596, 0.0
    %v4637 = vsel %vm4305, %v4568, 0.0
    %v4638 = vsel %vm4306, %v4572, 0.0
    %v4639 = vsel %vm4307, %v4576, 0.0
    %v4640 = vsel %vm4308, %v4580, 0.0
    %v4641 = vsel %vm4309, %v4584, 0.0
    %v4642 = vsel %vm4310, %v4588, 0.0
    %v4643 = vsel %vm4311, %v4592, 0.0
    %v4644 = vsel %vm4312, %v4596, 0.0
    %v4645 = vsel %vm4313, %v4568, 0.0
    %v4646 = vsel %vm4314, %v4572, 0.0
    %v4647 = vsel %vm4315, %v4576, 0.0
    %v4648 = vsel %vm4316, %v4580, 0.0
    %v4649 = vsel %vm4317, %v4584, 0.0
    %v4650 = vsel %vm4318, %v4588, 0.0
    %v4651 = vsel %vm4319, %v4592, 0.0
    %v4652 = vsel %vm4320, %v4596, 0.0
    %v4653 = vsel %vm4321, %v4568, 0.0
    %v4654 = vsel %vm4322, %v4572, 0.0
    %v4655 = vsel %vm4323, %v4576, 0.0
    %v4656 = vsel %vm4324, %v4580, 0.0
    %v4657 = vsel %vm4325, %v4584, 0.0
    %v4658 = vsel %vm4326, %v4588, 0.0
    %v4659 = vsel %vm4327, %v4592, 0.0
    %v4660 = vsel %vm4328, %v4596, 0.0
    %v4661 = vsel %vm4329, %v4568, 0.0
    %v4662 = vsel %vm4330, %v4572, 0.0
    %v4663 = vsel %vm4331, %v4576, 0.0
    %v4664 = vsel %vm4332, %v4580, 0.0
    %v4665 = vsel %vm4333, %v4584, 0.0
    %v4666 = vsel %vm4334, %v4588, 0.0
    %v4667 = vsel %vm4335, %v4592, 0.0
    %v4668 = vsel %vm4336, %v4596, 0.0
    %v4669 = vsel %vm4337, %v4568, 0.0
    %v4670 = vsel %vm4338, %v4572, 0.0
    %v4671 = vsel %vm4339, %v4576, 0.0
    %v4672 = vsel %vm4340, %v4580, 0.0
    %v4673 = vsel %vm4341, %v4584, 0.0
    %v4674 = vsel %vm4342, %v4588, 0.0
    %v4675 = vsel %vm4343, %v4592, 0.0
    %v4676 = vsel %vm4344, %v4596, 0.0
    %v4677 = vsel %vm4345, %v4568, 0.0
    %v4678 = vsel %vm4346, %v4572, 0.0
    %v4679 = vsel %vm4347, %v4576, 0.0
    %v4680 = vsel %vm4348, %v4580, 0.0
    %v4681 = vsel %vm4349, %v4584, 0.0
    %v4682 = vsel %vm4350, %v4588, 0.0
    %v4683 = vsel %vm4351, %v4592, 0.0
    %v4684 = vsel %vm4352, %v4596, 0.0
    %v4685 = vsel %vm4353, %v4568, 0.0
    %v4686 = vsel %vm4354, %v4572, 0.0
    %v4687 = vsel %vm4355, %v4576, 0.0
    %v4688 = vsel %vm4356, %v4580, 0.0
    %v4689 = vsel %vm4357, %v4584, 0.0
    %v4690 = vsel %vm4358, %v4588, 0.0
    %v4691 = vsel %vm4359, %v4592, 0.0
    %v4692 = vsel %vm4360, %v4596, 0.0
    %v4693 = vsel %vm4361, %v4568, 0.0
    %v4694 = vsel %vm4362, %v4572, 0.0
    %v4695 = vsel %vm4363, %v4576, 0.0
    %v4696 = vsel %vm4364, %v4580, 0.0
    %v4697 = vsel %vm4365, %v4584, 0.0
    %v4698 = vsel %vm4366, %v4588, 0.0
    %v4699 = vsel %vm4367, %v4592, 0.0
    %v4700 = vsel %vm4368, %v4596, 0.0
    %v4701 = vsel %vm4369, %v4568, 0.0
    %v4702 = vsel %vm4370, %v4572, 0.0
    %v4703 = vsel %vm4371, %v4576, 0.0
    %v4704 = vsel %vm4372, %v4580, 0.0
    %v4705 = vsel %vm4373, %v4584, 0.0
    %v4706 = vsel %vm4374, %v4588, 0.0
    %v4707 = vsel %vm4375, %v4592, 0.0
    %v4708 = vsel %vm4376, %v4596, 0.0
    %v4709 = vsel %vm4377, %v4568, 0.0
    %v4710 = vsel %vm4378, %v4572, 0.0
    %v4711 = vsel %vm4379, %v4576, 0.0
    %v4712 = vsel %vm4380, %v4580, 0.0
    %v4713 = vsel %vm4381, %v4584, 0.0
    %v4714 = vsel %vm4382, %v4588, 0.0
    %v4715 = vsel %vm4383, %v4592, 0.0
    %v4716 = vsel %vm4384, %v4596, 0.0
    %v4717 = vsel %vm4385, %v4568, 0.0
    %v4718 = vsel %vm4386, %v4572, 0.0
    %v4719 = vsel %vm4387, %v4576, 0.0
    %v4720 = vsel %vm4388, %v4580, 0.0
    %v4721 = vsel %vm4389, %v4584, 0.0
    %v4722 = vsel %vm4390, %v4588, 0.0
    %v4723 = vsel %vm4391, %v4592, 0.0
    %v4724 = vsel %vm4392, %v4596, 0.0
    %v4725 = vsel %vm4393, %v4568, 0.0
    %v4726 = vsel %vm4394, %v4572, 0.0
    %v4727 = vsel %vm4395, %v4576, 0.0
    %v4728 = vsel %vm4396, %v4580, 0.0
    %v4729 = vsel %vm4397, %v4584, 0.0
    %v4730 = vsel %vm4398, %v4588, 0.0
    %v4731 = vsel %vm4399, %v4592, 0.0
    %v4732 = vsel %vm4400, %v4596, 0.0
    %v4733 = vsel %vm4401, %v4568, 0.0
    %v4734 = vsel %vm4402, %v4572, 0.0
    %v4735 = vsel %vm4403, %v4576, 0.0
    %v4736 = vsel %vm4404, %v4580, 0.0
    %v4737 = vsel %vm4405, %v4584, 0.0
    %v4738 = vsel %vm4406, %v4588, 0.0
    %v4739 = vsel %vm4407, %v4592, 0.0
    %v4740 = vsel %vm4408, %v4596, 0.0
    %v4741 = vsel %vm4409, %v4568, 0.0
    %v4742 = vsel %vm4410, %v4572, 0.0
    %v4743 = vsel %vm4411, %v4576, 0.0
    %v4744 = vsel %vm4412, %v4580, 0.0
    %v4745 = vsel %vm4413, %v4584, 0.0
    %v4746 = vsel %vm4414, %v4588, 0.0
    %v4747 = vsel %vm4415, %v4592, 0.0
    %v4748 = vsel %vm4416, %v4596, 0.0
    %v4749 = vsel %vm4417, %v4568, 0.0
    %v4750 = vsel %vm4418, %v4572, 0.0
    %v4751 = vsel %vm4419, %v4576, 0.0
    %v4752 = vsel %vm4420, %v4580, 0.0
    %v4753 = vsel %vm4421, %v4584, 0.0
    %v4754 = vsel %vm4422, %v4588, 0.0
    %v4755 = vsel %vm4423, %v4592, 0.0
    %v4756 = vsel %vm4424, %v4596, 0.0
    %v4757 = vsel %vm4425, %v4568, 0.0
    %v4758 = vsel %vm4426, %v4572, 0.0
    %v4759 = vsel %vm4427, %v4576, 0.0
    %v4760 = vsel %vm4428, %v4580, 0.0
    %v4761 = vsel %vm4429, %v4584, 0.0
    %v4762 = vsel %vm4430, %v4588, 0.0
    %v4763 = vsel %vm4431, %v4592, 0.0
    %v4764 = vsel %vm4432, %v4596, 0.0
    %v4765 = vsel %vm4433, %v4568, 0.0
    %v4766 = vsel %vm4434, %v4572, 0.0
    %v4767 = vsel %vm4435, %v4576, 0.0
    %v4768 = vsel %vm4436, %v4580, 0.0
    %v4769 = vsel %vm4437, %v4584, 0.0
    %v4770 = vsel %vm4438, %v4588, 0.0
    %v4771 = vsel %vm4439, %v4592, 0.0
    %v4772 = vsel %vm4440, %v4596, 0.0
    %v4773 = vsel %vm4441, %v4568, 0.0
    %v4774 = vsel %vm4442, %v4572, 0.0
    %v4775 = vsel %vm4443, %v4576, 0.0
    %v4776 = vsel %vm4444, %v4580, 0.0
    %v4777 = vsel %vm4445, %v4584, 0.0
    %v4778 = vsel %vm4446, %v4588, 0.0
    %v4779 = vsel %vm4447, %v4592, 0.0
    %v4780 = vsel %vm4448, %v4596, 0.0
    %v4781 = vsel %vm4449, %v4568, 0.0
    %v4782 = vsel %vm4450, %v4572, 0.0
    %v4783 = vsel %vm4451, %v4576, 0.0
    %v4784 = vsel %vm4452, %v4580, 0.0
    %v4785 = vsel %vm4453, %v4584, 0.0
    %v4786 = vsel %vm4454, %v4588, 0.0
    %v4787 = vsel %vm4455, %v4592, 0.0
    %v4788 = vsel %vm4456, %v4596, 0.0
    %v4789 = vsel %vm4457, %v4568, 0.0
    %v4790 = vsel %vm4458, %v4572, 0.0
    %v4791 = vsel %vm4459, %v4576, 0.0
    %v4792 = vsel %vm4460, %v4580, 0.0
    %v4793 = vsel %vm4461, %v4584, 0.0
    %v4794 = vsel %vm4462, %v4588, 0.0
    %v4795 = vsel %vm4463, %v4592, 0.0
    %v4796 = vsel %vm4464, %v4596, 0.0
    %v4797 = vsel %vm4465, %v4568, 0.0
    %v4798 = vsel %vm4466, %v4572, 0.0
    %v4799 = vsel %vm4467, %v4576, 0.0
    %v4800 = vsel %vm4468, %v4580, 0.0
    %v4801 = vsel %vm4469, %v4584, 0.0
    %v4802 = vsel %vm4470, %v4588, 0.0
    %v4803 = vsel %vm4471, %v4592, 0.0
    %v4804 = vsel %vm4472, %v4596, 0.0
    %v4805 = vsel %vm4473, %v4568, 0.0
    %v4806 = vsel %vm4474, %v4572, 0.0
    %v4807 = vsel %vm4475, %v4576, 0.0
    %v4808 = vsel %vm4476, %v4580, 0.0
    %v4809 = vsel %vm4477, %v4584, 0.0
    %v4810 = vsel %vm4478, %v4588, 0.0
    %v4811 = vsel %vm4479, %v4592, 0.0
    %v4812 = vsel %vm4480, %v4596, 0.0
    %v4813 = vsel %vm4481, %v4568, 0.0
    %v4814 = vsel %vm4482, %v4572, 0.0
    %v4815 = vsel %vm4483, %v4576, 0.0
    %v4816 = vsel %vm4484, %v4580, 0.0
    %v4817 = vsel %vm4485, %v4584, 0.0
    %v4818 = vsel %vm4486, %v4588, 0.0
    %v4819 = vsel %vm4487, %v4592, 0.0
    %v4820 = vsel %vm4488, %v4596, 0.0
    %v4821 = vsel %vm4489, %v4568, 0.0
    %v4822 = vsel %vm4490, %v4572, 0.0
    %v4823 = vsel %vm4491, %v4576, 0.0
    %v4824 = vsel %vm4492, %v4580, 0.0
    %v4825 = vsel %vm4493, %v4584, 0.0
    %v4826 = vsel %vm4494, %v4588, 0.0
    %v4827 = vsel %vm4495, %v4592, 0.0
    %v4828 = vsel %vm4496, %v4596, 0.0
    %v4829 = vsel %vm4497, %v4568, 0.0
    %v4830 = vsel %vm4498, %v4572, 0.0
    %v4831 = vsel %vm4499, %v4576, 0.0
    %v4832 = vsel %vm4500, %v4580, 0.0
    %v4833 = vsel %vm4501, %v4584, 0.0
    %v4834 = vsel %vm4502, %v4588, 0.0
    %v4835 = vsel %vm4503, %v4592, 0.0
    %v4836 = vsel %vm4504, %v4596, 0.0
    %v4837 = vsel %vm4505, %v4568, 0.0
    %v4838 = vsel %vm4506, %v4572, 0.0
    %v4839 = vsel %vm4507, %v4576, 0.0
    %v4840 = vsel %vm4508, %v4580, 0.0
    %v4841 = vsel %vm4509, %v4584, 0.0
    %v4842 = vsel %vm4510, %v4588, 0.0
    %v4843 = vsel %vm4511, %v4592, 0.0
    %v4844 = vsel %vm4512, %v4596, 0.0
    %v4845 = vsel %vm4513, %v4568, 0.0
    %v4846 = vsel %vm4514, %v4572, 0.0
    %v4847 = vsel %vm4515, %v4576, 0.0
    %v4848 = vsel %vm4516, %v4580, 0.0
    %v4849 = vsel %vm4517, %v4584, 0.0
    %v4850 = vsel %vm4518, %v4588, 0.0
    %v4851 = vsel %vm4519, %v4592, 0.0
    %v4852 = vsel %vm4520, %v4596, 0.0
    %v4853 = vadd.f32 %v3941, %v4597
    %v4854 = vadd.f32 %v3942, %v4598
    %v4855 = vadd.f32 %v3943, %v4599
    %v4856 = vadd.f32 %v3944, %v4600
    %v4857 = vadd.f32 %v3945, %v4601
    %v4858 = vadd.f32 %v3946, %v4602
    %v4859 = vadd.f32 %v3947, %v4603
    %v4860 = vadd.f32 %v3948, %v4604
    %v4861 = vadd.f32 %v3949, %v4605
    %v4862 = vadd.f32 %v3950, %v4606
    %v4863 = vadd.f32 %v3951, %v4607
    %v4864 = vadd.f32 %v3952, %v4608
    %v4865 = vadd.f32 %v3953, %v4609
    %v4866 = vadd.f32 %v3954, %v4610
    %v4867 = vadd.f32 %v3955, %v4611
    %v4868 = vadd.f32 %v3956, %v4612
    %v4869 = vadd.f32 %v3957, %v4613
    %v4870 = vadd.f32 %v3958, %v4614
    %v4871 = vadd.f32 %v3959, %v4615
    %v4872 = vadd.f32 %v3960, %v4616
    %v4873 = vadd.f32 %v3961, %v4617
    %v4874 = vadd.f32 %v3962, %v4618
    %v4875 = vadd.f32 %v3963, %v4619
    %v4876 = vadd.f32 %v3964, %v4620
    %v4877 = vadd.f32 %v3965, %v4621
    %v4878 = vadd.f32 %v3966, %v4622
    %v4879 = vadd.f32 %v3967, %v4623
    %v4880 = vadd.f32 %v3968, %v4624
    %v4881 = vadd.f32 %v3969, %v4625
    %v4882 = vadd.f32 %v3970, %v4626
    %v4883 = vadd.f32 %v3971, %v4627
    %v4884 = vadd.f32 %v3972, %v4628
    %v4885 = vadd.f32 %v3973, %v4629
    %v4886 = vadd.f32 %v3974, %v4630
    %v4887 = vadd.f32 %v3975, %v4631
    %v4888 = vadd.f32 %v3976, %v4632
    %v4889 = vadd.f32 %v3977, %v4633
    %v4890 = vadd.f32 %v3978, %v4634
    %v4891 = vadd.f32 %v3979, %v4635
    %v4892 = vadd.f32 %v3980, %v4636
    %v4893 = vadd.f32 %v3981, %v4637
    %v4894 = vadd.f32 %v3982, %v4638
    %v4895 = vadd.f32 %v3983, %v4639
    %v4896 = vadd.f32 %v3984, %v4640
    %v4897 = vadd.f32 %v3985, %v4641
    %v4898 = vadd.f32 %v3986, %v4642
    %v4899 = vadd.f32 %v3987, %v4643
    %v4900 = vadd.f32 %v3988, %v4644
    %v4901 = vadd.f32 %v3989, %v4645
    %v4902 = vadd.f32 %v3990, %v4646
    %v4903 = vadd.f32 %v3991, %v4647
    %v4904 = vadd.f32 %v3992, %v4648
    %v4905 = vadd.f32 %v3993, %v4649
    %v4906 = vadd.f32 %v3994, %v4650
    %v4907 = vadd.f32 %v3995, %v4651
    %v4908 = vadd.f32 %v3996, %v4652
    %v4909 = vadd.f32 %v3997, %v4653
    %v4910 = vadd.f32 %v3998, %v4654
    %v4911 = vadd.f32 %v3999, %v4655
    %v4912 = vadd.f32 %v4000, %v4656
    %v4913 = vadd.f32 %v4001, %v4657
    %v4914 = vadd.f32 %v4002, %v4658
    %v4915 = vadd.f32 %v4003, %v4659
    %v4916 = vadd.f32 %v4004, %v4660
    %v4917 = vadd.f32 %v4005, %v4661
    %v4918 = vadd.f32 %v4006, %v4662
    %v4919 = vadd.f32 %v4007, %v4663
    %v4920 = vadd.f32 %v4008, %v4664
    %v4921 = vadd.f32 %v4009, %v4665
    %v4922 = vadd.f32 %v4010, %v4666
    %v4923 = vadd.f32 %v4011, %v4667
    %v4924 = vadd.f32 %v4012, %v4668
    %v4925 = vadd.f32 %v4013, %v4669
    %v4926 = vadd.f32 %v4014, %v4670
    %v4927 = vadd.f32 %v4015, %v4671
    %v4928 = vadd.f32 %v4016, %v4672
    %v4929 = vadd.f32 %v4017, %v4673
    %v4930 = vadd.f32 %v4018, %v4674
    %v4931 = vadd.f32 %v4019, %v4675
    %v4932 = vadd.f32 %v4020, %v4676
    %v4933 = vadd.f32 %v4021, %v4677
    %v4934 = vadd.f32 %v4022, %v4678
    %v4935 = vadd.f32 %v4023, %v4679
    %v4936 = vadd.f32 %v4024, %v4680
    %v4937 = vadd.f32 %v4025, %v4681
    %v4938 = vadd.f32 %v4026, %v4682
    %v4939 = vadd.f32 %v4027, %v4683
    %v4940 = vadd.f32 %v4028, %v4684
    %v4941 = vadd.f32 %v4029, %v4685
    %v4942 = vadd.f32 %v4030, %v4686
    %v4943 = vadd.f32 %v4031, %v4687
    %v4944 = vadd.f32 %v4032, %v4688
    %v4945 = vadd.f32 %v4033, %v4689
    %v4946 = vadd.f32 %v4034, %v4690
    %v4947 = vadd.f32 %v4035, %v4691
    %v4948 = vadd.f32 %v4036, %v4692
    %v4949 = vadd.f32 %v4037, %v4693
    %v4950 = vadd.f32 %v4038, %v4694
    %v4951 = vadd.f32 %v4039, %v4695
    %v4952 = vadd.f32 %v4040, %v4696
    %v4953 = vadd.f32 %v4041, %v4697
    %v4954 = vadd.f32 %v4042, %v4698
    %v4955 = vadd.f32 %v4043, %v4699
    %v4956 = vadd.f32 %v4044, %v4700
    %v4957 = vadd.f32 %v4045, %v4701
    %v4958 = vadd.f32 %v4046, %v4702
    %v4959 = vadd.f32 %v4047, %v4703
    %v4960 = vadd.f32 %v4048, %v4704
    %v4961 = vadd.f32 %v4049, %v4705
    %v4962 = vadd.f32 %v4050, %v4706
    %v4963 = vadd.f32 %v4051, %v4707
    %v4964 = vadd.f32 %v4052, %v4708
    %v4965 = vadd.f32 %v4053, %v4709
    %v4966 = vadd.f32 %v4054, %v4710
    %v4967 = vadd.f32 %v4055, %v4711
    %v4968 = vadd.f32 %v4056, %v4712
    %v4969 = vadd.f32 %v4057, %v4713
    %v4970 = vadd.f32 %v4058, %v4714
    %v4971 = vadd.f32 %v4059, %v4715
    %v4972 = vadd.f32 %v4060, %v4716
    %v4973 = vadd.f32 %v4061, %v4717
    %v4974 = vadd.f32 %v4062, %v4718
    %v4975 = vadd.f32 %v4063, %v4719
    %v4976 = vadd.f32 %v4064, %v4720
    %v4977 = vadd.f32 %v4065, %v4721
    %v4978 = vadd.f32 %v4066, %v4722
    %v4979 = vadd.f32 %v4067, %v4723
    %v4980 = vadd.f32 %v4068, %v4724
    %v4981 = vadd.f32 %v4069, %v4725
    %v4982 = vadd.f32 %v4070, %v4726
    %v4983 = vadd.f32 %v4071, %v4727
    %v4984 = vadd.f32 %v4072, %v4728
    %v4985 = vadd.f32 %v4073, %v4729
    %v4986 = vadd.f32 %v4074, %v4730
    %v4987 = vadd.f32 %v4075, %v4731
    %v4988 = vadd.f32 %v4076, %v4732
    %v4989 = vadd.f32 %v4077, %v4733
    %v4990 = vadd.f32 %v4078, %v4734
    %v4991 = vadd.f32 %v4079, %v4735
    %v4992 = vadd.f32 %v4080, %v4736
    %v4993 = vadd.f32 %v4081, %v4737
    %v4994 = vadd.f32 %v4082, %v4738
    %v4995 = vadd.f32 %v4083, %v4739
    %v4996 = vadd.f32 %v4084, %v4740
    %v4997 = vadd.f32 %v4085, %v4741
    %v4998 = vadd.f32 %v4086, %v4742
    %v4999 = vadd.f32 %v4087, %v4743
    %v5000 = vadd.f32 %v4088, %v4744
    %v5001 = vadd.f32 %v4089, %v4745
    %v5002 = vadd.f32 %v4090, %v4746
    %v5003 = vadd.f32 %v4091, %v4747
    %v5004 = vadd.f32 %v4092, %v4748
    %v5005 = vadd.f32 %v4093, %v4749
    %v5006 = vadd.f32 %v4094, %v4750
    %v5007 = vadd.f32 %v4095, %v4751
    %v5008 = vadd.f32 %v4096, %v4752
    %v5009 = vadd.f32 %v4097, %v4753
    %v5010 = vadd.f32 %v4098, %v4754
    %v5011 = vadd.f32 %v4099, %v4755
    %v5012 = vadd.f32 %v4100, %v4756
    %v5013 = vadd.f32 %v4101, %v4757
    %v5014 = vadd.f32 %v4102, %v4758
    %v5015 = vadd.f32 %v4103, %v4759
    %v5016 = vadd.f32 %v4104, %v4760
    %v5017 = vadd.f32 %v4105, %v4761
    %v5018 = vadd.f32 %v4106, %v4762
    %v5019 = vadd.f32 %v4107, %v4763
    %v5020 = vadd.f32 %v4108, %v4764
    %v5021 = vadd.f32 %v4109, %v4765
    %v5022 = vadd.f32 %v4110, %v4766
    %v5023 = vadd.f32 %v4111, %v4767
    %v5024 = vadd.f32 %v4112, %v4768
    %v5025 = vadd.f32 %v4113, %v4769
    %v5026 = vadd.f32 %v4114, %v4770
    %v5027 = vadd.f32 %v4115, %v4771
    %v5028 = vadd.f32 %v4116, %v4772
    %v5029 = vadd.f32 %v4117, %v4773
    %v5030 = vadd.f32 %v4118, %v4774
    %v5031 = vadd.f32 %v4119, %v4775
    %v5032 = vadd.f32 %v4120, %v4776
    %v5033 = vadd.f32 %v4121, %v4777
    %v5034 = vadd.f32 %v4122, %v4778
    %v5035 = vadd.f32 %v4123, %v4779
    %v5036 = vadd.f32 %v4124, %v4780
    %v5037 = vadd.f32 %v4125, %v4781
    %v5038 = vadd.f32 %v4126, %v4782
    %v5039 = vadd.f32 %v4127, %v4783
    %v5040 = vadd.f32 %v4128, %v4784
    %v5041 = vadd.f32 %v4129, %v4785
    %v5042 = vadd.f32 %v4130, %v4786
    %v5043 = vadd.f32 %v4131, %v4787
    %v5044 = vadd.f32 %v4132, %v4788
    %v5045 = vadd.f32 %v4133, %v4789
    %v5046 = vadd.f32 %v4134, %v4790
    %v5047 = vadd.f32 %v4135, %v4791
    %v5048 = vadd.f32 %v4136, %v4792
    %v5049 = vadd.f32 %v4137, %v4793
    %v5050 = vadd.f32 %v4138, %v4794
    %v5051 = vadd.f32 %v4139, %v4795
    %v5052 = vadd.f32 %v4140, %v4796
    %v5053 = vadd.f32 %v4141, %v4797
    %v5054 = vadd.f32 %v4142, %v4798
    %v5055 = vadd.f32 %v4143, %v4799
    %v5056 = vadd.f32 %v4144, %v4800
    %v5057 = vadd.f32 %v4145, %v4801
    %v5058 = vadd.f32 %v4146, %v4802
    %v5059 = vadd.f32 %v4147, %v4803
    %v5060 = vadd.f32 %v4148, %v4804
    %v5061 = vadd.f32 %v4149, %v4805
    %v5062 = vadd.f32 %v4150, %v4806
    %v5063 = vadd.f32 %v4151, %v4807
    %v5064 = vadd.f32 %v4152, %v4808
    %v5065 = vadd.f32 %v4153, %v4809
    %v5066 = vadd.f32 %v4154, %v4810
    %v5067 = vadd.f32 %v4155, %v4811
    %v5068 = vadd.f32 %v4156, %v4812
    %v5069 = vadd.f32 %v4157, %v4813
    %v5070 = vadd.f32 %v4158, %v4814
    %v5071 = vadd.f32 %v4159, %v4815
    %v5072 = vadd.f32 %v4160, %v4816
    %v5073 = vadd.f32 %v4161, %v4817
    %v5074 = vadd.f32 %v4162, %v4818
    %v5075 = vadd.f32 %v4163, %v4819
    %v5076 = vadd.f32 %v4164, %v4820
    %v5077 = vadd.f32 %v4165, %v4821
    %v5078 = vadd.f32 %v4166, %v4822
    %v5079 = vadd.f32 %v4167, %v4823
    %v5080 = vadd.f32 %v4168, %v4824
    %v5081 = vadd.f32 %v4169, %v4825
    %v5082 = vadd.f32 %v4170, %v4826
    %v5083 = vadd.f32 %v4171, %v4827
    %v5084 = vadd.f32 %v4172, %v4828
    %v5085 = vadd.f32 %v4173, %v4829
    %v5086 = vadd.f32 %v4174, %v4830
    %v5087 = vadd.f32 %v4175, %v4831
    %v5088 = vadd.f32 %v4176, %v4832
    %v5089 = vadd.f32 %v4177, %v4833
    %v5090 = vadd.f32 %v4178, %v4834
    %v5091 = vadd.f32 %v4179, %v4835
    %v5092 = vadd.f32 %v4180, %v4836
    %v5093 = vadd.f32 %v4181, %v4837
    %v5094 = vadd.f32 %v4182, %v4838
    %v5095 = vadd.f32 %v4183, %v4839
    %v5096 = vadd.f32 %v4184, %v4840
    %v5097 = vadd.f32 %v4185, %v4841
    %v5098 = vadd.f32 %v4186, %v4842
    %v5099 = vadd.f32 %v4187, %v4843
    %v5100 = vadd.f32 %v4188, %v4844
    %v5101 = vadd.f32 %v4189, %v4845
    %v5102 = vadd.f32 %v4190, %v4846
    %v5103 = vadd.f32 %v4191, %v4847
    %v5104 = vadd.f32 %v4192, %v4848
    %v5105 = vadd.f32 %v4193, %v4849
    %v5106 = vadd.f32 %v4194, %v4850
    %v5107 = vadd.f32 %v4195, %v4851
    %v5108 = vadd.f32 %v4196, %v4852
    %v5109 = vmul.f32 %v640, %v4853
    %v5110 = vmul.f32 %v642, %v4854
    %v5111 = vmul.f32 %v897, %v4855
    %v5112 = vmul.f32 %v899, %v4856
    %v5113 = vmul.f32 %v1154, %v4857
    %v5114 = vmul.f32 %v1156, %v4858
    %v5115 = vmul.f32 %v1411, %v4859
    %v5116 = vmul.f32 %v1413, %v4860
    %v5117 = vmul.f32 %v646, %v4861
    %v5118 = vmul.f32 %v648, %v4862
    %v5119 = vmul.f32 %v903, %v4863
    %v5120 = vmul.f32 %v905, %v4864
    %v5121 = vmul.f32 %v1160, %v4865
    %v5122 = vmul.f32 %v1162, %v4866
    %v5123 = vmul.f32 %v1417, %v4867
    %v5124 = vmul.f32 %v1419, %v4868
    %v5125 = vmul.f32 %v652, %v4869
    %v5126 = vmul.f32 %v654, %v4870
    %v5127 = vmul.f32 %v909, %v4871
    %v5128 = vmul.f32 %v911, %v4872
    %v5129 = vmul.f32 %v1166, %v4873
    %v5130 = vmul.f32 %v1168, %v4874
    %v5131 = vmul.f32 %v1423, %v4875
    %v5132 = vmul.f32 %v1425, %v4876
    %v5133 = vmul.f32 %v658, %v4877
    %v5134 = vmul.f32 %v660, %v4878
    %v5135 = vmul.f32 %v915, %v4879
    %v5136 = vmul.f32 %v917, %v4880
    %v5137 = vmul.f32 %v1172, %v4881
    %v5138 = vmul.f32 %v1174, %v4882
    %v5139 = vmul.f32 %v1429, %v4883
    %v5140 = vmul.f32 %v1431, %v4884
    %v5141 = vmul.f32 %v664, %v4885
    %v5142 = vmul.f32 %v666, %v4886
    %v5143 = vmul.f32 %v921, %v4887
    %v5144 = vmul.f32 %v923, %v4888
    %v5145 = vmul.f32 %v1178, %v4889
    %v5146 = vmul.f32 %v1180, %v4890
    %v5147 = vmul.f32 %v1435, %v4891
    %v5148 = vmul.f32 %v1437, %v4892
    %v5149 = vmul.f32 %v670, %v4893
    %v5150 = vmul.f32 %v672, %v4894
    %v5151 = vmul.f32 %v927, %v4895
    %v5152 = vmul.f32 %v929, %v4896
    %v5153 = vmul.f32 %v1184, %v4897
    %v5154 = vmul.f32 %v1186, %v4898
    %v5155 = vmul.f32 %v1441, %v4899
    %v5156 = vmul.f32 %v1443, %v4900
    %v5157 = vmul.f32 %v676, %v4901
    %v5158 = vmul.f32 %v678, %v4902
    %v5159 = vmul.f32 %v933, %v4903
    %v5160 = vmul.f32 %v935, %v4904
    %v5161 = vmul.f32 %v1190, %v4905
    %v5162 = vmul.f32 %v1192, %v4906
    %v5163 = vmul.f32 %v1447, %v4907
    %v5164 = vmul.f32 %v1449, %v4908
    %v5165 = vmul.f32 %v682, %v4909
    %v5166 = vmul.f32 %v684, %v4910
    %v5167 = vmul.f32 %v939, %v4911
    %v5168 = vmul.f32 %v941, %v4912
    %v5169 = vmul.f32 %v1196, %v4913
    %v5170 = vmul.f32 %v1198, %v4914
    %v5171 = vmul.f32 %v1453, %v4915
    %v5172 = vmul.f32 %v1455, %v4916
    %v5173 = vmul.f32 %v688, %v4917
    %v5174 = vmul.f32 %v690, %v4918
    %v5175 = vmul.f32 %v945, %v4919
    %v5176 = vmul.f32 %v947, %v4920
    %v5177 = vmul.f32 %v1202, %v4921
    %v5178 = vmul.f32 %v1204, %v4922
    %v5179 = vmul.f32 %v1459, %v4923
    %v5180 = vmul.f32 %v1461, %v4924
    %v5181 = vmul.f32 %v694, %v4925
    %v5182 = vmul.f32 %v696, %v4926
    %v5183 = vmul.f32 %v951, %v4927
    %v5184 = vmul.f32 %v953, %v4928
    %v5185 = vmul.f32 %v1208, %v4929
    %v5186 = vmul.f32 %v1210, %v4930
    %v5187 = vmul.f32 %v1465, %v4931
    %v5188 = vmul.f32 %v1467, %v4932
    %v5189 = vmul.f32 %v700, %v4933
    %v5190 = vmul.f32 %v702, %v4934
    %v5191 = vmul.f32 %v957, %v4935
    %v5192 = vmul.f32 %v959, %v4936
    %v5193 = vmul.f32 %v1214, %v4937
    %v5194 = vmul.f32 %v1216, %v4938
    %v5195 = vmul.f32 %v1471, %v4939
    %v5196 = vmul.f32 %v1473, %v4940
    %v5197 = vmul.f32 %v706, %v4941
    %v5198 = vmul.f32 %v708, %v4942
    %v5199 = vmul.f32 %v963, %v4943
    %v5200 = vmul.f32 %v965, %v4944
    %v5201 = vmul.f32 %v1220, %v4945
    %v5202 = vmul.f32 %v1222, %v4946
    %v5203 = vmul.f32 %v1477, %v4947
    %v5204 = vmul.f32 %v1479, %v4948
    %v5205 = vmul.f32 %v712, %v4949
    %v5206 = vmul.f32 %v714, %v4950
    %v5207 = vmul.f32 %v969, %v4951
    %v5208 = vmul.f32 %v971, %v4952
    %v5209 = vmul.f32 %v1226, %v4953
    %v5210 = vmul.f32 %v1228, %v4954
    %v5211 = vmul.f32 %v1483, %v4955
    %v5212 = vmul.f32 %v1485, %v4956
    %v5213 = vmul.f32 %v718, %v4957
    %v5214 = vmul.f32 %v720, %v4958
    %v5215 = vmul.f32 %v975, %v4959
    %v5216 = vmul.f32 %v977, %v4960
    %v5217 = vmul.f32 %v1232, %v4961
    %v5218 = vmul.f32 %v1234, %v4962
    %v5219 = vmul.f32 %v1489, %v4963
    %v5220 = vmul.f32 %v1491, %v4964
    %v5221 = vmul.f32 %v724, %v4965
    %v5222 = vmul.f32 %v726, %v4966
    %v5223 = vmul.f32 %v981, %v4967
    %v5224 = vmul.f32 %v983, %v4968
    %v5225 = vmul.f32 %v1238, %v4969
    %v5226 = vmul.f32 %v1240, %v4970
    %v5227 = vmul.f32 %v1495, %v4971
    %v5228 = vmul.f32 %v1497, %v4972
    %v5229 = vmul.f32 %v730, %v4973
    %v5230 = vmul.f32 %v732, %v4974
    %v5231 = vmul.f32 %v987, %v4975
    %v5232 = vmul.f32 %v989, %v4976
    %v5233 = vmul.f32 %v1244, %v4977
    %v5234 = vmul.f32 %v1246, %v4978
    %v5235 = vmul.f32 %v1501, %v4979
    %v5236 = vmul.f32 %v1503, %v4980
    %v5237 = vmul.f32 %v736, %v4981
    %v5238 = vmul.f32 %v738, %v4982
    %v5239 = vmul.f32 %v993, %v4983
    %v5240 = vmul.f32 %v995, %v4984
    %v5241 = vmul.f32 %v1250, %v4985
    %v5242 = vmul.f32 %v1252, %v4986
    %v5243 = vmul.f32 %v1507, %v4987
    %v5244 = vmul.f32 %v1509, %v4988
    %v5245 = vmul.f32 %v742, %v4989
    %v5246 = vmul.f32 %v744, %v4990
    %v5247 = vmul.f32 %v999, %v4991
    %v5248 = vmul.f32 %v1001, %v4992
    %v5249 = vmul.f32 %v1256, %v4993
    %v5250 = vmul.f32 %v1258, %v4994
    %v5251 = vmul.f32 %v1513, %v4995
    %v5252 = vmul.f32 %v1515, %v4996
    %v5253 = vmul.f32 %v748, %v4997
    %v5254 = vmul.f32 %v750, %v4998
    %v5255 = vmul.f32 %v1005, %v4999
    %v5256 = vmul.f32 %v1007, %v5000
    %v5257 = vmul.f32 %v1262, %v5001
    %v5258 = vmul.f32 %v1264, %v5002
    %v5259 = vmul.f32 %v1519, %v5003
    %v5260 = vmul.f32 %v1521, %v5004
    %v5261 = vmul.f32 %v754, %v5005
    %v5262 = vmul.f32 %v756, %v5006
    %v5263 = vmul.f32 %v1011, %v5007
    %v5264 = vmul.f32 %v1013, %v5008
    %v5265 = vmul.f32 %v1268, %v5009
    %v5266 = vmul.f32 %v1270, %v5010
    %v5267 = vmul.f32 %v1525, %v5011
    %v5268 = vmul.f32 %v1527, %v5012
    %v5269 = vmul.f32 %v760, %v5013
    %v5270 = vmul.f32 %v762, %v5014
    %v5271 = vmul.f32 %v1017, %v5015
    %v5272 = vmul.f32 %v1019, %v5016
    %v5273 = vmul.f32 %v1274, %v5017
    %v5274 = vmul.f32 %v1276, %v5018
    %v5275 = vmul.f32 %v1531, %v5019
    %v5276 = vmul.f32 %v1533, %v5020
    %v5277 = vmul.f32 %v766, %v5021
    %v5278 = vmul.f32 %v768, %v5022
    %v5279 = vmul.f32 %v1023, %v5023
    %v5280 = vmul.f32 %v1025, %v5024
    %v5281 = vmul.f32 %v1280, %v5025
    %v5282 = vmul.f32 %v1282, %v5026
    %v5283 = vmul.f32 %v1537, %v5027
    %v5284 = vmul.f32 %v1539, %v5028
    %v5285 = vmul.f32 %v772, %v5029
    %v5286 = vmul.f32 %v774, %v5030
    %v5287 = vmul.f32 %v1029, %v5031
    %v5288 = vmul.f32 %v1031, %v5032
    %v5289 = vmul.f32 %v1286, %v5033
    %v5290 = vmul.f32 %v1288, %v5034
    %v5291 = vmul.f32 %v1543, %v5035
    %v5292 = vmul.f32 %v1545, %v5036
    %v5293 = vmul.f32 %v778, %v5037
    %v5294 = vmul.f32 %v780, %v5038
    %v5295 = vmul.f32 %v1035, %v5039
    %v5296 = vmul.f32 %v1037, %v5040
    %v5297 = vmul.f32 %v1292, %v5041
    %v5298 = vmul.f32 %v1294, %v5042
    %v5299 = vmul.f32 %v1549, %v5043
    %v5300 = vmul.f32 %v1551, %v5044
    %v5301 = vmul.f32 %v784, %v5045
    %v5302 = vmul.f32 %v786, %v5046
    %v5303 = vmul.f32 %v1041, %v5047
    %v5304 = vmul.f32 %v1043, %v5048
    %v5305 = vmul.f32 %v1298, %v5049
    %v5306 = vmul.f32 %v1300, %v5050
    %v5307 = vmul.f32 %v1555, %v5051
    %v5308 = vmul.f32 %v1557, %v5052
    %v5309 = vmul.f32 %v790, %v5053
    %v5310 = vmul.f32 %v792, %v5054
    %v5311 = vmul.f32 %v1047, %v5055
    %v5312 = vmul.f32 %v1049, %v5056
    %v5313 = vmul.f32 %v1304, %v5057
    %v5314 = vmul.f32 %v1306, %v5058
    %v5315 = vmul.f32 %v1561, %v5059
    %v5316 = vmul.f32 %v1563, %v5060
    %v5317 = vmul.f32 %v796, %v5061
    %v5318 = vmul.f32 %v798, %v5062
    %v5319 = vmul.f32 %v1053, %v5063
    %v5320 = vmul.f32 %v1055, %v5064
    %v5321 = vmul.f32 %v1310, %v5065
    %v5322 = vmul.f32 %v1312, %v5066
    %v5323 = vmul.f32 %v1567, %v5067
    %v5324 = vmul.f32 %v1569, %v5068
    %v5325 = vmul.f32 %v802, %v5069
    %v5326 = vmul.f32 %v804, %v5070
    %v5327 = vmul.f32 %v1059, %v5071
    %v5328 = vmul.f32 %v1061, %v5072
    %v5329 = vmul.f32 %v1316, %v5073
    %v5330 = vmul.f32 %v1318, %v5074
    %v5331 = vmul.f32 %v1573, %v5075
    %v5332 = vmul.f32 %v1575, %v5076
    %v5333 = vmul.f32 %v808, %v5077
    %v5334 = vmul.f32 %v810, %v5078
    %v5335 = vmul.f32 %v1065, %v5079
    %v5336 = vmul.f32 %v1067, %v5080
    %v5337 = vmul.f32 %v1322, %v5081
    %v5338 = vmul.f32 %v1324, %v5082
    %v5339 = vmul.f32 %v1579, %v5083
    %v5340 = vmul.f32 %v1581, %v5084
    %v5341 = vmul.f32 %v814, %v5085
    %v5342 = vmul.f32 %v816, %v5086
    %v5343 = vmul.f32 %v1071, %v5087
    %v5344 = vmul.f32 %v1073, %v5088
    %v5345 = vmul.f32 %v1328, %v5089
    %v5346 = vmul.f32 %v1330, %v5090
    %v5347 = vmul.f32 %v1585, %v5091
    %v5348 = vmul.f32 %v1587, %v5092
    %v5349 = vmul.f32 %v820, %v5093
    %v5350 = vmul.f32 %v822, %v5094
    %v5351 = vmul.f32 %v1077, %v5095
    %v5352 = vmul.f32 %v1079, %v5096
    %v5353 = vmul.f32 %v1334, %v5097
    %v5354 = vmul.f32 %v1336, %v5098
    %v5355 = vmul.f32 %v1591, %v5099
    %v5356 = vmul.f32 %v1593, %v5100
    %v5357 = vmul.f32 %v826, %v5101
    %v5358 = vmul.f32 %v828, %v5102
    %v5359 = vmul.f32 %v1083, %v5103
    %v5360 = vmul.f32 %v1085, %v5104
    %v5361 = vmul.f32 %v1340, %v5105
    %v5362 = vmul.f32 %v1342, %v5106
    %v5363 = vmul.f32 %v1597, %v5107
    %v5364 = vmul.f32 %v1599, %v5108
    %v5365 = vadd.f32 %v5109, %v5117
    %v5366 = vadd.f32 %v5365, %v5125
    %v5367 = vadd.f32 %v5366, %v5133
    %v5368 = vadd.f32 %v5367, %v5141
    %v5369 = vadd.f32 %v5368, %v5149
    %v5370 = vadd.f32 %v5369, %v5157
    %v5371 = vadd.f32 %v5370, %v5165
    %v5372 = vadd.f32 %v5371, %v5173
    %v5373 = vadd.f32 %v5372, %v5181
    %v5374 = vadd.f32 %v5373, %v5189
    %v5375 = vadd.f32 %v5374, %v5197
    %v5376 = vadd.f32 %v5375, %v5205
    %v5377 = vadd.f32 %v5376, %v5213
    %v5378 = vadd.f32 %v5377, %v5221
    %v5379 = vadd.f32 %v5378, %v5229
    %v5380 = vadd.f32 %v5379, %v5237
    %v5381 = vadd.f32 %v5380, %v5245
    %v5382 = vadd.f32 %v5381, %v5253
    %v5383 = vadd.f32 %v5382, %v5261
    %v5384 = vadd.f32 %v5383, %v5269
    %v5385 = vadd.f32 %v5384, %v5277
    %v5386 = vadd.f32 %v5385, %v5285
    %v5387 = vadd.f32 %v5386, %v5293
    %v5388 = vadd.f32 %v5387, %v5301
    %v5389 = vadd.f32 %v5388, %v5309
    %v5390 = vadd.f32 %v5389, %v5317
    %v5391 = vadd.f32 %v5390, %v5325
    %v5392 = vadd.f32 %v5391, %v5333
    %v5393 = vadd.f32 %v5392, %v5341
    %v5394 = vadd.f32 %v5393, %v5349
    %v5395 = vadd.f32 %v5394, %v5357
    %v5396 = vrot.slane %v5395, 4
    %v5397 = vadd.f32 %v5395, %v5396
    %v5398 = vrot.slane %v5397, 2
    %v5399 = vadd.f32 %v5397, %v5398
    %v5400 = vrot.slane %v5399, 1
    %v5401 = vadd.f32 %v5399, %v5400
    %v5402 = vadd.f32 %v5110, %v5118
    %v5403 = vadd.f32 %v5402, %v5126
    %v5404 = vadd.f32 %v5403, %v5134
    %v5405 = vadd.f32 %v5404, %v5142
    %v5406 = vadd.f32 %v5405, %v5150
    %v5407 = vadd.f32 %v5406, %v5158
    %v5408 = vadd.f32 %v5407, %v5166
    %v5409 = vadd.f32 %v5408, %v5174
    %v5410 = vadd.f32 %v5409, %v5182
    %v5411 = vadd.f32 %v5410, %v5190
    %v5412 = vadd.f32 %v5411, %v5198
    %v5413 = vadd.f32 %v5412, %v5206
    %v5414 = vadd.f32 %v5413, %v5214
    %v5415 = vadd.f32 %v5414, %v5222
    %v5416 = vadd.f32 %v5415, %v5230
    %v5417 = vadd.f32 %v5416, %v5238
    %v5418 = vadd.f32 %v5417, %v5246
    %v5419 = vadd.f32 %v5418, %v5254
    %v5420 = vadd.f32 %v5419, %v5262
    %v5421 = vadd.f32 %v5420, %v5270
    %v5422 = vadd.f32 %v5421, %v5278
    %v5423 = vadd.f32 %v5422, %v5286
    %v5424 = vadd.f32 %v5423, %v5294
    %v5425 = vadd.f32 %v5424, %v5302
    %v5426 = vadd.f32 %v5425, %v5310
    %v5427 = vadd.f32 %v5426, %v5318
    %v5428 = vadd.f32 %v5427, %v5326
    %v5429 = vadd.f32 %v5428, %v5334
    %v5430 = vadd.f32 %v5429, %v5342
    %v5431 = vadd.f32 %v5430, %v5350
    %v5432 = vadd.f32 %v5431, %v5358
    %v5433 = vrot.slane %v5432, 4
    %v5434 = vadd.f32 %v5432, %v5433
    %v5435 = vrot.slane %v5434, 2
    %v5436 = vadd.f32 %v5434, %v5435
    %v5437 = vrot.slane %v5436, 1
    %v5438 = vadd.f32 %v5436, %v5437
    %v5439 = vadd.f32 %v5111, %v5119
    %v5440 = vadd.f32 %v5439, %v5127
    %v5441 = vadd.f32 %v5440, %v5135
    %v5442 = vadd.f32 %v5441, %v5143
    %v5443 = vadd.f32 %v5442, %v5151
    %v5444 = vadd.f32 %v5443, %v5159
    %v5445 = vadd.f32 %v5444, %v5167
    %v5446 = vadd.f32 %v5445, %v5175
    %v5447 = vadd.f32 %v5446, %v5183
    %v5448 = vadd.f32 %v5447, %v5191
    %v5449 = vadd.f32 %v5448, %v5199
    %v5450 = vadd.f32 %v5449, %v5207
    %v5451 = vadd.f32 %v5450, %v5215
    %v5452 = vadd.f32 %v5451, %v5223
    %v5453 = vadd.f32 %v5452, %v5231
    %v5454 = vadd.f32 %v5453, %v5239
    %v5455 = vadd.f32 %v5454, %v5247
    %v5456 = vadd.f32 %v5455, %v5255
    %v5457 = vadd.f32 %v5456, %v5263
    %v5458 = vadd.f32 %v5457, %v5271
    %v5459 = vadd.f32 %v5458, %v5279
    %v5460 = vadd.f32 %v5459, %v5287
    %v5461 = vadd.f32 %v5460, %v5295
    %v5462 = vadd.f32 %v5461, %v5303
    %v5463 = vadd.f32 %v5462, %v5311
    %v5464 = vadd.f32 %v5463, %v5319
    %v5465 = vadd.f32 %v5464, %v5327
    %v5466 = vadd.f32 %v5465, %v5335
    %v5467 = vadd.f32 %v5466, %v5343
    %v5468 = vadd.f32 %v5467, %v5351
    %v5469 = vadd.f32 %v5468, %v5359
    %v5470 = vrot.slane %v5469, 4
    %v5471 = vadd.f32 %v5469, %v5470
    %v5472 = vrot.slane %v5471, 2
    %v5473 = vadd.f32 %v5471, %v5472
    %v5474 = vrot.slane %v5473, 1
    %v5475 = vadd.f32 %v5473, %v5474
    %v5476 = vadd.f32 %v5112, %v5120
    %v5477 = vadd.f32 %v5476, %v5128
    %v5478 = vadd.f32 %v5477, %v5136
    %v5479 = vadd.f32 %v5478, %v5144
    %v5480 = vadd.f32 %v5479, %v5152
    %v5481 = vadd.f32 %v5480, %v5160
    %v5482 = vadd.f32 %v5481, %v5168
    %v5483 = vadd.f32 %v5482, %v5176
    %v5484 = vadd.f32 %v5483, %v5184
    %v5485 = vadd.f32 %v5484, %v5192
    %v5486 = vadd.f32 %v5485, %v5200
    %v5487 = vadd.f32 %v5486, %v5208
    %v5488 = vadd.f32 %v5487, %v5216
    %v5489 = vadd.f32 %v5488, %v5224
    %v5490 = vadd.f32 %v5489, %v5232
    %v5491 = vadd.f32 %v5490, %v5240
    %v5492 = vadd.f32 %v5491, %v5248
    %v5493 = vadd.f32 %v5492, %v5256
    %v5494 = vadd.f32 %v5493, %v5264
    %v5495 = vadd.f32 %v5494, %v5272
    %v5496 = vadd.f32 %v5495, %v5280
    %v5497 = vadd.f32 %v5496, %v5288
    %v5498 = vadd.f32 %v5497, %v5296
    %v5499 = vadd.f32 %v5498, %v5304
    %v5500 = vadd.f32 %v5499, %v5312
    %v5501 = vadd.f32 %v5500, %v5320
    %v5502 = vadd.f32 %v5501, %v5328
    %v5503 = vadd.f32 %v5502, %v5336
    %v5504 = vadd.f32 %v5503, %v5344
    %v5505 = vadd.f32 %v5504, %v5352
    %v5506 = vadd.f32 %v5505, %v5360
    %v5507 = vrot.slane %v5506, 4
    %v5508 = vadd.f32 %v5506, %v5507
    %v5509 = vrot.slane %v5508, 2
    %v5510 = vadd.f32 %v5508, %v5509
    %v5511 = vrot.slane %v5510, 1
    %v5512 = vadd.f32 %v5510, %v5511
    %v5513 = vadd.f32 %v5113, %v5121
    %v5514 = vadd.f32 %v5513, %v5129
    %v5515 = vadd.f32 %v5514, %v5137
    %v5516 = vadd.f32 %v5515, %v5145
    %v5517 = vadd.f32 %v5516, %v5153
    %v5518 = vadd.f32 %v5517, %v5161
    %v5519 = vadd.f32 %v5518, %v5169
    %v5520 = vadd.f32 %v5519, %v5177
    %v5521 = vadd.f32 %v5520, %v5185
    %v5522 = vadd.f32 %v5521, %v5193
    %v5523 = vadd.f32 %v5522, %v5201
    %v5524 = vadd.f32 %v5523, %v5209
    %v5525 = vadd.f32 %v5524, %v5217
    %v5526 = vadd.f32 %v5525, %v5225
    %v5527 = vadd.f32 %v5526, %v5233
    %v5528 = vadd.f32 %v5527, %v5241
    %v5529 = vadd.f32 %v5528, %v5249
    %v5530 = vadd.f32 %v5529, %v5257
    %v5531 = vadd.f32 %v5530, %v5265
    %v5532 = vadd.f32 %v5531, %v5273
    %v5533 = vadd.f32 %v5532, %v5281
    %v5534 = vadd.f32 %v5533, %v5289
    %v5535 = vadd.f32 %v5534, %v5297
    %v5536 = vadd.f32 %v5535, %v5305
    %v5537 = vadd.f32 %v5536, %v5313
    %v5538 = vadd.f32 %v5537, %v5321
    %v5539 = vadd.f32 %v5538, %v5329
    %v5540 = vadd.f32 %v5539, %v5337
    %v5541 = vadd.f32 %v5540, %v5345
    %v5542 = vadd.f32 %v5541, %v5353
    %v5543 = vadd.f32 %v5542, %v5361
    %v5544 = vrot.slane %v5543, 4
    %v5545 = vadd.f32 %v5543, %v5544
    %v5546 = vrot.slane %v5545, 2
    %v5547 = vadd.f32 %v5545, %v5546
    %v5548 = vrot.slane %v5547, 1
    %v5549 = vadd.f32 %v5547, %v5548
    %v5550 = vadd.f32 %v5114, %v5122
    %v5551 = vadd.f32 %v5550, %v5130
    %v5552 = vadd.f32 %v5551, %v5138
    %v5553 = vadd.f32 %v5552, %v5146
    %v5554 = vadd.f32 %v5553, %v5154
    %v5555 = vadd.f32 %v5554, %v5162
    %v5556 = vadd.f32 %v5555, %v5170
    %v5557 = vadd.f32 %v5556, %v5178
    %v5558 = vadd.f32 %v5557, %v5186
    %v5559 = vadd.f32 %v5558, %v5194
    %v5560 = vadd.f32 %v5559, %v5202
    %v5561 = vadd.f32 %v5560, %v5210
    %v5562 = vadd.f32 %v5561, %v5218
    %v5563 = vadd.f32 %v5562, %v5226
    %v5564 = vadd.f32 %v5563, %v5234
    %v5565 = vadd.f32 %v5564, %v5242
    %v5566 = vadd.f32 %v5565, %v5250
    %v5567 = vadd.f32 %v5566, %v5258
    %v5568 = vadd.f32 %v5567, %v5266
    %v5569 = vadd.f32 %v5568, %v5274
    %v5570 = vadd.f32 %v5569, %v5282
    %v5571 = vadd.f32 %v5570, %v5290
    %v5572 = vadd.f32 %v5571, %v5298
    %v5573 = vadd.f32 %v5572, %v5306
    %v5574 = vadd.f32 %v5573, %v5314
    %v5575 = vadd.f32 %v5574, %v5322
    %v5576 = vadd.f32 %v5575, %v5330
    %v5577 = vadd.f32 %v5576, %v5338
    %v5578 = vadd.f32 %v5577, %v5346
    %v5579 = vadd.f32 %v5578, %v5354
    %v5580 = vadd.f32 %v5579, %v5362
    %v5581 = vrot.slane %v5580, 4
    %v5582 = vadd.f32 %v5580, %v5581
    %v5583 = vrot.slane %v5582, 2
    %v5584 = vadd.f32 %v5582, %v5583
    %v5585 = vrot.slane %v5584, 1
    %v5586 = vadd.f32 %v5584, %v5585
    %v5587 = vadd.f32 %v5115, %v5123
    %v5588 = vadd.f32 %v5587, %v5131
    %v5589 = vadd.f32 %v5588, %v5139
    %v5590 = vadd.f32 %v5589, %v5147
    %v5591 = vadd.f32 %v5590, %v5155
    %v5592 = vadd.f32 %v5591, %v5163
    %v5593 = vadd.f32 %v5592, %v5171
    %v5594 = vadd.f32 %v5593, %v5179
    %v5595 = vadd.f32 %v5594, %v5187
    %v5596 = vadd.f32 %v5595, %v5195
    %v5597 = vadd.f32 %v5596, %v5203
    %v5598 = vadd.f32 %v5597, %v5211
    %v5599 = vadd.f32 %v5598, %v5219
    %v5600 = vadd.f32 %v5599, %v5227
    %v5601 = vadd.f32 %v5600, %v5235
    %v5602 = vadd.f32 %v5601, %v5243
    %v5603 = vadd.f32 %v5602, %v5251
    %v5604 = vadd.f32 %v5603, %v5259
    %v5605 = vadd.f32 %v5604, %v5267
    %v5606 = vadd.f32 %v5605, %v5275
    %v5607 = vadd.f32 %v5606, %v5283
    %v5608 = vadd.f32 %v5607, %v5291
    %v5609 = vadd.f32 %v5608, %v5299
    %v5610 = vadd.f32 %v5609, %v5307
    %v5611 = vadd.f32 %v5610, %v5315
    %v5612 = vadd.f32 %v5611, %v5323
    %v5613 = vadd.f32 %v5612, %v5331
    %v5614 = vadd.f32 %v5613, %v5339
    %v5615 = vadd.f32 %v5614, %v5347
    %v5616 = vadd.f32 %v5615, %v5355
    %v5617 = vadd.f32 %v5616, %v5363
    %v5618 = vrot.slane %v5617, 4
    %v5619 = vadd.f32 %v5617, %v5618
    %v5620 = vrot.slane %v5619, 2
    %v5621 = vadd.f32 %v5619, %v5620
    %v5622 = vrot.slane %v5621, 1
    %v5623 = vadd.f32 %v5621, %v5622
    %v5624 = vadd.f32 %v5116, %v5124
    %v5625 = vadd.f32 %v5624, %v5132
    %v5626 = vadd.f32 %v5625, %v5140
    %v5627 = vadd.f32 %v5626, %v5148
    %v5628 = vadd.f32 %v5627, %v5156
    %v5629 = vadd.f32 %v5628, %v5164
    %v5630 = vadd.f32 %v5629, %v5172
    %v5631 = vadd.f32 %v5630, %v5180
    %v5632 = vadd.f32 %v5631, %v5188
    %v5633 = vadd.f32 %v5632, %v5196
    %v5634 = vadd.f32 %v5633, %v5204
    %v5635 = vadd.f32 %v5634, %v5212
    %v5636 = vadd.f32 %v5635, %v5220
    %v5637 = vadd.f32 %v5636, %v5228
    %v5638 = vadd.f32 %v5637, %v5236
    %v5639 = vadd.f32 %v5638, %v5244
    %v5640 = vadd.f32 %v5639, %v5252
    %v5641 = vadd.f32 %v5640, %v5260
    %v5642 = vadd.f32 %v5641, %v5268
    %v5643 = vadd.f32 %v5642, %v5276
    %v5644 = vadd.f32 %v5643, %v5284
    %v5645 = vadd.f32 %v5644, %v5292
    %v5646 = vadd.f32 %v5645, %v5300
    %v5647 = vadd.f32 %v5646, %v5308
    %v5648 = vadd.f32 %v5647, %v5316
    %v5649 = vadd.f32 %v5648, %v5324
    %v5650 = vadd.f32 %v5649, %v5332
    %v5651 = vadd.f32 %v5650, %v5340
    %v5652 = vadd.f32 %v5651, %v5348
    %v5653 = vadd.f32 %v5652, %v5356
    %v5654 = vadd.f32 %v5653, %v5364
    %v5655 = vrot.slane %v5654, 4
    %v5656 = vadd.f32 %v5654, %v5655
    %v5657 = vrot.slane %v5656, 2
    %v5658 = vadd.f32 %v5656, %v5657
    %v5659 = vrot.slane %v5658, 1
    %v5660 = vadd.f32 %v5658, %v5659
    %p5661 = scmp.eq.s32.totalorder 0, 0
    // Predicated region
    $region10: #{tpu_custom_call.1} parent=1 // pred_check
      %p5662 = pneg %p5661
    $region11: #{tpu_custom_call.1} parent=1 // pred_check_branch
      %5664 = sbr.rel (%p5662) target = $region13
    $region12: #{tpu_custom_call.1} parent=1 // pred_region
      %5665 = vst [vmem:[#allocation2] sm:$0xff] 0.0
    $region13: #{tpu_custom_call.1} parent=1 // pred_fallthru
      _
    %v5666 = vld [vmem:[#allocation2] sm:$0xff]
    %v5675 = vcombine.low %v5401, %v5438
    %v5676 = vcombine.low %v5475, %v5512
    %v5677 = vcombine.low %v5549, %v5586
    %v5678 = vcombine.low %v5623, %v5660
    %v5680 = vunpack.c.l.s4 1966171168
    %v5681 = vunpack.c.0.s8 %v5680
    %v5682 = vlaneseq
    %v5683 = vshrl.u32 %v5682, 7
    %v5684 = vsub.s32 %v5681, %v5683
    %v5685 = vrot.slane %v5675, %v5684
    %v5687 = vunpack.c.l.s4 1966171168
    %v5688 = vunpack.c.0.s8 %v5687
    %v5689 = vlaneseq
    %v5690 = vshrl.u32 %v5689, 7
    %v5691 = vsub.s32 %v5688, %v5690
    %v5692 = vrot.slane %v5676, %v5691
    %v5694 = vunpack.c.l.s4 1966171168
    %v5695 = vunpack.c.0.s8 %v5694
    %v5696 = vlaneseq
    %v5697 = vshrl.u32 %v5696, 7
    %v5698 = vsub.s32 %v5695, %v5697
    %v5699 = vrot.slane %v5677, %v5698
    %v5701 = vunpack.c.l.s4 1966171168
    %v5702 = vunpack.c.0.s8 %v5701
    %v5703 = vlaneseq
    %v5704 = vshrl.u32 %v5703, 7
    %v5705 = vsub.s32 %v5702, %v5704
    %v5706 = vrot.slane %v5678, %v5705
    %v5707 = vcombine.low %v5685, %v5692
    %v5708 = vcombine.low %v5699, %v5706
    %v5710 = vunpack.c.l.s4 1966171168
    %v5711 = vunpack.c.0.s8 %v5710
    %v5712 = vlaneseq
    %v5713 = vshrl.u32 %v5712, 7
    %v5714 = vsub.s32 %v5711, %v5713
    %v5715 = vrot.slane %v5707, %v5714
    %v5717 = vunpack.c.l.s4 1966171168
    %v5718 = vunpack.c.0.s8 %v5717
    %v5719 = vlaneseq
    %v5720 = vshrl.u32 %v5719, 7
    %v5721 = vsub.s32 %v5718, %v5720
    %v5722 = vrot.slane %v5708, %v5721
    %v5723 = vcombine.low %v5715, %v5722
    %v5725 = vadd.f32 %v5666, %v5723
    %5726 = vst [vmem:[#allocation2] sm:$0xff] %v5725
    // Predicated region
    $region14: #{tpu_custom_call.1} parent=1 // pred_check
      %p5727 = pneg %p5661
    $region15: #{tpu_custom_call.1} parent=1 // pred_check_branch
      %5729 = sbr.rel (%p5727) target = $region17
    $region16: #{tpu_custom_call.1} parent=1 // pred_region
      %v5730 = vld [vmem:[#allocation2] sm:$0xff]
      %v5731 = vadd.f32 %v5730, -2.0
      %vm5732 = vcmp.gt.f32.partialorder %v5731, 20.0
      %v5733 = vmin.f32 %v5731, 20.0
      %v5734 = vmul.f32 %v5733, 1.442695
      %v5735 = vpow.pop %v5734
      %v5736 = vadd.f32 %v5735, 1.0
      %v5737 = vlog2.pop %v5736
      %v5738 = vmul.f32 %v5737, 0.6931472
      %v5739 = vmul.f32 -0.5, %v5735
      %v5740 = vadd.f32 %v5739, 1.0
      %v5741 = vmul.f32 %v5740, %v5735
      %v5742 = vand.u32 2147483647, %v5735
      %vm5743 = vcmp.lt.f32.partialorder %v5742, 0.0004427343
      %v5744 = vsel %vm5743, %v5741, %v5738
      %v5745 = vsel %vm5732, %v5731, %v5744
      %v5746 = vsub.f32 0.0, %v5745
      %v5747 = vmul.f32 %v5746, 1.442695
      %v5748 = vpow.pop %v5747
      %v5749 = vsub.f32 1.0, %v5748
      %5750 = vst [vmem:[#allocation3] sm:$0xff] %v5749
    $region17: #{tpu_custom_call.1} parent=1 // pred_fallthru
      _
    // Predicated region
    $region18: #{tpu_custom_call.1} parent=1 // pred_check
      _
    $region19: #{tpu_custom_call.1} parent=1 // pred_check_branch
      %5752 = sbr.rel (0) target = $region21
    $region20: #{tpu_custom_call.1} parent=1 // pred_region
      %s5754 = ssub.s32 128, 128
      %5755 = vsyncadd [#allocation4], %s5754
      %s5757 = sshll.u32 [#allocation3], 4
      %s5758 = int_to_ptr.vmem [resolvable:$true] %s5757
      %5760 = dma.vmem_to_hbm [thread:$0]  %s5758, 128, %s2, [#allocation4]
    $region21: #{tpu_custom_call.1} parent=1 // pred_fallthru
      _
    // Predicated region
    $region22: #{tpu_custom_call.1} parent=1 // pred_check
      _
    $region23: #{tpu_custom_call.1} parent=1 // pred_check_branch
      %5762 = sbr.rel (0) target = $region25
    $region24: #{tpu_custom_call.1} parent=1 // pred_region
      %5763 = dma.done [#allocation4], 128
    $region25: #{tpu_custom_call.1} parent=1 // pred_fallthru
      _
    %5764 = vsyncpa [#allocation4], 1

</llo_original>
